<compile_context>
chip_gen: v6e
topology: v6e:2x2x1
jax: 0.10.0
libtpu: 0.0.40
codegen_flags: <defaults>
</compile_context>

<pallas_src>
import functools
import numpy as np

import jax
import jax.numpy as jnp
from jax.experimental import pallas as pl
from jax.experimental.pallas import tpu as pltpu


# ----------------------------------------------------------------------------
# Small helpers
# ----------------------------------------------------------------------------
def _leaky(x, slope):
    return jnp.where(x >= 0, x, slope * x)


def _pick_tm(m):
    """Largest M-tile that divides M exactly; prefer >=2 blocks (v7x cores)."""
    if m <= 1024:
        if m >= 32 and m % 16 == 0:
            return m // 2          # two blocks -> both TensorCores busy
        return m                   # single full-extent block
    for t in (512, 384, 256, 128, 64, 32, 16, 8):
        if m % t == 0:
            return t
    return m


# ----------------------------------------------------------------------------
# Fused matmul (+ bias + optional leaky_relu), full-K block, bf16 inputs
# ----------------------------------------------------------------------------
def _mm_kernel(a_ref, b_ref, bias_ref, o_ref, *, slope):
    r = jnp.dot(a_ref[...], b_ref[...],
                preferred_element_type=jnp.float32) + bias_ref[...]
    if slope is not None:
        r = _leaky(r, slope)
    o_ref[...] = r.astype(o_ref.dtype)


def matmul_bias_act(a, b, bias, *, slope, out_dtype):
    """out = act(a @ b + bias).  a:(M,K) bf16, b:(K,N) bf16, bias:(1,N) f32.

    K and N are used as full-extent blocks (no padding, no k reduction loop);
    only M is tiled (grid axis marked parallel for megacore sharding).
    """
    M, K = a.shape
    K2, N = b.shape
    assert K == K2
    TM = _pick_tm(M)
    kernel = functools.partial(_mm_kernel, slope=slope)
    return pl.pallas_call(
        kernel,
        out_shape=jax.ShapeDtypeStruct((M, N), out_dtype),
        grid_spec=pltpu.PrefetchScalarGridSpec(
            num_scalar_prefetch=0,
            grid=(M // TM,),
            in_specs=[pl.BlockSpec((TM, K), lambda i: (i, 0)),
                      pl.BlockSpec((K, N), lambda i: (0, 0)),
                      pl.BlockSpec((1, N), lambda i: (0, 0))],
            out_specs=pl.BlockSpec((TM, N), lambda i: (i, 0))),
        compiler_params=pltpu.CompilerParams(
            dimension_semantics=("parallel",)),
    )(a, b, bias)


# ----------------------------------------------------------------------------
# Conv 3x3 stride-2 pad-1 via im2col + Pallas matmul   (NHWC layout, bf16)
# ----------------------------------------------------------------------------
def conv3x3_s2_leaky(x, w2d, bias, slope=0.01):
    """x:(B,H,W,Cin) bf16, w2d:(9*Cin,Cout) bf16, bias:(1,Cout) f32."""
    B, H, W, Cin = x.shape
    Ho, Wo = H // 2, W // 2
    Cout = w2d.shape[-1]
    xp = jnp.pad(x, ((0, 0), (1, 1), (1, 1), (0, 0)))
    # TODO(synk): the im2col matrix is still materialized JAX-side; at these
    # shapes it is < 0.4 MiB of bf16 per stage (negligible HBM traffic under
    # jit).  A fully in-kernel tap accumulation would need strided sublane
    # loads and was left out for lowering robustness.
    patches = jnp.concatenate(
        [xp[:, kh:kh + 2 * Ho:2, kw:kw + 2 * Wo:2, :]
         for kh in range(3) for kw in range(3)],
        axis=-1)                                    # (B,Ho,Wo,9*Cin), tap-major
    a = patches.reshape(B * Ho * Wo, 9 * Cin)
    out = matmul_bias_act(a, w2d, bias, slope=slope, out_dtype=jnp.bfloat16)
    return out.reshape(B, Ho, Wo, Cout)


# ----------------------------------------------------------------------------
# Fused post-conv tail kernel:
#   1x1 conv -> PVEM encoders -> fused PVEM heads -> graph propagation
#   -> GAP -> output MLP, all resident in VMEM, one pallas_call.
# ----------------------------------------------------------------------------
def _tail_kernel(xc_ref, clin_ref, pvw_ref, pvb_ref, w1_ref, b1_ref,
                 hw_ref, hb_ref, wg_ref, bg_ref, ac_ref, ai_ref,
                 mavg_ref, sel_ref, mmask_ref, colmap_ref,
                 woc_ref, wog_ref, bo_ref,
                 preds_ref, feat_ref, *, slope):
    f32 = jnp.float32
    bf16 = jnp.bfloat16

    # 1x1 conv (TODO(synk): ConvLayer2D internals unknown; linear + bias).
    img = jnp.dot(xc_ref[...], w1_ref[...],
                  preferred_element_type=f32) + b1_ref[...]          # (36B,fv)

    # PVEM column encoders: leaky(x_j * w_j + b_j)  -- pure VPU, no matmul.
    # Row ordering is j*B + b (clinical column major).
    cfv = _leaky(clin_ref[...] * pvw_ref[...] + pvb_ref[...], slope)  # (9B,fv)

    # All 9 per-column prediction heads fused into one matmul (heads
    # concatenated along N; caller slices the relevant block per column).
    preds_ref[...] = (jnp.dot(cfv.astype(bf16), hw_ref[...],
                              preferred_element_type=f32)
                      + hb_ref[...]).astype(preds_ref.dtype)          # (9B,19)

    # Graph propagation  h = leaky(A_hat @ ([cfv ; img] @ Wg) + bg)
    # (TODO(synk): RMRM internals unknown; one mean-aggregation graph conv.)
    # A_hat is pre-split column-wise into clinical / image blocks so no
    # in-kernel concatenation of the node matrix is needed.
    xw_c = jnp.dot(cfv.astype(bf16), wg_ref[...], preferred_element_type=f32)
    xw_i = jnp.dot(img.astype(bf16), wg_ref[...], preferred_element_type=f32)
    h = _leaky(jnp.dot(ac_ref[...], xw_c, preferred_element_type=f32)
               + jnp.dot(ai_ref[...], xw_i, preferred_element_type=f32)
               + bg_ref[...], slope)                                  # (45B,fv)

    # AvgPool2d(6,6) over the 36 pixel nodes of each sample, as a tiny matmul.
    gap = jnp.dot(mavg_ref[...], h, preferred_element_type=f32)       # (B,fv)

    # Output MLP on [graph clinical fvs ; gap] without any reshape:
    # block-diagonal extraction via host-built selection / mask matrices.
    p = jnp.dot(h, woc_ref[...], preferred_element_type=f32) * mmask_ref[...]
    out_c = jnp.dot(jnp.dot(sel_ref[...], p, preferred_element_type=f32),
                    colmap_ref[...], preferred_element_type=f32)      # (B,no)
    out_g = jnp.dot(gap, wog_ref[...], preferred_element_type=f32)    # (B,no)
    feat_ref[...] = (out_c + out_g + bo_ref[...]).astype(feat_ref.dtype)


def fused_tail(xc, clin_col, packed, consts, slope=0.01):
    ins = [xc, clin_col, packed["pvw_t"], packed["pvb_t"], packed["w1x1"],
           packed["b1x1"], packed["head_w"], packed["head_b"], packed["wg"],
           packed["bg"], consts["A_c"], consts["A_i"], consts["Mavg"],
           consts["Sel"], consts["Mmask"], consts["Colmap"],
           packed["wo_cat"], packed["wo_g"], packed["bo"]]
    B = consts["Sel"].shape[0]
    ncB = clin_col.shape[0]
    n_pred = packed["head_w"].shape[1]
    n_out = packed["wo_g"].shape[1]

    out_shape = (jax.ShapeDtypeStruct((ncB, n_pred), jnp.float32),
                 jax.ShapeDtypeStruct((B, n_out), jnp.float32))
    out_specs = (pl.BlockSpec((ncB, n_pred), lambda i: (0, 0)),
                 pl.BlockSpec((B, n_out), lambda i: (0, 0)))

    kernel = functools.partial(_tail_kernel, slope=slope)
    return pl.pallas_call(
        kernel,
        out_shape=out_shape,
        grid_spec=pltpu.PrefetchScalarGridSpec(
            num_scalar_prefetch=0,
            grid=(1,),
            in_specs=[pl.BlockSpec(x.shape, lambda i: (0, 0)) for x in ins],
            out_specs=out_specs),
        compiler_params=pltpu.CompilerParams(
            dimension_semantics=("arbitrary",)),
    )(*ins)


# ----------------------------------------------------------------------------
# Graph structure (faithful port of Network.get_edges) + host-built constants
# ----------------------------------------------------------------------------
def get_edges(n_clinical, n_nodes):
    node_ids = np.expand_dims(np.arange(n_nodes, dtype=int), 0)
    self_edges = np.concatenate((node_ids, node_ids), 0)
    c_array_asc = np.expand_dims(np.arange(n_clinical), 0)
    all_edges = self_edges[:]
    for i in range(n_clinical, n_nodes):
        i_array = np.expand_dims(np.array([i] * n_clinical), 0)
        inter_edges_ic = np.concatenate((i_array, c_array_asc), 0)
        inter_edges_ci = np.concatenate((c_array_asc, i_array), 0)
        inter_edges_i = np.concatenate((inter_edges_ic, inter_edges_ci), 1)
        all_edges = np.concatenate((all_edges, inter_edges_i), 1)
    return all_edges  # (2, E)


def build_graph_consts(edge_index, batch_size, n_clinical, n_pixel, n_out):
    """A_hat (mean aggregation), permuted/split by node type, + helpers that
    implement the per-sample concat / GAP / flatten of the torch forward as
    plain matmuls (so the fused tail kernel needs no reshapes)."""
    n_nodes = n_clinical + n_pixel
    total = n_nodes * batch_size
    A = np.zeros((total, total), np.float32)
    for ind in range(batch_size):
        ei = edge_index + n_nodes * ind
        A[ei[1], ei[0]] = 1.0
    deg = np.maximum(A.sum(axis=1, keepdims=True), 1.0)
    A = A / deg   # TODO(synk): RMRM internals unknown; mean aggregation used.

    # New node ordering: clinical nodes first (index j*B + b), then image
    # nodes (index 9B + b*36 + p).  Permutation applied to rows AND columns.
    new_to_old = []
    for j in range(n_clinical):
        for b in range(batch_size):
            new_to_old.append(b * n_nodes + j)
    for b in range(batch_size):
        for p in range(n_pixel):
            new_to_old.append(b * n_nodes + n_clinical + p)
    new_to_old = np.asarray(new_to_old)
    Ap = A[new_to_old][:, new_to_old]
    ncB = n_clinical * batch_size
    A_c = Ap[:, :ncB]
    A_i = Ap[:, ncB:]

    # GAP selector: gap[b] = mean over sample-b image rows of h.
    Mavg = np.zeros((batch_size, total), np.float32)
    for b in range(batch_size):
        Mavg[b, ncB + b * n_pixel: ncB + (b + 1) * n_pixel] = 1.0 / n_pixel

    # Output-MLP block-diagonal extraction helpers.
    Sel = np.zeros((batch_size, total), np.float32)
    Mmask = np.zeros((total, n_clinical * n_out), np.float32)
    for j in range(n_clinical):
        for b in range(batch_size):
            Sel[b, j * batch_size + b] = 1.0
            Mmask[j * batch_size + b, j * n_out:(j + 1) * n_out] = 1.0
    Colmap = np.zeros((n_clinical * n_out, n_out), np.float32)
    for j in range(n_clinical):
        for o in range(n_out):
            Colmap[j * n_out + o, o] = 1.0

    np_consts = dict(A_c=A_c, A_i=A_i, Mavg=Mavg, Sel=Sel,
                     Mmask=Mmask, Colmap=Colmap)
    return {k: jnp.asarray(v) for k, v in np_consts.items()}


# ----------------------------------------------------------------------------
# Parameters (deterministic synthetic init) + one-time packing for the kernels
# ----------------------------------------------------------------------------
def init_params(key, *, n_markers, initial_depth, fv_dim, n_clinical,
                n_aux_classes, n_out_features):
    channels = [initial_depth, initial_depth * 2, initial_depth * 4,
                initial_depth * 8]
    counter = iter(range(1_000_000))

    def rnd(shape, scale=0.05):
        k = jax.random.fold_in(key, next(counter))
        return scale * jax.random.normal(k, shape, jnp.float32)

    params = {}
    # TODO(synk): full ResNet50 bottleneck stacks approximated by one strided
    # 3x3 conv + leaky_relu per stage (same channel plan / downsample factor).
    stage_in = [n_markers, channels[0], channels[1], channels[2]]
    params["stages"] = [
        {"w": rnd((3, 3, stage_in[s], channels[s])),
         "b": rnd((channels[s],))} for s in range(4)]
    # TODO(synk): ConvLayer2D internals unknown; plain 1x1 conv + bias used.
    params["w1x1"] = rnd((channels[3], fv_dim))
    params["b1x1"] = rnd((fv_dim,))
    # TODO(synk): PVEM approximated as one leaky_relu layer per clinical
    # column (1 -> fv_dim) plus a per-column linear prediction head.
    params["pvem_w"] = rnd((n_clinical, fv_dim))
    params["pvem_b"] = rnd((n_clinical, fv_dim))
    params["pvem_heads"] = [
        {"w": rnd((fv_dim, n_aux_classes[j])), "b": rnd((n_aux_classes[j],))}
        for j in range(n_clinical)]
    # TODO(synk): RMRM approximated by one mean-aggregation graph-conv layer.
    params["wg"] = rnd((fv_dim, fv_dim))
    params["bg"] = rnd((fv_dim,))
    # TODO(synk): OutputBlock approximated by a single linear layer.
    params["wo"] = rnd((fv_dim * (n_clinical + 1), n_out_features))
    params["bo"] = rnd((n_out_features,))
    return params


def pack_params(params, batch_size):
    """One-time (hoisted) weight packing into the layouts the kernels consume:
    bf16 matmul weights, conv weights reshaped to (9*Cin, Cout), PVEM heads /
    output-MLP blocks concatenated, PVEM column weights tiled to row j*B+b."""
    packed = {}
    packed["stages"] = [
        {"w2d": st["w"].reshape(-1, st["w"].shape[-1]).astype(jnp.bfloat16),
         "b": st["b"].reshape(1, -1).astype(jnp.float32)}
        for st in params["stages"]]
    packed["w1x1"] = params["w1x1"].astype(jnp.bfloat16)
    packed["b1x1"] = params["b1x1"].reshape(1, -1).astype(jnp.float32)
    packed["pvw_t"] = jnp.repeat(params["pvem_w"], batch_size, axis=0)
    packed["pvb_t"] = jnp.repeat(params["pvem_b"], batch_size, axis=0)
    packed["head_w"] = jnp.concatenate(
        [h["w"] for h in params["pvem_heads"]], axis=1).astype(jnp.bfloat16)
    packed["head_b"] = jnp.concatenate(
        [h["b"] for h in params["pvem_heads"]], axis=0).reshape(1, -1)
    packed["wg"] = params["wg"].astype(jnp.bfloat16)
    packed["bg"] = params["bg"].reshape(1, -1).astype(jnp.float32)

    fv = params["wg"].shape[0]
    n_clin = params["pvem_w"].shape[0]
    n_out = params["wo"].shape[1]
    wo_c = params["wo"][:fv * n_clin].reshape(n_clin, fv, n_out)
    packed["wo_cat"] = jnp.concatenate(
        [wo_c[j] for j in range(n_clin)], axis=1)        # (fv, n_clin*n_out)
    packed["wo_g"] = params["wo"][fv * n_clin:]          # (fv, n_out)
    packed["bo"] = params["bo"].reshape(1, -1).astype(jnp.float32)
    return packed


# ----------------------------------------------------------------------------
# Network forward (jitted; 4 conv pallas_calls + 1 fused-tail pallas_call)
# ----------------------------------------------------------------------------
def make_forward(consts, n_clinical, n_pixel, n_aux_classes):
    offs = [int(o) for o in np.cumsum([0] + list(n_aux_classes))]

    @jax.jit
    def forward(packed, in_img_nchw, in_clinical):
        B = in_img_nchw.shape[0]
        # layout: NCHW input -> NHWC for the conv path, bf16 for the MXU.
        x = jnp.transpose(in_img_nchw, (0, 2, 3, 1)).astype(jnp.bfloat16)

        # 4 resnet stages: 96 -> 48 -> 24 -> 12 -> 6 spatial.
        for st in packed["stages"]:
            x = conv3x3_s2_leaky(x, st["w2d"], st["b"], slope=0.01)

        # Image node features, row index b*36 + (h*6+w)  (matches the torch
        # reshape(B,fv,36).transpose(1,2) ordering after the 1x1 conv).
        xc = x.reshape(B * n_pixel, x.shape[-1])                 # (36B, C3)
        # Clinical scalars arranged row j*B + b.
        clin_col = jnp.transpose(in_clinical).reshape(-1, 1).astype(jnp.float32)

        preds_all, feature_preds = fused_tail(xc, clin_col, packed, consts)

        clinical_preds = [
            preds_all[j * B:(j + 1) * B, offs[j]:offs[j + 1]]
            for j in range(n_clinical)]
        return feature_preds, clinical_preds

    return forward


# ----------------------------------------------------------------------------
# Demo
# ----------------------------------------------------------------------------
if __name__ == "__main__":
    batch_size = 2
    n_markers = 4
    initial_depth = 8
    fv_dim = 128
    n_clinical = 9
    n_pixel = 36
    n_nodes = n_clinical + n_pixel
    n_cont_cols = 5
    n_classes_cat = [3, 4, 2, 5]        # 5 + 4 = 9 clinical columns total
    n_aux_classes = [1] * n_cont_cols + n_classes_cat
    n_out_features = 4
    spatial = 96                        # 96 -> 6x6 after 4 stride-2 stages

    key = jax.random.PRNGKey(0)
    kp, ki, kc = jax.random.split(key, 3)

    params = init_params(
        kp, n_markers=n_markers, initial_depth=initial_depth, fv_dim=fv_dim,
        n_clinical=n_clinical, n_aux_classes=n_aux_classes,
        n_out_features=n_out_features)
    packed = pack_params(params, batch_size)

    edge_index = get_edges(n_clinical, n_nodes)
    consts = build_graph_consts(edge_index, batch_size, n_clinical, n_pixel,
                                n_out_features)

    in_img = jax.random.normal(ki, (batch_size, n_markers, spatial, spatial),
                               jnp.float32)            # NCHW, like PyTorch
    in_clinical = jax.random.normal(kc, (batch_size, n_clinical), jnp.float32)

    forward = make_forward(consts, n_clinical, n_pixel, n_aux_classes)
    feature_preds, clinical_preds = forward(packed, in_img, in_clinical)

    jax.block_until_ready(feature_preds)
    for p in clinical_preds:
        jax.block_until_ready(p)

    assert feature_preds.shape == (batch_size, n_out_features)
    assert len(clinical_preds) == n_clinical
    for j, p in enumerate(clinical_preds):
        assert p.shape == (batch_size, n_aux_classes[j])

    print("KERNEL_OK")
</pallas_src>

<mosaic_0001>
module attributes {stable_mosaic.version = 11 : i64} {
  func.func @_mm_kernel(%arg0: i32, %arg1: memref<512x36xbf16, #tpu.memory_space<vmem>>, %arg2: memref<36x8xbf16, #tpu.memory_space<vmem>>, %arg3: memref<1x8xf32, #tpu.memory_space<vmem>>, %arg4: memref<512x8xbf16, #tpu.memory_space<vmem>>) attributes {dimension_semantics = [#tpu.dimension_semantics<parallel>], iteration_bounds = array<i64: 9>, scalar_prefetch = 0 : i64, scratch_operands = 0 : i64, tpu.core_type = #tpu.core_type<tc>, window_params = [{transform_indices = @transform_0, window_bounds = array<i64: 512, 36>}, {pipeline_mode = #tpu.pipeline_mode<synchronous>, transform_indices = @transform_1, window_bounds = array<i64: 36, 8>}, {pipeline_mode = #tpu.pipeline_mode<synchronous>, transform_indices = @transform_2, window_bounds = array<i64: 1, 8>}, {transform_indices = @transform_3, window_bounds = array<i64: 512, 8>}]} {
    %c0 = arith.constant 0 : index
    %c0_0 = arith.constant 0 : index
    %0 = vector.load %arg1[%c0, %c0_0] : memref<512x36xbf16, #tpu.memory_space<vmem>>, vector<512x36xbf16>
    %c0_1 = arith.constant 0 : index
    %c0_2 = arith.constant 0 : index
    %1 = vector.load %arg2[%c0_1, %c0_2] : memref<36x8xbf16, #tpu.memory_space<vmem>>, vector<36x8xbf16>
    %cst = arith.constant dense<0.000000e+00> : vector<512x8xf32>
    %2 = tpu.matmul %0, %1, %cst {dimension_numbers = #tpu.dot_dimension_numbers<[1], [0], [0], [1], [0, 0, 1, 1], [], []>} : vector<512x36xbf16>, vector<36x8xbf16>, vector<512x8xf32> -> vector<512x8xf32>
    %c0_3 = arith.constant 0 : index
    %c0_4 = arith.constant 0 : index
    %3 = vector.load %arg3[%c0_3, %c0_4] : memref<1x8xf32, #tpu.memory_space<vmem>>, vector<1x8xf32>
    %4 = vector.broadcast %3 : vector<1x8xf32> to vector<512x8xf32>
    %5 = arith.addf %2, %4 : vector<512x8xf32>
    %cst_5 = arith.constant 0.000000e+00 : f32
    %6 = vector.broadcast %cst_5 : f32 to vector<512x8xf32>
    %7 = arith.cmpf oge, %5, %6 : vector<512x8xf32>
    %cst_6 = arith.constant 0.00999999977 : f32
    %8 = vector.broadcast %cst_6 : f32 to vector<512x8xf32>
    %9 = arith.mulf %8, %5 : vector<512x8xf32>
    %10 = arith.select %7, %5, %9 : vector<512x8xi1>, vector<512x8xf32>
    %11 = arith.truncf %10 : vector<512x8xf32> to vector<512x8xbf16>
    %c0_7 = arith.constant 0 : index
    %c0_8 = arith.constant 0 : index
    %12 = vector.load %arg4[%c0_7, %c0_8] : memref<512x8xbf16, #tpu.memory_space<vmem>>, vector<512x8xbf16>
    tpu.vector_store %arg4[%c0_7, %c0_8], %11 {strides = array<i32>} : memref<512x8xbf16, #tpu.memory_space<vmem>>, vector<512x8xbf16>,
    return
  }
  func.func @transform_0(%arg0: i32) -> (i32, i32) {
    %c0_i32 = arith.constant 0 : i32
    %c0_i32_0 = arith.constant 0 : i32
    return %arg0, %c0_i32 : i32, i32
  }
  func.func @transform_1(%arg0: i32) -> (i32, i32) {
    %c0_i32 = arith.constant 0 : i32
    %c0_i32_0 = arith.constant 0 : i32
    %c0_i32_1 = arith.constant 0 : i32
    return %c0_i32, %c0_i32_0 : i32, i32
  }
  func.func @transform_2(%arg0: i32) -> (i32, i32) {
    %c0_i32 = arith.constant 0 : i32
    %c0_i32_0 = arith.constant 0 : i32
    %c0_i32_1 = arith.constant 0 : i32
    return %c0_i32, %c0_i32_0 : i32, i32
  }
  func.func @transform_3(%arg0: i32) -> (i32, i32) {
    %c0_i32 = arith.constant 0 : i32
    %c0_i32_0 = arith.constant 0 : i32
    return %arg0, %c0_i32 : i32, i32
  }
}

module attributes {stable_mosaic.version = 11 : i64} {
  func.func @_mm_kernel(%arg0: i32, %arg1: memref<384x72xbf16, #tpu.memory_space<vmem>>, %arg2: memref<72x16xbf16, #tpu.memory_space<vmem>>, %arg3: memref<1x16xf32, #tpu.memory_space<vmem>>, %arg4: memref<384x16xbf16, #tpu.memory_space<vmem>>) attributes {dimension_semantics = [#tpu.dimension_semantics<parallel>], iteration_bounds = array<i64: 3>, scalar_prefetch = 0 : i64, scratch_operands = 0 : i64, tpu.core_type = #tpu.core_type<tc>, window_params = [{transform_indices = @transform_0, window_bounds = array<i64: 384, 72>}, {pipeline_mode = #tpu.pipeline_mode<synchronous>, transform_indices = @transform_1, window_bounds = array<i64: 72, 16>}, {pipeline_mode = #tpu.pipeline_mode<synchronous>, transform_indices = @transform_2, window_bounds = array<i64: 1, 16>}, {transform_indices = @transform_3, window_bounds = array<i64: 384, 16>}]} {
    %c0 = arith.constant 0 : index
    %c0_0 = arith.constant 0 : index
    %0 = vector.load %arg1[%c0, %c0_0] : memref<384x72xbf16, #tpu.memory_space<vmem>>, vector<384x72xbf16>
    %c0_1 = arith.constant 0 : index
    %c0_2 = arith.constant 0 : index
    %1 = vector.load %arg2[%c0_1, %c0_2] : memref<72x16xbf16, #tpu.memory_space<vmem>>, vector<72x16xbf16>
    %cst = arith.constant dense<0.000000e+00> : vector<384x16xf32>
    %2 = tpu.matmul %0, %1, %cst {dimension_numbers = #tpu.dot_dimension_numbers<[1], [0], [0], [1], [0, 0, 1, 1], [], []>} : vector<384x72xbf16>, vector<72x16xbf16>, vector<384x16xf32> -> vector<384x16xf32>
    %c0_3 = arith.constant 0 : index
    %c0_4 = arith.constant 0 : index
    %3 = vector.load %arg3[%c0_3, %c0_4] : memref<1x16xf32, #tpu.memory_space<vmem>>, vector<1x16xf32>
    %4 = vector.broadcast %3 : vector<1x16xf32> to vector<384x16xf32>
    %5 = arith.addf %2, %4 : vector<384x16xf32>
    %cst_5 = arith.constant 0.000000e+00 : f32
    %6 = vector.broadcast %cst_5 : f32 to vector<384x16xf32>
    %7 = arith.cmpf oge, %5, %6 : vector<384x16xf32>
    %cst_6 = arith.constant 0.00999999977 : f32
    %8 = vector.broadcast %cst_6 : f32 to vector<384x16xf32>
    %9 = arith.mulf %8, %5 : vector<384x16xf32>
    %10 = arith.select %7, %5, %9 : vector<384x16xi1>, vector<384x16xf32>
    %11 = arith.truncf %10 : vector<384x16xf32> to vector<384x16xbf16>
    %c0_7 = arith.constant 0 : index
    %c0_8 = arith.constant 0 : index
    %12 = vector.load %arg4[%c0_7, %c0_8] : memref<384x16xbf16, #tpu.memory_space<vmem>>, vector<384x16xbf16>
    tpu.vector_store %arg4[%c0_7, %c0_8], %11 {strides = array<i32>} : memref<384x16xbf16, #tpu.memory_space<vmem>>, vector<384x16xbf16>,
    return
  }
  func.func @transform_0(%arg0: i32) -> (i32, i32) {
    %c0_i32 = arith.constant 0 : i32
    %c0_i32_0 = arith.constant 0 : i32
    return %arg0, %c0_i32 : i32, i32
  }
  func.func @transform_1(%arg0: i32) -> (i32, i32) {
    %c0_i32 = arith.constant 0 : i32
    %c0_i32_0 = arith.constant 0 : i32
    %c0_i32_1 = arith.constant 0 : i32
    return %c0_i32, %c0_i32_0 : i32, i32
  }
  func.func @transform_2(%arg0: i32) -> (i32, i32) {
    %c0_i32 = arith.constant 0 : i32
    %c0_i32_0 = arith.constant 0 : i32
    %c0_i32_1 = arith.constant 0 : i32
    return %c0_i32, %c0_i32_0 : i32, i32
  }
  func.func @transform_3(%arg0: i32) -> (i32, i32) {
    %c0_i32 = arith.constant 0 : i32
    %c0_i32_0 = arith.constant 0 : i32
    return %arg0, %c0_i32 : i32, i32
  }
}

module attributes {stable_mosaic.version = 11 : i64} {
  func.func @_mm_kernel(%arg0: i32, %arg1: memref<144x144xbf16, #tpu.memory_space<vmem>>, %arg2: memref<144x32xbf16, #tpu.memory_space<vmem>>, %arg3: memref<1x32xf32, #tpu.memory_space<vmem>>, %arg4: memref<144x32xbf16, #tpu.memory_space<vmem>>) attributes {dimension_semantics = [#tpu.dimension_semantics<parallel>], iteration_bounds = array<i64: 2>, scalar_prefetch = 0 : i64, scratch_operands = 0 : i64, tpu.core_type = #tpu.core_type<tc>, window_params = [{transform_indices = @transform_0, window_bounds = array<i64: 144, 144>}, {pipeline_mode = #tpu.pipeline_mode<synchronous>, transform_indices = @transform_1, window_bounds = array<i64: 144, 32>}, {pipeline_mode = #tpu.pipeline_mode<synchronous>, transform_indices = @transform_2, window_bounds = array<i64: 1, 32>}, {transform_indices = @transform_3, window_bounds = array<i64: 144, 32>}]} {
    %c0 = arith.constant 0 : index
    %c0_0 = arith.constant 0 : index
    %0 = vector.load %arg1[%c0, %c0_0] : memref<144x144xbf16, #tpu.memory_space<vmem>>, vector<144x144xbf16>
    %c0_1 = arith.constant 0 : index
    %c0_2 = arith.constant 0 : index
    %1 = vector.load %arg2[%c0_1, %c0_2] : memref<144x32xbf16, #tpu.memory_space<vmem>>, vector<144x32xbf16>
    %cst = arith.constant dense<0.000000e+00> : vector<144x32xf32>
    %2 = tpu.matmul %0, %1, %cst {dimension_numbers = #tpu.dot_dimension_numbers<[1], [0], [0], [1], [0, 0, 1, 1], [], []>} : vector<144x144xbf16>, vector<144x32xbf16>, vector<144x32xf32> -> vector<144x32xf32>
    %c0_3 = arith.constant 0 : index
    %c0_4 = arith.constant 0 : index
    %3 = vector.load %arg3[%c0_3, %c0_4] : memref<1x32xf32, #tpu.memory_space<vmem>>, vector<1x32xf32>
    %4 = vector.broadcast %3 : vector<1x32xf32> to vector<144x32xf32>
    %5 = arith.addf %2, %4 : vector<144x32xf32>
    %cst_5 = arith.constant 0.000000e+00 : f32
    %6 = vector.broadcast %cst_5 : f32 to vector<144x32xf32>
    %7 = arith.cmpf oge, %5, %6 : vector<144x32xf32>
    %cst_6 = arith.constant 0.00999999977 : f32
    %8 = vector.broadcast %cst_6 : f32 to vector<144x32xf32>
    %9 = arith.mulf %8, %5 : vector<144x32xf32>
    %10 = arith.select %7, %5, %9 : vector<144x32xi1>, vector<144x32xf32>
    %11 = arith.truncf %10 : vector<144x32xf32> to vector<144x32xbf16>
    %c0_7 = arith.constant 0 : index
    %c0_8 = arith.constant 0 : index
    %12 = vector.load %arg4[%c0_7, %c0_8] : memref<144x32xbf16, #tpu.memory_space<vmem>>, vector<144x32xbf16>
    tpu.vector_store %arg4[%c0_7, %c0_8], %11 {strides = array<i32>} : memref<144x32xbf16, #tpu.memory_space<vmem>>, vector<144x32xbf16>,
    return
  }
  func.func @transform_0(%arg0: i32) -> (i32, i32) {
    %c0_i32 = arith.constant 0 : i32
    %c0_i32_0 = arith.constant 0 : i32
    return %arg0, %c0_i32 : i32, i32
  }
  func.func @transform_1(%arg0: i32) -> (i32, i32) {
    %c0_i32 = arith.constant 0 : i32
    %c0_i32_0 = arith.constant 0 : i32
    %c0_i32_1 = arith.constant 0 : i32
    return %c0_i32, %c0_i32_0 : i32, i32
  }
  func.func @transform_2(%arg0: i32) -> (i32, i32) {
    %c0_i32 = arith.constant 0 : i32
    %c0_i32_0 = arith.constant 0 : i32
    %c0_i32_1 = arith.constant 0 : i32
    return %c0_i32, %c0_i32_0 : i32, i32
  }
  func.func @transform_3(%arg0: i32) -> (i32, i32) {
    %c0_i32 = arith.constant 0 : i32
    %c0_i32_0 = arith.constant 0 : i32
    return %arg0, %c0_i32 : i32, i32
  }
}

module attributes {stable_mosaic.version = 11 : i64} {
  func.func @_mm_kernel(%arg0: i32, %arg1: memref<72x288xbf16, #tpu.memory_space<vmem>>, %arg2: memref<288x64xbf16, #tpu.memory_space<vmem>>, %arg3: memref<1x64xf32, #tpu.memory_space<vmem>>, %arg4: memref<72x64xbf16, #tpu.memory_space<vmem>>) attributes {dimension_semantics = [#tpu.dimension_semantics<parallel>], iteration_bounds = array<i64: 1>, scalar_prefetch = 0 : i64, scratch_operands = 0 : i64, tpu.core_type = #tpu.core_type<tc>, window_params = [{transform_indices = @transform_0, window_bounds = array<i64: 72, 288>}, {pipeline_mode = #tpu.pipeline_mode<synchronous>, transform_indices = @transform_1, window_bounds = array<i64: 288, 64>}, {pipeline_mode = #tpu.pipeline_mode<synchronous>, transform_indices = @transform_2, window_bounds = array<i64: 1, 64>}, {transform_indices = @transform_3, window_bounds = array<i64: 72, 64>}]} {
    %c0 = arith.constant 0 : index
    %c0_0 = arith.constant 0 : index
    %0 = vector.load %arg1[%c0, %c0_0] : memref<72x288xbf16, #tpu.memory_space<vmem>>, vector<72x288xbf16>
    %c0_1 = arith.constant 0 : index
    %c0_2 = arith.constant 0 : index
    %1 = vector.load %arg2[%c0_1, %c0_2] : memref<288x64xbf16, #tpu.memory_space<vmem>>, vector<288x64xbf16>
    %cst = arith.constant dense<0.000000e+00> : vector<72x64xf32>
    %2 = tpu.matmul %0, %1, %cst {dimension_numbers = #tpu.dot_dimension_numbers<[1], [0], [0], [1], [0, 0, 1, 1], [], []>} : vector<72x288xbf16>, vector<288x64xbf16>, vector<72x64xf32> -> vector<72x64xf32>
    %c0_3 = arith.constant 0 : index
    %c0_4 = arith.constant 0 : index
    %3 = vector.load %arg3[%c0_3, %c0_4] : memref<1x64xf32, #tpu.memory_space<vmem>>, vector<1x64xf32>
    %4 = vector.broadcast %3 : vector<1x64xf32> to vector<72x64xf32>
    %5 = arith.addf %2, %4 : vector<72x64xf32>
    %cst_5 = arith.constant 0.000000e+00 : f32
    %6 = vector.broadcast %cst_5 : f32 to vector<72x64xf32>
    %7 = arith.cmpf oge, %5, %6 : vector<72x64xf32>
    %cst_6 = arith.constant 0.00999999977 : f32
    %8 = vector.broadcast %cst_6 : f32 to vector<72x64xf32>
    %9 = arith.mulf %8, %5 : vector<72x64xf32>
    %10 = arith.select %7, %5, %9 : vector<72x64xi1>, vector<72x64xf32>
    %11 = arith.truncf %10 : vector<72x64xf32> to vector<72x64xbf16>
    %c0_7 = arith.constant 0 : index
    %c0_8 = arith.constant 0 : index
    %12 = vector.load %arg4[%c0_7, %c0_8] : memref<72x64xbf16, #tpu.memory_space<vmem>>, vector<72x64xbf16>
    tpu.vector_store %arg4[%c0_7, %c0_8], %11 {strides = array<i32>} : memref<72x64xbf16, #tpu.memory_space<vmem>>, vector<72x64xbf16>,
    return
  }
  func.func @transform_0(%arg0: i32) -> (i32, i32) {
    %c0_i32 = arith.constant 0 : i32
    %c0_i32_0 = arith.constant 0 : i32
    return %arg0, %c0_i32 : i32, i32
  }
  func.func @transform_1(%arg0: i32) -> (i32, i32) {
    %c0_i32 = arith.constant 0 : i32
    %c0_i32_0 = arith.constant 0 : i32
    %c0_i32_1 = arith.constant 0 : i32
    return %c0_i32, %c0_i32_0 : i32, i32
  }
  func.func @transform_2(%arg0: i32) -> (i32, i32) {
    %c0_i32 = arith.constant 0 : i32
    %c0_i32_0 = arith.constant 0 : i32
    %c0_i32_1 = arith.constant 0 : i32
    return %c0_i32, %c0_i32_0 : i32, i32
  }
  func.func @transform_3(%arg0: i32) -> (i32, i32) {
    %c0_i32 = arith.constant 0 : i32
    %c0_i32_0 = arith.constant 0 : i32
    return %arg0, %c0_i32 : i32, i32
  }
}

module attributes {stable_mosaic.version = 11 : i64} {
  func.func @_tail_kernel(%arg0: i32, %arg1: memref<72x64xbf16, #tpu.memory_space<vmem>>, %arg2: memref<18x1xf32, #tpu.memory_space<vmem>>, %arg3: memref<18x128xf32, #tpu.memory_space<vmem>>, %arg4: memref<18x128xf32, #tpu.memory_space<vmem>>, %arg5: memref<64x128xbf16, #tpu.memory_space<vmem>>, %arg6: memref<1x128xf32, #tpu.memory_space<vmem>>, %arg7: memref<128x19xbf16, #tpu.memory_space<vmem>>, %arg8: memref<1x19xf32, #tpu.memory_space<vmem>>, %arg9: memref<128x128xbf16, #tpu.memory_space<vmem>>, %arg10: memref<1x128xf32, #tpu.memory_space<vmem>>, %arg11: memref<90x18xf32, #tpu.memory_space<vmem>>, %arg12: memref<90x72xf32, #tpu.memory_space<vmem>>, %arg13: memref<2x90xf32, #tpu.memory_space<vmem>>, %arg14: memref<2x90xf32, #tpu.memory_space<vmem>>, %arg15: memref<90x36xf32, #tpu.memory_space<vmem>>, %arg16: memref<36x4xf32, #tpu.memory_space<vmem>>, %arg17: memref<128x36xf32, #tpu.memory_space<vmem>>, %arg18: memref<128x4xf32, #tpu.memory_space<vmem>>, %arg19: memref<1x4xf32, #tpu.memory_space<vmem>>, %arg20: memref<18x19xf32, #tpu.memory_space<vmem>>, %arg21: memref<2x4xf32, #tpu.memory_space<vmem>>) attributes {dimension_semantics = [#tpu.dimension_semantics<arbitrary>], iteration_bounds = array<i64: 1>, scalar_prefetch = 0 : i64, scratch_operands = 0 : i64, tpu.core_type = #tpu.core_type<tc>, window_params = [{pipeline_mode = #tpu.pipeline_mode<synchronous>, transform_indices = @transform_0, window_bounds = array<i64: 72, 64>}, {pipeline_mode = #tpu.pipeline_mode<synchronous>, transform_indices = @transform_1, window_bounds = array<i64: 18, 1>}, {pipeline_mode = #tpu.pipeline_mode<synchronous>, transform_indices = @transform_2, window_bounds = array<i64: 18, 128>}, {pipeline_mode = #tpu.pipeline_mode<synchronous>, transform_indices = @transform_3, window_bounds = array<i64: 18, 128>}, {pipeline_mode = #tpu.pipeline_mode<synchronous>, transform_indices = @transform_4, window_bounds = array<i64: 64, 128>}, {pipeline_mode = #tpu.pipeline_mode<synchronous>, transform_indices = @transform_5, window_bounds = array<i64: 1, 128>}, {pipeline_mode = #tpu.pipeline_mode<synchronous>, transform_indices = @transform_6, window_bounds = array<i64: 128, 19>}, {pipeline_mode = #tpu.pipeline_mode<synchronous>, transform_indices = @transform_7, window_bounds = array<i64: 1, 19>}, {pipeline_mode = #tpu.pipeline_mode<synchronous>, transform_indices = @transform_8, window_bounds = array<i64: 128, 128>}, {pipeline_mode = #tpu.pipeline_mode<synchronous>, transform_indices = @transform_9, window_bounds = array<i64: 1, 128>}, {pipeline_mode = #tpu.pipeline_mode<synchronous>, transform_indices = @transform_10, window_bounds = array<i64: 90, 18>}, {pipeline_mode = #tpu.pipeline_mode<synchronous>, transform_indices = @transform_11, window_bounds = array<i64: 90, 72>}, {pipeline_mode = #tpu.pipeline_mode<synchronous>, transform_indices = @transform_12, window_bounds = array<i64: 2, 90>}, {pipeline_mode = #tpu.pipeline_mode<synchronous>, transform_indices = @transform_13, window_bounds = array<i64: 2, 90>}, {pipeline_mode = #tpu.pipeline_mode<synchronous>, transform_indices = @transform_14, window_bounds = array<i64: 90, 36>}, {pipeline_mode = #tpu.pipeline_mode<synchronous>, transform_indices = @transform_15, window_bounds = array<i64: 36, 4>}, {pipeline_mode = #tpu.pipeline_mode<synchronous>, transform_indices = @transform_16, window_bounds = array<i64: 128, 36>}, {pipeline_mode = #tpu.pipeline_mode<synchronous>, transform_indices = @transform_17, window_bounds = array<i64: 128, 4>}, {pipeline_mode = #tpu.pipeline_mode<synchronous>, transform_indices = @transform_18, window_bounds = array<i64: 1, 4>}, {pipeline_mode = #tpu.pipeline_mode<synchronous>, transform_indices = @transform_19, window_bounds = array<i64: 18, 19>}, {pipeline_mode = #tpu.pipeline_mode<synchronous>, transform_indices = @transform_20, window_bounds = array<i64: 2, 4>}]} {
    %c0 = arith.constant 0 : index
    %c0_0 = arith.constant 0 : index
    %0 = vector.load %arg1[%c0, %c0_0] : memref<72x64xbf16, #tpu.memory_space<vmem>>, vector<72x64xbf16>
    %c0_1 = arith.constant 0 : index
    %c0_2 = arith.constant 0 : index
    %1 = vector.load %arg5[%c0_1, %c0_2] : memref<64x128xbf16, #tpu.memory_space<vmem>>, vector<64x128xbf16>
    %cst = arith.constant dense<0.000000e+00> : vector<72x128xf32>
    %2 = tpu.matmul %0, %1, %cst {dimension_numbers = #tpu.dot_dimension_numbers<[1], [0], [0], [1], [0, 0, 1, 1], [], []>} : vector<72x64xbf16>, vector<64x128xbf16>, vector<72x128xf32> -> vector<72x128xf32>
    %c0_3 = arith.constant 0 : index
    %c0_4 = arith.constant 0 : index
    %3 = vector.load %arg6[%c0_3, %c0_4] : memref<1x128xf32, #tpu.memory_space<vmem>>, vector<1x128xf32>
    %4 = vector.broadcast %3 : vector<1x128xf32> to vector<72x128xf32>
    %5 = arith.addf %2, %4 : vector<72x128xf32>
    %c0_5 = arith.constant 0 : index
    %c0_6 = arith.constant 0 : index
    %6 = vector.load %arg2[%c0_5, %c0_6] : memref<18x1xf32, #tpu.memory_space<vmem>>, vector<18x1xf32>
    %c0_7 = arith.constant 0 : index
    %c0_8 = arith.constant 0 : index
    %7 = vector.load %arg3[%c0_7, %c0_8] : memref<18x128xf32, #tpu.memory_space<vmem>>, vector<18x128xf32>
    %8 = vector.broadcast %6 : vector<18x1xf32> to vector<18x128xf32>
    %9 = arith.mulf %8, %7 : vector<18x128xf32>
    %c0_9 = arith.constant 0 : index
    %c0_10 = arith.constant 0 : index
    %10 = vector.load %arg4[%c0_9, %c0_10] : memref<18x128xf32, #tpu.memory_space<vmem>>, vector<18x128xf32>
    %11 = arith.addf %9, %10 : vector<18x128xf32>
    %cst_11 = arith.constant 0.000000e+00 : f32
    %12 = vector.broadcast %cst_11 : f32 to vector<18x128xf32>
    %13 = arith.cmpf oge, %11, %12 : vector<18x128xf32>
    %cst_12 = arith.constant 0.00999999977 : f32
    %14 = vector.broadcast %cst_12 : f32 to vector<18x128xf32>
    %15 = arith.mulf %14, %11 : vector<18x128xf32>
    %16 = arith.select %13, %11, %15 : vector<18x128xi1>, vector<18x128xf32>
    %17 = arith.truncf %16 : vector<18x128xf32> to vector<18x128xbf16>
    %c0_13 = arith.constant 0 : index
    %c0_14 = arith.constant 0 : index
    %18 = vector.load %arg7[%c0_13, %c0_14] : memref<128x19xbf16, #tpu.memory_space<vmem>>, vector<128x19xbf16>
    %cst_15 = arith.constant dense<0.000000e+00> : vector<18x19xf32>
    %19 = tpu.matmul %17, %18, %cst_15 {dimension_numbers = #tpu.dot_dimension_numbers<[1], [0], [0], [1], [0, 0, 1, 1], [], []>} : vector<18x128xbf16>, vector<128x19xbf16>, vector<18x19xf32> -> vector<18x19xf32>
    %c0_16 = arith.constant 0 : index
    %c0_17 = arith.constant 0 : index
    %20 = vector.load %arg8[%c0_16, %c0_17] : memref<1x19xf32, #tpu.memory_space<vmem>>, vector<1x19xf32>
    %21 = vector.broadcast %20 : vector<1x19xf32> to vector<18x19xf32>
    %22 = arith.addf %19, %21 : vector<18x19xf32>
    %c0_18 = arith.constant 0 : index
    %c0_19 = arith.constant 0 : index
    %23 = vector.load %arg20[%c0_18, %c0_19] : memref<18x19xf32, #tpu.memory_space<vmem>>, vector<18x19xf32>
    tpu.vector_store %arg20[%c0_18, %c0_19], %22 {strides = array<i32>} : memref<18x19xf32, #tpu.memory_space<vmem>>, vector<18x19xf32>,
    %24 = arith.truncf %16 : vector<18x128xf32> to vector<18x128xbf16>
    %c0_20 = arith.constant 0 : index
    %c0_21 = arith.constant 0 : index
    %25 = vector.load %arg9[%c0_20, %c0_21] : memref<128x128xbf16, #tpu.memory_space<vmem>>, vector<128x128xbf16>
    %cst_22 = arith.constant dense<0.000000e+00> : vector<18x128xf32>
    %26 = tpu.matmul %24, %25, %cst_22 {dimension_numbers = #tpu.dot_dimension_numbers<[1], [0], [0], [1], [0, 0, 1, 1], [], []>} : vector<18x128xbf16>, vector<128x128xbf16>, vector<18x128xf32> -> vector<18x128xf32>
    %27 = arith.truncf %5 : vector<72x128xf32> to vector<72x128xbf16>
    %c0_23 = arith.constant 0 : index
    %c0_24 = arith.constant 0 : index
    %28 = vector.load %arg9[%c0_23, %c0_24] : memref<128x128xbf16, #tpu.memory_space<vmem>>, vector<128x128xbf16>
    %cst_25 = arith.constant dense<0.000000e+00> : vector<72x128xf32>
    %29 = tpu.matmul %27, %28, %cst_25 {dimension_numbers = #tpu.dot_dimension_numbers<[1], [0], [0], [1], [0, 0, 1, 1], [], []>} : vector<72x128xbf16>, vector<128x128xbf16>, vector<72x128xf32> -> vector<72x128xf32>
    %c0_26 = arith.constant 0 : index
    %c0_27 = arith.constant 0 : index
    %30 = vector.load %arg11[%c0_26, %c0_27] : memref<90x18xf32, #tpu.memory_space<vmem>>, vector<90x18xf32>
    %cst_28 = arith.constant dense<0.000000e+00> : vector<90x128xf32>
    %31 = tpu.matmul %30, %26, %cst_28 {dimension_numbers = #tpu.dot_dimension_numbers<[1], [0], [0], [1], [0, 0, 1, 1], [], []>} : vector<90x18xf32>, vector<18x128xf32>, vector<90x128xf32> -> vector<90x128xf32>
    %c0_29 = arith.constant 0 : index
    %c0_30 = arith.constant 0 : index
    %32 = vector.load %arg12[%c0_29, %c0_30] : memref<90x72xf32, #tpu.memory_space<vmem>>, vector<90x72xf32>
    %cst_31 = arith.constant dense<0.000000e+00> : vector<90x128xf32>
    %33 = tpu.matmul %32, %29, %cst_31 {dimension_numbers = #tpu.dot_dimension_numbers<[1], [0], [0], [1], [0, 0, 1, 1], [], []>} : vector<90x72xf32>, vector<72x128xf32>, vector<90x128xf32> -> vector<90x128xf32>
    %34 = arith.addf %31, %33 : vector<90x128xf32>
    %c0_32 = arith.constant 0 : index
    %c0_33 = arith.constant 0 : index
    %35 = vector.load %arg10[%c0_32, %c0_33] : memref<1x128xf32, #tpu.memory_space<vmem>>, vector<1x128xf32>
    %36 = vector.broadcast %35 : vector<1x128xf32> to vector<90x128xf32>
    %37 = arith.addf %34, %36 : vector<90x128xf32>
    %cst_34 = arith.constant 0.000000e+00 : f32
    %38 = vector.broadcast %cst_34 : f32 to vector<90x128xf32>
    %39 = arith.cmpf oge, %37, %38 : vector<90x128xf32>
    %cst_35 = arith.constant 0.00999999977 : f32
    %40 = vector.broadcast %cst_35 : f32 to vector<90x128xf32>
    %41 = arith.mulf %40, %37 : vector<90x128xf32>
    %42 = arith.select %39, %37, %41 : vector<90x128xi1>, vector<90x128xf32>
    %c0_36 = arith.constant 0 : index
    %c0_37 = arith.constant 0 : index
    %43 = vector.load %arg13[%c0_36, %c0_37] : memref<2x90xf32, #tpu.memory_space<vmem>>, vector<2x90xf32>
    %cst_38 = arith.constant dense<0.000000e+00> : vector<2x128xf32>
    %44 = tpu.matmul %43, %42, %cst_38 {dimension_numbers = #tpu.dot_dimension_numbers<[1], [0], [0], [1], [0, 0, 1, 1], [], []>} : vector<2x90xf32>, vector<90x128xf32>, vector<2x128xf32> -> vector<2x128xf32>
    %c0_39 = arith.constant 0 : index
    %c0_40 = arith.constant 0 : index
    %45 = vector.load %arg17[%c0_39, %c0_40] : memref<128x36xf32, #tpu.memory_space<vmem>>, vector<128x36xf32>
    %cst_41 = arith.constant dense<0.000000e+00> : vector<90x36xf32>
    %46 = tpu.matmul %42, %45, %cst_41 {dimension_numbers = #tpu.dot_dimension_numbers<[1], [0], [0], [1], [0, 0, 1, 1], [], []>} : vector<90x128xf32>, vector<128x36xf32>, vector<90x36xf32> -> vector<90x36xf32>
    %c0_42 = arith.constant 0 : index
    %c0_43 = arith.constant 0 : index
    %47 = vector.load %arg15[%c0_42, %c0_43] : memref<90x36xf32, #tpu.memory_space<vmem>>, vector<90x36xf32>
    %48 = arith.mulf %46, %47 : vector<90x36xf32>
    %c0_44 = arith.constant 0 : index
    %c0_45 = arith.constant 0 : index
    %49 = vector.load %arg14[%c0_44, %c0_45] : memref<2x90xf32, #tpu.memory_space<vmem>>, vector<2x90xf32>
    %cst_46 = arith.constant dense<0.000000e+00> : vector<2x36xf32>
    %50 = tpu.matmul %49, %48, %cst_46 {dimension_numbers = #tpu.dot_dimension_numbers<[1], [0], [0], [1], [0, 0, 1, 1], [], []>} : vector<2x90xf32>, vector<90x36xf32>, vector<2x36xf32> -> vector<2x36xf32>
    %c0_47 = arith.constant 0 : index
    %c0_48 = arith.constant 0 : index
    %51 = vector.load %arg16[%c0_47, %c0_48] : memref<36x4xf32, #tpu.memory_space<vmem>>, vector<36x4xf32>
    %cst_49 = arith.constant dense<0.000000e+00> : vector<2x4xf32>
    %52 = tpu.matmul %50, %51, %cst_49 {dimension_numbers = #tpu.dot_dimension_numbers<[1], [0], [0], [1], [0, 0, 1, 1], [], []>} : vector<2x36xf32>, vector<36x4xf32>, vector<2x4xf32> -> vector<2x4xf32>
    %c0_50 = arith.constant 0 : index
    %c0_51 = arith.constant 0 : index
    %53 = vector.load %arg18[%c0_50, %c0_51] : memref<128x4xf32, #tpu.memory_space<vmem>>, vector<128x4xf32>
    %cst_52 = arith.constant dense<0.000000e+00> : vector<2x4xf32>
    %54 = tpu.matmul %44, %53, %cst_52 {dimension_numbers = #tpu.dot_dimension_numbers<[1], [0], [0], [1], [0, 0, 1, 1], [], []>} : vector<2x128xf32>, vector<128x4xf32>, vector<2x4xf32> -> vector<2x4xf32>
    %55 = arith.addf %52, %54 : vector<2x4xf32>
    %c0_53 = arith.constant 0 : index
    %c0_54 = arith.constant 0 : index
    %56 = vector.load %arg19[%c0_53, %c0_54] : memref<1x4xf32, #tpu.memory_space<vmem>>, vector<1x4xf32>
    %57 = vector.broadcast %56 : vector<1x4xf32> to vector<2x4xf32>
    %58 = arith.addf %55, %57 : vector<2x4xf32>
    %c0_55 = arith.constant 0 : index
    %c0_56 = arith.constant 0 : index
    %59 = vector.load %arg21[%c0_55, %c0_56] : memref<2x4xf32, #tpu.memory_space<vmem>>, vector<2x4xf32>
    tpu.vector_store %arg21[%c0_55, %c0_56], %58 {strides = array<i32>} : memref<2x4xf32, #tpu.memory_space<vmem>>, vector<2x4xf32>,
    return
  }
  func.func @transform_0(%arg0: i32) -> (i32, i32) {
    %c0_i32 = arith.constant 0 : i32
    %c0_i32_0 = arith.constant 0 : i32
    %c0_i32_1 = arith.constant 0 : i32
    return %c0_i32, %c0_i32_0 : i32, i32
  }
  func.func @transform_1(%arg0: i32) -> (i32, i32) {
    %c0_i32 = arith.constant 0 : i32
    %c0_i32_0 = arith.constant 0 : i32
    %c0_i32_1 = arith.constant 0 : i32
    return %c0_i32, %c0_i32_0 : i32, i32
  }
  func.func @transform_2(%arg0: i32) -> (i32, i32) {
    %c0_i32 = arith.constant 0 : i32
    %c0_i32_0 = arith.constant 0 : i32
    %c0_i32_1 = arith.constant 0 : i32
    return %c0_i32, %c0_i32_0 : i32, i32
  }
  func.func @transform_3(%arg0: i32) -> (i32, i32) {
    %c0_i32 = arith.constant 0 : i32
    %c0_i32_0 = arith.constant 0 : i32
    %c0_i32_1 = arith.constant 0 : i32
    return %c0_i32, %c0_i32_0 : i32, i32
  }
  func.func @transform_4(%arg0: i32) -> (i32, i32) {
    %c0_i32 = arith.constant 0 : i32
    %c0_i32_0 = arith.constant 0 : i32
    %c0_i32_1 = arith.constant 0 : i32
    return %c0_i32, %c0_i32_0 : i32, i32
  }
  func.func @transform_5(%arg0: i32) -> (i32, i32) {
    %c0_i32 = arith.constant 0 : i32
    %c0_i32_0 = arith.constant 0 : i32
    %c0_i32_1 = arith.constant 0 : i32
    return %c0_i32, %c0_i32_0 : i32, i32
  }
  func.func @transform_6(%arg0: i32) -> (i32, i32) {
    %c0_i32 = arith.constant 0 : i32
    %c0_i32_0 = arith.constant 0 : i32
    %c0_i32_1 = arith.constant 0 : i32
    return %c0_i32, %c0_i32_0 : i32, i32
  }
  func.func @transform_7(%arg0: i32) -> (i32, i32) {
    %c0_i32 = arith.constant 0 : i32
    %c0_i32_0 = arith.constant 0 : i32
    %c0_i32_1 = arith.constant 0 : i32
    return %c0_i32, %c0_i32_0 : i32, i32
  }
  func.func @transform_8(%arg0: i32) -> (i32, i32) {
    %c0_i32 = arith.constant 0 : i32
    %c0_i32_0 = arith.constant 0 : i32
    %c0_i32_1 = arith.constant 0 : i32
    return %c0_i32, %c0_i32_0 : i32, i32
  }
  func.func @transform_9(%arg0: i32) -> (i32, i32) {
    %c0_i32 = arith.constant 0 : i32
    %c0_i32_0 = arith.constant 0 : i32
    %c0_i32_1 = arith.constant 0 : i32
    return %c0_i32, %c0_i32_0 : i32, i32
  }
  func.func @transform_10(%arg0: i32) -> (i32, i32) {
    %c0_i32 = arith.constant 0 : i32
    %c0_i32_0 = arith.constant 0 : i32
    %c0_i32_1 = arith.constant 0 : i32
    return %c0_i32, %c0_i32_0 : i32, i32
  }
  func.func @transform_11(%arg0: i32) -> (i32, i32) {
    %c0_i32 = arith.constant 0 : i32
    %c0_i32_0 = arith.constant 0 : i32
    %c0_i32_1 = arith.constant 0 : i32
    return %c0_i32, %c0_i32_0 : i32, i32
  }
  func.func @transform_12(%arg0: i32) -> (i32, i32) {
    %c0_i32 = arith.constant 0 : i32
    %c0_i32_0 = arith.constant 0 : i32
    %c0_i32_1 = arith.constant 0 : i32
    return %c0_i32, %c0_i32_0 : i32, i32
  }
  func.func @transform_13(%arg0: i32) -> (i32, i32) {
    %c0_i32 = arith.constant 0 : i32
    %c0_i32_0 = arith.constant 0 : i32
    %c0_i32_1 = arith.constant 0 : i32
    return %c0_i32, %c0_i32_0 : i32, i32
  }
  func.func @transform_14(%arg0: i32) -> (i32, i32) {
    %c0_i32 = arith.constant 0 : i32
    %c0_i32_0 = arith.constant 0 : i32
    %c0_i32_1 = arith.constant 0 : i32
    return %c0_i32, %c0_i32_0 : i32, i32
  }
  func.func @transform_15(%arg0: i32) -> (i32, i32) {
    %c0_i32 = arith.constant 0 : i32
    %c0_i32_0 = arith.constant 0 : i32
    %c0_i32_1 = arith.constant 0 : i32
    return %c0_i32, %c0_i32_0 : i32, i32
  }
  func.func @transform_16(%arg0: i32) -> (i32, i32) {
    %c0_i32 = arith.constant 0 : i32
    %c0_i32_0 = arith.constant 0 : i32
    %c0_i32_1 = arith.constant 0 : i32
    return %c0_i32, %c0_i32_0 : i32, i32
  }
  func.func @transform_17(%arg0: i32) -> (i32, i32) {
    %c0_i32 = arith.constant 0 : i32
    %c0_i32_0 = arith.constant 0 : i32
    %c0_i32_1 = arith.constant 0 : i32
    return %c0_i32, %c0_i32_0 : i32, i32
  }
  func.func @transform_18(%arg0: i32) -> (i32, i32) {
    %c0_i32 = arith.constant 0 : i32
    %c0_i32_0 = arith.constant 0 : i32
    %c0_i32_1 = arith.constant 0 : i32
    return %c0_i32, %c0_i32_0 : i32, i32
  }
  func.func @transform_19(%arg0: i32) -> (i32, i32) {
    %c0_i32 = arith.constant 0 : i32
    %c0_i32_0 = arith.constant 0 : i32
    %c0_i32_1 = arith.constant 0 : i32
    return %c0_i32, %c0_i32_0 : i32, i32
  }
  func.func @transform_20(%arg0: i32) -> (i32, i32) {
    %c0_i32 = arith.constant 0 : i32
    %c0_i32_0 = arith.constant 0 : i32
    %c0_i32_1 = arith.constant 0 : i32
    return %c0_i32, %c0_i32_0 : i32, i32
  }
}

</mosaic_0001>

<llo_original>
// kernel: forward.5
$region0: #{forward.5}
  #allocation0 [shape = 'u32[]', space=smem, size = 0x4, offset = 0x4, fixed_abs, tag = 'smem constant byte address 0x4 - core index']
  #allocation1 [shape = 'u32[144,128]{1,0:T(1,128)}', space=vmem, size = 0x12000, scoped, tag = 'internal scratch']
  %s0 = inlined_call_operand.vmem [shape: bf16[4608,36], index: 0, kind: input, shape index: {}]
  %s1 = inlined_call_operand.vmem [shape: bf16[36,8], index: 1, kind: input, shape index: {}]
  %s2 = inlined_call_operand.vmem [shape: f32[1,8], index: 2, kind: input, shape index: {}]
  %s3 = inlined_call_operand.vmem [shape: bf16[4608,8], index: 3, kind: output, shape index: {}]
  %s4 = sld [smem:[#allocation0]]
  $region45: #{forward.5} parent=0
    _
  %s6 = ssub.s32 1, %s4
  %s7 = scalar_select 0, %s6, %s4
  loop: start=0, step=1, limit=11
  $region2: #{forward.5} parent=0 // loop_pre_header
    _
  $region3: #{forward.5} parent=0 // loop_header
    %s9 = sphi 0, %s13
    %p10 = scmp.ge.s32.totalorder %s9, 11
    %s19 = sphi 0, %s21
    %s22 = sphi 0, %s19
    %s23 = sphi 0, %s22
    %s39 = sphi 0, %s23
    %s43 = sphi 0, %s43
    %s45 = sphi 0, %s43
    %s46 = sphi 0, %s45
    %s60 = sphi 0, %s46
    %s64 = sphi 0, %s64
    %s66 = sphi 0, %s64
    %s67 = sphi 0, %s66
    %s81 = sphi 0, %s67
    %s87 = sphi 0, %s89
    %s90 = sphi 0, %s87
    %s91 = sphi 0, %s90
    %s107 = sphi 0, %s91
  $region4: #{forward.5} parent=0 // loop_header_branch
    %12 = sbr.rel (%p10) target = $region8
  $region5: #{forward.5} parent=0 // loop_body
    %s14 = ssub.s32 %s9, 1
    %s15 = ssub.s32 %s9, 2
    %s16 = sadd.s32 %s9, 1
    %s17 = ssub.s32 %s9, %s16
    %p18 = scmp.eq.s32.totalorder %s17, 0
    %s20 = sadd.s32 %s19, 1
    %s21 = scalar_select %p18, %s19, %s20
    %p24 = pneg %p18
    %p25 = scmp.eq.s32.totalorder %s9, 8
    %p26 = por %p24, %p25
    %p27 = scmp.ne.s32.totalorder %s19, %s22
    %p28 = scmp.eq.s32.totalorder %s9, 0
    %p29 = por %p27, %p28
    %p30 = scmp.ne.s32.totalorder %s19, %s22
    %p31 = scmp.eq.s32.totalorder %s14, 8
    %p32 = por %p30, %p31
    %p33 = scmp.ne.s32.totalorder %s22, %s23
    %p34 = scmp.eq.s32.totalorder %s14, 0
    %p35 = por %p33, %p34
    %p36 = scmp.ne.s32.totalorder %s22, %s23
    %p37 = scmp.eq.s32.totalorder %s15, 8
    %p38 = por %p36, %p37
    %p40 = scmp.ne.s32.totalorder %s23, %s39
    %p41 = scmp.eq.s32.totalorder %s15, 0
    %p42 = por %p40, %p41
    %s44 = sadd.s32 %s43, 1
    %p47 = scmp.eq.s32.totalorder %s9, 8
    %p48 = scmp.ne.s32.totalorder %s43, %s45
    %p49 = scmp.eq.s32.totalorder %s9, 0
    %p50 = por %p48, %p49
    %p51 = scmp.ne.s32.totalorder %s43, %s45
    %p52 = scmp.eq.s32.totalorder %s14, 8
    %p53 = por %p51, %p52
    %p54 = scmp.ne.s32.totalorder %s45, %s46
    %p55 = scmp.eq.s32.totalorder %s14, 0
    %p56 = por %p54, %p55
    %p57 = scmp.ne.s32.totalorder %s45, %s46
    %p58 = scmp.eq.s32.totalorder %s15, 8
    %p59 = por %p57, %p58
    %p61 = scmp.ne.s32.totalorder %s46, %s60
    %p62 = scmp.eq.s32.totalorder %s15, 0
    %p63 = por %p61, %p62
    %s65 = sadd.s32 %s64, 1
    %p68 = scmp.eq.s32.totalorder %s9, 8
    %p69 = scmp.ne.s32.totalorder %s64, %s66
    %p70 = scmp.eq.s32.totalorder %s9, 0
    %p71 = por %p69, %p70
    %p72 = scmp.ne.s32.totalorder %s64, %s66
    %p73 = scmp.eq.s32.totalorder %s14, 8
    %p74 = por %p72, %p73
    %p75 = scmp.ne.s32.totalorder %s66, %s67
    %p76 = scmp.eq.s32.totalorder %s14, 0
    %p77 = por %p75, %p76
    %p78 = scmp.ne.s32.totalorder %s66, %s67
    %p79 = scmp.eq.s32.totalorder %s15, 8
    %p80 = por %p78, %p79
    %p82 = scmp.ne.s32.totalorder %s67, %s81
    %p83 = scmp.eq.s32.totalorder %s15, 0
    %p84 = por %p82, %p83
    %s85 = ssub.s32 %s9, %s16
    %p86 = scmp.eq.s32.totalorder %s85, 0
    %s88 = sadd.s32 %s87, 1
    %s89 = scalar_select %p86, %s87, %s88
    %p92 = pneg %p86
    %p93 = scmp.eq.s32.totalorder %s9, 8
    %p94 = por %p92, %p93
    %p95 = scmp.ne.s32.totalorder %s87, %s90
    %p96 = scmp.eq.s32.totalorder %s9, 0
    %p97 = por %p95, %p96
    %p98 = scmp.ne.s32.totalorder %s87, %s90
    %p99 = scmp.eq.s32.totalorder %s14, 8
    %p100 = por %p98, %p99
    %p101 = scmp.ne.s32.totalorder %s90, %s91
    %p102 = scmp.eq.s32.totalorder %s14, 0
    %p103 = por %p101, %p102
    %p104 = scmp.ne.s32.totalorder %s90, %s91
    %p105 = scmp.eq.s32.totalorder %s15, 8
    %p106 = por %p104, %p105
    %p108 = scmp.ne.s32.totalorder %s91, %s107
    %p109 = scmp.eq.s32.totalorder %s15, 0
    %p110 = por %p108, %p109
    %p111 = scmp.le.s32.totalorder 1, %s9
    %p112 = scmp.lt.s32.totalorder %s9, 10
    %p113 = pnand %p111, %p112
    %p114 = pneg %p113
    // Predicated region
    $region9: #{forward.5} parent=5 // pred_check
      _
    $region10: #{forward.5} parent=5 // pred_check_branch
      %116 = sbr.rel (%p113) target = $region12
    $region11: #{forward.5} parent=5 // pred_region
      %s117 = ssub.s32 %s9, 1
      // Predicated region
      $region13: #{forward.5} parent=11 // pred_check
        %p118 = pneg %p56
      $region14: #{forward.5} parent=11 // pred_check_branch
        %120 = sbr.rel (%p118) target = $region16
      $region15: #{forward.5} parent=11 // pred_region
        _
      $region16: #{forward.5} parent=11 // pred_fallthru
        _
      // Predicated region
      $region17: #{forward.5} parent=11 // pred_check
        %p121 = pneg %p77
      $region18: #{forward.5} parent=11 // pred_check_branch
        %123 = sbr.rel (%p121) target = $region20
      $region19: #{forward.5} parent=11 // pred_region
        _
      $region20: #{forward.5} parent=11 // pred_fallthru
        _
    $region12: #{forward.5} parent=5 // pred_fallthru
      _
    %p124 = scmp.lt.s32.totalorder %s9, 9
    // Predicated region
    $region21: #{forward.5} parent=5 // pred_check
      %p125 = pneg %p124
    $region22: #{forward.5} parent=5 // pred_check_branch
      %127 = sbr.rel (%p125) target = $region24
    $region23: #{forward.5} parent=5 // pred_region
      // Predicated region
      $region25: #{forward.5} parent=23 // pred_check
        %p128 = pneg %p29
      $region26: #{forward.5} parent=23 // pred_check_branch
        %130 = sbr.rel (%p128) target = $region28
      $region27: #{forward.5} parent=23 // pred_region
        %s131 = smul.u32 64, %s9
        %p132 = scmp.lt.s32.totalorder %s131, 575
        %s133 = scalar_select %p132, %s131, 575
        %s134 = smul.addr %s133, 4
        %s135 = scalar_lea.vmem %s0, %s134
        %s136 = smul.u32 64, %s9
      $region28: #{forward.5} parent=23 // pred_fallthru
        _
    $region24: #{forward.5} parent=5 // pred_fallthru
      _
    %p137 = scmp.le.s32.totalorder 1, %s9
    %p138 = scmp.lt.s32.totalorder %s9, 10
    %p139 = pnand %p137, %p138
    %p140 = pneg %p139
    // Predicated region
    $region29: #{forward.5} parent=5 // pred_check
      _
    $region30: #{forward.5} parent=5 // pred_check_branch
      %142 = sbr.rel (%p139) target = $region32
    $region31: #{forward.5} parent=5 // pred_region
      %s143 = ssub.s32 %s9, 1
      %s144 = smul.u32 64, %s14
      %p145 = scmp.lt.s32.totalorder %s144, 575
      %s146 = scalar_select %p145, %s144, 575
      %s147 = smul.addr %s146, 4
      %s148 = scalar_lea.vmem %s0, %s147
      %p149 = pneg %p35
      %p150 = pneg %p32
      %p151 = pneg %p56
      %p152 = pneg %p53
      %p153 = pneg %p77
      %p154 = pneg %p74
      %p155 = pneg %p103
      %p156 = pneg %p100
      %s157 = smul.u32 64, %s14
      %p158 = scmp.lt.s32.totalorder %s157, 575
      %s159 = scalar_select %p158, %s157, 575
      %s160 = smul.addr %s159, 4
      %s161 = scalar_lea.vmem %s3, %s160
      %s162 = smul.u32 64, %s14
      %p163 = scmp.lt.s32.totalorder %s162, 575
      %s164 = scalar_select %p163, %s162, 575
      %s165 = smul.addr %s164, 4
      %s166 = scalar_lea.vmem %s0, %s165
      %s167 = smul.u32 64, %s14
      %s168 = smul.u32 64, %s14
      %p169 = scmp.lt.s32.totalorder %s168, 575
      %s170 = scalar_select %p169, %s168, 575
      %s171 = smul.addr %s170, 4
      %s172 = scalar_lea.vmem %s3, %s171
      %s173 = smul.u32 64, %s14
      %v175 = vld [vmem:[%s166] sm:$0xf]
      %v176 = vld [vmem:[%s166 + $0x4] sm:$0xf]
      %v177 = vld [vmem:[%s166 + $0x8] sm:$0xf]
      %v178 = vld [vmem:[%s166 + $0xc] sm:$0xf]
      %v179 = vld [vmem:[%s166 + $0x10] sm:$0xf]
      %v180 = vld [vmem:[%s166 + $0x14] sm:$0xf]
      %v181 = vld [vmem:[%s166 + $0x18] sm:$0xf]
      %v182 = vld [vmem:[%s166 + $0x1c] sm:$0xf]
      %v183 = vld [vmem:[%s166 + $0x20] sm:$0xf]
      %v184 = vld [vmem:[%s166 + $0x24] sm:$0xf]
      %v185 = vld [vmem:[%s166 + $0x28] sm:$0xf]
      %v186 = vld [vmem:[%s166 + $0x2c] sm:$0xf]
      %v187 = vld [vmem:[%s166 + $0x30] sm:$0xf]
      %v188 = vld [vmem:[%s166 + $0x34] sm:$0xf]
      %v189 = vld [vmem:[%s166 + $0x38] sm:$0xf]
      %v190 = vld [vmem:[%s166 + $0x3c] sm:$0xf]
      %v191 = vld [vmem:[%s166 + $0x40] sm:$0xf]
      %v192 = vld [vmem:[%s166 + $0x44] sm:$0xf]
      %v193 = vld [vmem:[%s166 + $0x48] sm:$0xf]
      %v194 = vld [vmem:[%s166 + $0x4c] sm:$0xf]
      %v195 = vld [vmem:[%s166 + $0x50] sm:$0xf]
      %v196 = vld [vmem:[%s166 + $0x54] sm:$0xf]
      %v197 = vld [vmem:[%s166 + $0x58] sm:$0xf]
      %v198 = vld [vmem:[%s166 + $0x5c] sm:$0xf]
      %v199 = vld [vmem:[%s166 + $0x60] sm:$0xf]
      %v200 = vld [vmem:[%s166 + $0x64] sm:$0xf]
      %v201 = vld [vmem:[%s166 + $0x68] sm:$0xf]
      %v202 = vld [vmem:[%s166 + $0x6c] sm:$0xf]
      %v203 = vld [vmem:[%s166 + $0x70] sm:$0xf]
      %v204 = vld [vmem:[%s166 + $0x74] sm:$0xf]
      %v205 = vld [vmem:[%s166 + $0x78] sm:$0xf]
      %v206 = vld [vmem:[%s166 + $0x7c] sm:$0xf]
      %v207 = vld [vmem:[%s166 + $0x80] sm:$0xf]
      %v208 = vld [vmem:[%s166 + $0x84] sm:$0xf]
      %v209 = vld [vmem:[%s166 + $0x88] sm:$0xf]
      %v210 = vld [vmem:[%s166 + $0x8c] sm:$0xf]
      %v211 = vld [vmem:[%s166 + $0x90] sm:$0xf]
      %v212 = vld [vmem:[%s166 + $0x94] sm:$0xf]
      %v213 = vld [vmem:[%s166 + $0x98] sm:$0xf]
      %v214 = vld [vmem:[%s166 + $0x9c] sm:$0xf]
      %v215 = vld [vmem:[%s166 + $0xa0] sm:$0xf]
      %v216 = vld [vmem:[%s166 + $0xa4] sm:$0xf]
      %v217 = vld [vmem:[%s166 + $0xa8] sm:$0xf]
      %v218 = vld [vmem:[%s166 + $0xac] sm:$0xf]
      %v219 = vld [vmem:[%s166 + $0xb0] sm:$0xf]
      %v220 = vld [vmem:[%s166 + $0xb4] sm:$0xf]
      %v221 = vld [vmem:[%s166 + $0xb8] sm:$0xf]
      %v222 = vld [vmem:[%s166 + $0xbc] sm:$0xf]
      %v223 = vld [vmem:[%s166 + $0xc0] sm:$0xf]
      %v224 = vld [vmem:[%s166 + $0xc4] sm:$0xf]
      %v225 = vld [vmem:[%s166 + $0xc8] sm:$0xf]
      %v226 = vld [vmem:[%s166 + $0xcc] sm:$0xf]
      %v227 = vld [vmem:[%s166 + $0xd0] sm:$0xf]
      %v228 = vld [vmem:[%s166 + $0xd4] sm:$0xf]
      %v229 = vld [vmem:[%s166 + $0xd8] sm:$0xf]
      %v230 = vld [vmem:[%s166 + $0xdc] sm:$0xf]
      %v231 = vld [vmem:[%s166 + $0xe0] sm:$0xf]
      %v232 = vld [vmem:[%s166 + $0xe4] sm:$0xf]
      %v233 = vld [vmem:[%s166 + $0xe8] sm:$0xf]
      %v234 = vld [vmem:[%s166 + $0xec] sm:$0xf]
      %v235 = vld [vmem:[%s166 + $0xf0] sm:$0xf]
      %v236 = vld [vmem:[%s166 + $0xf4] sm:$0xf]
      %v237 = vld [vmem:[%s166 + $0xf8] sm:$0xf]
      %v238 = vld [vmem:[%s166 + $0xfc] sm:$0xf]
      %v239 = vld [vmem:[%s1] sm:$0xf]
      %v240 = vld [vmem:[%s1 + $0x4] sm:$0xf]
      %v241 = vld [vmem:[%s1 + $0x8] sm:$0xf]
      %v242 = vld [vmem:[%s1 + $0xc] sm:$0xf]
      %v243 = vld [vmem:[%s1 + $0x10] sm:$0x3]
      %v244 = vld [vmem:[%s2] sm:$0x1]
      %v246 = vlaneseq
      %v247 = vshrl.u32 %v246, 7
      %v248 = vsub.s32 0, %v247
      %v249 = vrot.slane %v244, %v248
      %v315 = vunpack.c.l.b16 %v175
      %v316 = vunpack.c.l.b16 %v176
      %v317 = vunpack.c.l.b16 %v177
      %v318 = vunpack.c.l.b16 %v178
      %v319 = vunpack.c.l.b16 %v179
      %v320 = vunpack.c.l.b16 %v180
      %v321 = vunpack.c.l.b16 %v181
      %v322 = vunpack.c.l.b16 %v182
      %v323 = vunpack.c.l.b16 %v183
      %v324 = vunpack.c.l.b16 %v184
      %v325 = vunpack.c.l.b16 %v185
      %v326 = vunpack.c.l.b16 %v186
      %v327 = vunpack.c.l.b16 %v187
      %v328 = vunpack.c.l.b16 %v188
      %v329 = vunpack.c.l.b16 %v189
      %v330 = vunpack.c.l.b16 %v190
      %v331 = vunpack.c.l.b16 %v191
      %v332 = vunpack.c.l.b16 %v192
      %v333 = vunpack.c.l.b16 %v193
      %v334 = vunpack.c.l.b16 %v194
      %v335 = vunpack.c.l.b16 %v195
      %v336 = vunpack.c.l.b16 %v196
      %v337 = vunpack.c.l.b16 %v197
      %v338 = vunpack.c.l.b16 %v198
      %v339 = vunpack.c.l.b16 %v199
      %v340 = vunpack.c.l.b16 %v200
      %v341 = vunpack.c.l.b16 %v201
      %v342 = vunpack.c.l.b16 %v202
      %v343 = vunpack.c.l.b16 %v203
      %v344 = vunpack.c.l.b16 %v204
      %v345 = vunpack.c.l.b16 %v205
      %v346 = vunpack.c.l.b16 %v206
      %v347 = vunpack.c.l.b16 %v207
      %v348 = vunpack.c.l.b16 %v208
      %v349 = vunpack.c.l.b16 %v209
      %v350 = vunpack.c.l.b16 %v210
      %v351 = vunpack.c.l.b16 %v211
      %v352 = vunpack.c.l.b16 %v212
      %v353 = vunpack.c.l.b16 %v213
      %v354 = vunpack.c.l.b16 %v214
      %v355 = vunpack.c.l.b16 %v215
      %v356 = vunpack.c.l.b16 %v216
      %v357 = vunpack.c.l.b16 %v217
      %v358 = vunpack.c.l.b16 %v218
      %v359 = vunpack.c.l.b16 %v219
      %v360 = vunpack.c.l.b16 %v220
      %v361 = vunpack.c.l.b16 %v221
      %v362 = vunpack.c.l.b16 %v222
      %v363 = vunpack.c.l.b16 %v223
      %v364 = vunpack.c.l.b16 %v224
      %v365 = vunpack.c.l.b16 %v225
      %v366 = vunpack.c.l.b16 %v226
      %v367 = vunpack.c.l.b16 %v227
      %v368 = vunpack.c.l.b16 %v228
      %v369 = vunpack.c.l.b16 %v229
      %v370 = vunpack.c.l.b16 %v230
      %v371 = vunpack.c.l.b16 %v231
      %v372 = vunpack.c.l.b16 %v232
      %v373 = vunpack.c.l.b16 %v233
      %v374 = vunpack.c.l.b16 %v234
      %v375 = vunpack.c.l.b16 %v235
      %v376 = vunpack.c.l.b16 %v236
      %v377 = vunpack.c.l.b16 %v237
      %v378 = vunpack.c.l.b16 %v238
      %v379 = vpack.c.b16 %v316, %v315
      %v380 = vpack.c.b16 %v318, %v317
      %v381 = vpack.c.b16 %v320, %v319
      %v382 = vpack.c.b16 %v322, %v321
      %v383 = vpack.c.b16 %v324, %v323
      %v384 = vpack.c.b16 %v326, %v325
      %v385 = vpack.c.b16 %v328, %v327
      %v386 = vpack.c.b16 %v330, %v329
      %v387 = vpack.c.b16 %v332, %v331
      %v388 = vpack.c.b16 %v334, %v333
      %v389 = vpack.c.b16 %v336, %v335
      %v390 = vpack.c.b16 %v338, %v337
      %v391 = vpack.c.b16 %v340, %v339
      %v392 = vpack.c.b16 %v342, %v341
      %v393 = vpack.c.b16 %v344, %v343
      %v394 = vpack.c.b16 %v346, %v345
      %v395 = vpack.c.b16 %v348, %v347
      %v396 = vpack.c.b16 %v350, %v349
      %v397 = vpack.c.b16 %v352, %v351
      %v398 = vpack.c.b16 %v354, %v353
      %v399 = vpack.c.b16 %v356, %v355
      %v400 = vpack.c.b16 %v358, %v357
      %v401 = vpack.c.b16 %v360, %v359
      %v402 = vpack.c.b16 %v362, %v361
      %v403 = vpack.c.b16 %v364, %v363
      %v404 = vpack.c.b16 %v366, %v365
      %v405 = vpack.c.b16 %v368, %v367
      %v406 = vpack.c.b16 %v370, %v369
      %v407 = vpack.c.b16 %v372, %v371
      %v408 = vpack.c.b16 %v374, %v373
      %v409 = vpack.c.b16 %v376, %v375
      %v410 = vpack.c.b16 %v378, %v377
      %v416 = vunpack.c.l.b16 %v239
      %v417 = vunpack.c.l.b16 %v240
      %v418 = vunpack.c.l.b16 %v241
      %v419 = vunpack.c.l.b16 %v242
      %v420 = vunpack.c.l.b16 %v243
      %v421 = vpack.c.b16 %v417, %v416
      %v422 = vpack.c.b16 %v419, %v418
      %v423 = vpack.c.b16 %v420, %v420
      %vm426 = vcmask 293888
      %v428 = vsel %vm426, %v379, 0
      %v431 = vsel %vm426, %v380, 0
      %v434 = vsel %vm426, %v381, 0
      %v437 = vsel %vm426, %v382, 0
      %v440 = vsel %vm426, %v383, 0
      %v443 = vsel %vm426, %v384, 0
      %v446 = vsel %vm426, %v385, 0
      %v449 = vsel %vm426, %v386, 0
      %v452 = vsel %vm426, %v387, 0
      %v455 = vsel %vm426, %v388, 0
      %v458 = vsel %vm426, %v389, 0
      %v461 = vsel %vm426, %v390, 0
      %v464 = vsel %vm426, %v391, 0
      %v467 = vsel %vm426, %v392, 0
      %v470 = vsel %vm426, %v393, 0
      %v473 = vsel %vm426, %v394, 0
      %v476 = vsel %vm426, %v395, 0
      %v479 = vsel %vm426, %v396, 0
      %v482 = vsel %vm426, %v397, 0
      %v485 = vsel %vm426, %v398, 0
      %v488 = vsel %vm426, %v399, 0
      %v491 = vsel %vm426, %v400, 0
      %v494 = vsel %vm426, %v401, 0
      %v497 = vsel %vm426, %v402, 0
      %v500 = vsel %vm426, %v403, 0
      %v503 = vsel %vm426, %v404, 0
      %v506 = vsel %vm426, %v405, 0
      %v509 = vsel %vm426, %v406, 0
      %v512 = vsel %vm426, %v407, 0
      %v515 = vsel %vm426, %v408, 0
      %v518 = vsel %vm426, %v409, 0
      %v521 = vsel %vm426, %v410, 0
      %vm523 = vcmask 1041408
      %v525 = vsel %vm523, %v423, 0
      %527 = vmatprep.subr.bf16.mxu0 0
      %528 = vmatpush1.bf16.msra.mxu0 0
      %529 = vmatprep.subr.bf16.mxu0 0
      %530 = vmatpush1.bf16.msra.mxu0 0
      %531 = vmatprep.subr.bf16.mxu0 0
      %532 = vmatpush1.bf16.msra.mxu0 0
      %533 = vmatprep.subr.bf16.mxu0 0
      %534 = vmatpush1.bf16.msra.mxu0 0
      %535 = vmatprep.subr.bf16.mxu0 0
      %536 = vmatpush1.bf16.msra.mxu0 0
      %537 = vmatprep.subr.bf16.mxu0 0
      %538 = vmatpush1.bf16.msra.mxu0 %v525
      %539 = vmatprep.subr.bf16.mxu0 0
      %540 = vmatpush1.bf16.msra.mxu0 %v422
      %541 = vmatprep.subr.bf16.mxu0 0
      %542 = vmatpush1.bf16.msra.mxu0 %v421
      %543 = vmatprep.subr.bf16.mxu0 0
      %544 = vmatpush2.bf16.msra.mxu0 0
      %545 = vmatprep.subr.bf16.mxu0 0
      %546 = vmatpush2.bf16.msra.mxu0 0
      %547 = vmatprep.subr.bf16.mxu0 0
      %548 = vmatpush2.bf16.msra.mxu0 0
      %549 = vmatprep.subr.bf16.mxu0 0
      %550 = vmatpush2.bf16.msra.mxu0 0
      %551 = vmatprep.subr.bf16.mxu0 0
      %552 = vmatpush2.bf16.msra.mxu0 0
      %553 = vmatprep.subr.bf16.mxu0 0
      %554 = vmatpush2.bf16.msra.mxu0 0
      %555 = vmatprep.subr.bf16.mxu0 0
      %556 = vmatpush2.bf16.msra.mxu0 0
      %557 = vmatprep.subr.bf16.mxu0 0
      %558 = vmatpush2.bf16.msra.mxu0 0
      %559 = vmatprep.mubr.bf16.mxu0 0
      %560 = vmatmul.mubr.bf16.gmra.mxu0 %v428
      %v561 = vpop.f32.mrf.mxu0
      %v562 = vadd.f32 %v249, %v561
      %v563 = vpop.f32.mrf.mxu0
      %v564 = vpop.f32.mrf.mxu0
      %v565 = vadd.f32 %v249, %v564
      %v566 = vpop.f32.mrf.mxu0
      %567 = vmatprep.mubr.bf16.mxu0 0
      %568 = vmatmul.mubr.bf16.gmra.mxu0 %v431
      %v569 = vpop.f32.mrf.mxu0
      %v570 = vadd.f32 %v249, %v569
      %v571 = vpop.f32.mrf.mxu0
      %v572 = vpop.f32.mrf.mxu0
      %v573 = vadd.f32 %v249, %v572
      %v574 = vpop.f32.mrf.mxu0
      %575 = vmatprep.mubr.bf16.mxu0 0
      %576 = vmatmul.mubr.bf16.gmra.mxu0 %v434
      %v577 = vpop.f32.mrf.mxu0
      %v578 = vadd.f32 %v249, %v577
      %v579 = vpop.f32.mrf.mxu0
      %v580 = vpop.f32.mrf.mxu0
      %v581 = vadd.f32 %v249, %v580
      %v582 = vpop.f32.mrf.mxu0
      %583 = vmatprep.mubr.bf16.mxu0 0
      %584 = vmatmul.mubr.bf16.gmra.mxu0 %v437
      %v585 = vpop.f32.mrf.mxu0
      %v586 = vadd.f32 %v249, %v585
      %v587 = vpop.f32.mrf.mxu0
      %v588 = vpop.f32.mrf.mxu0
      %v589 = vadd.f32 %v249, %v588
      %v590 = vpop.f32.mrf.mxu0
      %591 = vmatprep.mubr.bf16.mxu0 0
      %592 = vmatmul.mubr.bf16.gmra.mxu0 %v440
      %v593 = vpop.f32.mrf.mxu0
      %v594 = vadd.f32 %v249, %v593
      %v595 = vpop.f32.mrf.mxu0
      %v596 = vpop.f32.mrf.mxu0
      %v597 = vadd.f32 %v249, %v596
      %v598 = vpop.f32.mrf.mxu0
      %599 = vmatprep.mubr.bf16.mxu0 0
      %600 = vmatmul.mubr.bf16.gmra.mxu0 %v443
      %v601 = vpop.f32.mrf.mxu0
      %v602 = vadd.f32 %v249, %v601
      %v603 = vpop.f32.mrf.mxu0
      %v604 = vpop.f32.mrf.mxu0
      %v605 = vadd.f32 %v249, %v604
      %v606 = vpop.f32.mrf.mxu0
      %607 = vmatprep.mubr.bf16.mxu0 0
      %608 = vmatmul.mubr.bf16.gmra.mxu0 %v446
      %v609 = vpop.f32.mrf.mxu0
      %v610 = vadd.f32 %v249, %v609
      %v611 = vpop.f32.mrf.mxu0
      %v612 = vpop.f32.mrf.mxu0
      %v613 = vadd.f32 %v249, %v612
      %v614 = vpop.f32.mrf.mxu0
      %615 = vmatprep.mubr.bf16.mxu0 0
      %616 = vmatmul.mubr.bf16.gmra.mxu0 %v449
      %v617 = vpop.f32.mrf.mxu0
      %v618 = vadd.f32 %v249, %v617
      %v619 = vpop.f32.mrf.mxu0
      %v620 = vpop.f32.mrf.mxu0
      %v621 = vadd.f32 %v249, %v620
      %v622 = vpop.f32.mrf.mxu0
      %623 = vmatprep.mubr.bf16.mxu0 0
      %624 = vmatmul.mubr.bf16.gmra.mxu0 %v452
      %v625 = vpop.f32.mrf.mxu0
      %v626 = vadd.f32 %v249, %v625
      %v627 = vpop.f32.mrf.mxu0
      %v628 = vpop.f32.mrf.mxu0
      %v629 = vadd.f32 %v249, %v628
      %v630 = vpop.f32.mrf.mxu0
      %631 = vmatprep.mubr.bf16.mxu0 0
      %632 = vmatmul.mubr.bf16.gmra.mxu0 %v455
      %v633 = vpop.f32.mrf.mxu0
      %v634 = vadd.f32 %v249, %v633
      %v635 = vpop.f32.mrf.mxu0
      %v636 = vpop.f32.mrf.mxu0
      %v637 = vadd.f32 %v249, %v636
      %v638 = vpop.f32.mrf.mxu0
      %639 = vmatprep.mubr.bf16.mxu0 0
      %640 = vmatmul.mubr.bf16.gmra.mxu0 %v458
      %v641 = vpop.f32.mrf.mxu0
      %v642 = vadd.f32 %v249, %v641
      %v643 = vpop.f32.mrf.mxu0
      %v644 = vpop.f32.mrf.mxu0
      %v645 = vadd.f32 %v249, %v644
      %v646 = vpop.f32.mrf.mxu0
      %647 = vmatprep.mubr.bf16.mxu0 0
      %648 = vmatmul.mubr.bf16.gmra.mxu0 %v461
      %v649 = vpop.f32.mrf.mxu0
      %v650 = vadd.f32 %v249, %v649
      %v651 = vpop.f32.mrf.mxu0
      %v652 = vpop.f32.mrf.mxu0
      %v653 = vadd.f32 %v249, %v652
      %v654 = vpop.f32.mrf.mxu0
      %655 = vmatprep.mubr.bf16.mxu0 0
      %656 = vmatmul.mubr.bf16.gmra.mxu0 %v464
      %v657 = vpop.f32.mrf.mxu0
      %v658 = vadd.f32 %v249, %v657
      %v659 = vpop.f32.mrf.mxu0
      %v660 = vpop.f32.mrf.mxu0
      %v661 = vadd.f32 %v249, %v660
      %v662 = vpop.f32.mrf.mxu0
      %663 = vmatprep.mubr.bf16.mxu0 0
      %664 = vmatmul.mubr.bf16.gmra.mxu0 %v467
      %v665 = vpop.f32.mrf.mxu0
      %v666 = vadd.f32 %v249, %v665
      %v667 = vpop.f32.mrf.mxu0
      %v668 = vpop.f32.mrf.mxu0
      %v669 = vadd.f32 %v249, %v668
      %v670 = vpop.f32.mrf.mxu0
      %671 = vmatprep.mubr.bf16.mxu0 0
      %672 = vmatmul.mubr.bf16.gmra.mxu0 %v470
      %v673 = vpop.f32.mrf.mxu0
      %v674 = vadd.f32 %v249, %v673
      %v675 = vpop.f32.mrf.mxu0
      %v676 = vpop.f32.mrf.mxu0
      %v677 = vadd.f32 %v249, %v676
      %v678 = vpop.f32.mrf.mxu0
      %679 = vmatprep.mubr.bf16.mxu0 0
      %680 = vmatmul.mubr.bf16.gmra.mxu0 %v473
      %v681 = vpop.f32.mrf.mxu0
      %v682 = vadd.f32 %v249, %v681
      %v683 = vpop.f32.mrf.mxu0
      %v684 = vpop.f32.mrf.mxu0
      %v685 = vadd.f32 %v249, %v684
      %v686 = vpop.f32.mrf.mxu0
      %687 = vmatprep.mubr.bf16.mxu0 0
      %688 = vmatmul.mubr.bf16.gmra.mxu0 %v476
      %v689 = vpop.f32.mrf.mxu0
      %v690 = vadd.f32 %v249, %v689
      %v691 = vpop.f32.mrf.mxu0
      %v692 = vpop.f32.mrf.mxu0
      %v693 = vadd.f32 %v249, %v692
      %v694 = vpop.f32.mrf.mxu0
      %695 = vmatprep.mubr.bf16.mxu0 0
      %696 = vmatmul.mubr.bf16.gmra.mxu0 %v479
      %v697 = vpop.f32.mrf.mxu0
      %v698 = vadd.f32 %v249, %v697
      %v699 = vpop.f32.mrf.mxu0
      %v700 = vpop.f32.mrf.mxu0
      %v701 = vadd.f32 %v249, %v700
      %v702 = vpop.f32.mrf.mxu0
      %703 = vmatprep.mubr.bf16.mxu0 0
      %704 = vmatmul.mubr.bf16.gmra.mxu0 %v482
      %v705 = vpop.f32.mrf.mxu0
      %v706 = vadd.f32 %v249, %v705
      %v707 = vpop.f32.mrf.mxu0
      %v708 = vpop.f32.mrf.mxu0
      %v709 = vadd.f32 %v249, %v708
      %v710 = vpop.f32.mrf.mxu0
      %711 = vmatprep.mubr.bf16.mxu0 0
      %712 = vmatmul.mubr.bf16.gmra.mxu0 %v485
      %v713 = vpop.f32.mrf.mxu0
      %v714 = vadd.f32 %v249, %v713
      %v715 = vpop.f32.mrf.mxu0
      %v716 = vpop.f32.mrf.mxu0
      %v717 = vadd.f32 %v249, %v716
      %v718 = vpop.f32.mrf.mxu0
      %719 = vmatprep.mubr.bf16.mxu0 0
      %720 = vmatmul.mubr.bf16.gmra.mxu0 %v488
      %v721 = vpop.f32.mrf.mxu0
      %v722 = vadd.f32 %v249, %v721
      %v723 = vpop.f32.mrf.mxu0
      %v724 = vpop.f32.mrf.mxu0
      %v725 = vadd.f32 %v249, %v724
      %v726 = vpop.f32.mrf.mxu0
      %727 = vmatprep.mubr.bf16.mxu0 0
      %728 = vmatmul.mubr.bf16.gmra.mxu0 %v491
      %v729 = vpop.f32.mrf.mxu0
      %v730 = vadd.f32 %v249, %v729
      %v731 = vpop.f32.mrf.mxu0
      %v732 = vpop.f32.mrf.mxu0
      %v733 = vadd.f32 %v249, %v732
      %v734 = vpop.f32.mrf.mxu0
      %735 = vmatprep.mubr.bf16.mxu0 0
      %736 = vmatmul.mubr.bf16.gmra.mxu0 %v494
      %v737 = vpop.f32.mrf.mxu0
      %v738 = vadd.f32 %v249, %v737
      %v739 = vpop.f32.mrf.mxu0
      %v740 = vpop.f32.mrf.mxu0
      %v741 = vadd.f32 %v249, %v740
      %v742 = vpop.f32.mrf.mxu0
      %743 = vmatprep.mubr.bf16.mxu0 0
      %744 = vmatmul.mubr.bf16.gmra.mxu0 %v497
      %v745 = vpop.f32.mrf.mxu0
      %v746 = vadd.f32 %v249, %v745
      %v747 = vpop.f32.mrf.mxu0
      %v748 = vpop.f32.mrf.mxu0
      %v749 = vadd.f32 %v249, %v748
      %v750 = vpop.f32.mrf.mxu0
      %751 = vmatprep.mubr.bf16.mxu0 0
      %752 = vmatmul.mubr.bf16.gmra.mxu0 %v500
      %v753 = vpop.f32.mrf.mxu0
      %v754 = vadd.f32 %v249, %v753
      %v755 = vpop.f32.mrf.mxu0
      %v756 = vpop.f32.mrf.mxu0
      %v757 = vadd.f32 %v249, %v756
      %v758 = vpop.f32.mrf.mxu0
      %759 = vmatprep.mubr.bf16.mxu0 0
      %760 = vmatmul.mubr.bf16.gmra.mxu0 %v503
      %v761 = vpop.f32.mrf.mxu0
      %v762 = vadd.f32 %v249, %v761
      %v763 = vpop.f32.mrf.mxu0
      %v764 = vpop.f32.mrf.mxu0
      %v765 = vadd.f32 %v249, %v764
      %v766 = vpop.f32.mrf.mxu0
      %767 = vmatprep.mubr.bf16.mxu0 0
      %768 = vmatmul.mubr.bf16.gmra.mxu0 %v506
      %v769 = vpop.f32.mrf.mxu0
      %v770 = vadd.f32 %v249, %v769
      %v771 = vpop.f32.mrf.mxu0
      %v772 = vpop.f32.mrf.mxu0
      %v773 = vadd.f32 %v249, %v772
      %v774 = vpop.f32.mrf.mxu0
      %775 = vmatprep.mubr.bf16.mxu0 0
      %776 = vmatmul.mubr.bf16.gmra.mxu0 %v509
      %v777 = vpop.f32.mrf.mxu0
      %v778 = vadd.f32 %v249, %v777
      %v779 = vpop.f32.mrf.mxu0
      %v780 = vpop.f32.mrf.mxu0
      %v781 = vadd.f32 %v249, %v780
      %v782 = vpop.f32.mrf.mxu0
      %783 = vmatprep.mubr.bf16.mxu0 0
      %784 = vmatmul.mubr.bf16.gmra.mxu0 %v512
      %v785 = vpop.f32.mrf.mxu0
      %v786 = vadd.f32 %v249, %v785
      %v787 = vpop.f32.mrf.mxu0
      %v788 = vpop.f32.mrf.mxu0
      %v789 = vadd.f32 %v249, %v788
      %v790 = vpop.f32.mrf.mxu0
      %791 = vmatprep.mubr.bf16.mxu0 0
      %792 = vmatmul.mubr.bf16.gmra.mxu0 %v515
      %v793 = vpop.f32.mrf.mxu0
      %v794 = vadd.f32 %v249, %v793
      %v795 = vpop.f32.mrf.mxu0
      %v796 = vpop.f32.mrf.mxu0
      %v797 = vadd.f32 %v249, %v796
      %v798 = vpop.f32.mrf.mxu0
      %799 = vmatprep.mubr.bf16.mxu0 0
      %800 = vmatmul.mubr.bf16.gmra.mxu0 %v518
      %v801 = vpop.f32.mrf.mxu0
      %v802 = vadd.f32 %v249, %v801
      %v803 = vpop.f32.mrf.mxu0
      %v804 = vpop.f32.mrf.mxu0
      %v805 = vadd.f32 %v249, %v804
      %v806 = vpop.f32.mrf.mxu0
      %807 = vmatprep.mubr.bf16.mxu0 0
      %808 = vmatmul.mubr.bf16.gmra.mxu0 %v521
      %v809 = vpop.f32.mrf.mxu0
      %v810 = vadd.f32 %v249, %v809
      %v811 = vpop.f32.mrf.mxu0
      %v812 = vpop.f32.mrf.mxu0
      %v813 = vadd.f32 %v249, %v812
      %v814 = vpop.f32.mrf.mxu0
      %815 = vdwg.mxu0
      %vm816 = vcmp.ge.f32.partialorder %v562, 0.0
      %vm817 = vcmp.ge.f32.partialorder %v565, 0.0
      %vm818 = vcmp.ge.f32.partialorder %v570, 0.0
      %vm819 = vcmp.ge.f32.partialorder %v573, 0.0
      %vm820 = vcmp.ge.f32.partialorder %v578, 0.0
      %vm821 = vcmp.ge.f32.partialorder %v581, 0.0
      %vm822 = vcmp.ge.f32.partialorder %v586, 0.0
      %vm823 = vcmp.ge.f32.partialorder %v589, 0.0
      %vm824 = vcmp.ge.f32.partialorder %v594, 0.0
      %vm825 = vcmp.ge.f32.partialorder %v597, 0.0
      %vm826 = vcmp.ge.f32.partialorder %v602, 0.0
      %vm827 = vcmp.ge.f32.partialorder %v605, 0.0
      %vm828 = vcmp.ge.f32.partialorder %v610, 0.0
      %vm829 = vcmp.ge.f32.partialorder %v613, 0.0
      %vm830 = vcmp.ge.f32.partialorder %v618, 0.0
      %vm831 = vcmp.ge.f32.partialorder %v621, 0.0
      %vm832 = vcmp.ge.f32.partialorder %v626, 0.0
      %vm833 = vcmp.ge.f32.partialorder %v629, 0.0
      %vm834 = vcmp.ge.f32.partialorder %v634, 0.0
      %vm835 = vcmp.ge.f32.partialorder %v637, 0.0
      %vm836 = vcmp.ge.f32.partialorder %v642, 0.0
      %vm837 = vcmp.ge.f32.partialorder %v645, 0.0
      %vm838 = vcmp.ge.f32.partialorder %v650, 0.0
      %vm839 = vcmp.ge.f32.partialorder %v653, 0.0
      %vm840 = vcmp.ge.f32.partialorder %v658, 0.0
      %vm841 = vcmp.ge.f32.partialorder %v661, 0.0
      %vm842 = vcmp.ge.f32.partialorder %v666, 0.0
      %vm843 = vcmp.ge.f32.partialorder %v669, 0.0
      %vm844 = vcmp.ge.f32.partialorder %v674, 0.0
      %vm845 = vcmp.ge.f32.partialorder %v677, 0.0
      %vm846 = vcmp.ge.f32.partialorder %v682, 0.0
      %vm847 = vcmp.ge.f32.partialorder %v685, 0.0
      %vm848 = vcmp.ge.f32.partialorder %v690, 0.0
      %vm849 = vcmp.ge.f32.partialorder %v693, 0.0
      %vm850 = vcmp.ge.f32.partialorder %v698, 0.0
      %vm851 = vcmp.ge.f32.partialorder %v701, 0.0
      %vm852 = vcmp.ge.f32.partialorder %v706, 0.0
      %vm853 = vcmp.ge.f32.partialorder %v709, 0.0
      %vm854 = vcmp.ge.f32.partialorder %v714, 0.0
      %vm855 = vcmp.ge.f32.partialorder %v717, 0.0
      %vm856 = vcmp.ge.f32.partialorder %v722, 0.0
      %vm857 = vcmp.ge.f32.partialorder %v725, 0.0
      %vm858 = vcmp.ge.f32.partialorder %v730, 0.0
      %vm859 = vcmp.ge.f32.partialorder %v733, 0.0
      %vm860 = vcmp.ge.f32.partialorder %v738, 0.0
      %vm861 = vcmp.ge.f32.partialorder %v741, 0.0
      %vm862 = vcmp.ge.f32.partialorder %v746, 0.0
      %vm863 = vcmp.ge.f32.partialorder %v749, 0.0
      %vm864 = vcmp.ge.f32.partialorder %v754, 0.0
      %vm865 = vcmp.ge.f32.partialorder %v757, 0.0
      %vm866 = vcmp.ge.f32.partialorder %v762, 0.0
      %vm867 = vcmp.ge.f32.partialorder %v765, 0.0
      %vm868 = vcmp.ge.f32.partialorder %v770, 0.0
      %vm869 = vcmp.ge.f32.partialorder %v773, 0.0
      %vm870 = vcmp.ge.f32.partialorder %v778, 0.0
      %vm871 = vcmp.ge.f32.partialorder %v781, 0.0
      %vm872 = vcmp.ge.f32.partialorder %v786, 0.0
      %vm873 = vcmp.ge.f32.partialorder %v789, 0.0
      %vm874 = vcmp.ge.f32.partialorder %v794, 0.0
      %vm875 = vcmp.ge.f32.partialorder %v797, 0.0
      %vm876 = vcmp.ge.f32.partialorder %v802, 0.0
      %vm877 = vcmp.ge.f32.partialorder %v805, 0.0
      %vm878 = vcmp.ge.f32.partialorder %v810, 0.0
      %vm879 = vcmp.ge.f32.partialorder %v813, 0.0
      %v880 = vmul.f32 %v562, 0.01
      %v881 = vmul.f32 %v565, 0.01
      %v882 = vmul.f32 %v570, 0.01
      %v883 = vmul.f32 %v573, 0.01
      %v884 = vmul.f32 %v578, 0.01
      %v885 = vmul.f32 %v581, 0.01
      %v886 = vmul.f32 %v586, 0.01
      %v887 = vmul.f32 %v589, 0.01
      %v888 = vmul.f32 %v594, 0.01
      %v889 = vmul.f32 %v597, 0.01
      %v890 = vmul.f32 %v602, 0.01
      %v891 = vmul.f32 %v605, 0.01
      %v892 = vmul.f32 %v610, 0.01
      %v893 = vmul.f32 %v613, 0.01
      %v894 = vmul.f32 %v618, 0.01
      %v895 = vmul.f32 %v621, 0.01
      %v896 = vmul.f32 %v626, 0.01
      %v897 = vmul.f32 %v629, 0.01
      %v898 = vmul.f32 %v634, 0.01
      %v899 = vmul.f32 %v637, 0.01
      %v900 = vmul.f32 %v642, 0.01
      %v901 = vmul.f32 %v645, 0.01
      %v902 = vmul.f32 %v650, 0.01
      %v903 = vmul.f32 %v653, 0.01
      %v904 = vmul.f32 %v658, 0.01
      %v905 = vmul.f32 %v661, 0.01
      %v906 = vmul.f32 %v666, 0.01
      %v907 = vmul.f32 %v669, 0.01
      %v908 = vmul.f32 %v674, 0.01
      %v909 = vmul.f32 %v677, 0.01
      %v910 = vmul.f32 %v682, 0.01
      %v911 = vmul.f32 %v685, 0.01
      %v912 = vmul.f32 %v690, 0.01
      %v913 = vmul.f32 %v693, 0.01
      %v914 = vmul.f32 %v698, 0.01
      %v915 = vmul.f32 %v701, 0.01
      %v916 = vmul.f32 %v706, 0.01
      %v917 = vmul.f32 %v709, 0.01
      %v918 = vmul.f32 %v714, 0.01
      %v919 = vmul.f32 %v717, 0.01
      %v920 = vmul.f32 %v722, 0.01
      %v921 = vmul.f32 %v725, 0.01
      %v922 = vmul.f32 %v730, 0.01
      %v923 = vmul.f32 %v733, 0.01
      %v924 = vmul.f32 %v738, 0.01
      %v925 = vmul.f32 %v741, 0.01
      %v926 = vmul.f32 %v746, 0.01
      %v927 = vmul.f32 %v749, 0.01
      %v928 = vmul.f32 %v754, 0.01
      %v929 = vmul.f32 %v757, 0.01
      %v930 = vmul.f32 %v762, 0.01
      %v931 = vmul.f32 %v765, 0.01
      %v932 = vmul.f32 %v770, 0.01
      %v933 = vmul.f32 %v773, 0.01
      %v934 = vmul.f32 %v778, 0.01
      %v935 = vmul.f32 %v781, 0.01
      %v936 = vmul.f32 %v786, 0.01
      %v937 = vmul.f32 %v789, 0.01
      %v938 = vmul.f32 %v794, 0.01
      %v939 = vmul.f32 %v797, 0.01
      %v940 = vmul.f32 %v802, 0.01
      %v941 = vmul.f32 %v805, 0.01
      %v942 = vmul.f32 %v810, 0.01
      %v943 = vmul.f32 %v813, 0.01
      %v944 = vsel %vm816, %v562, %v880
      %v945 = vsel %vm817, %v565, %v881
      %v946 = vsel %vm818, %v570, %v882
      %v947 = vsel %vm819, %v573, %v883
      %v948 = vsel %vm820, %v578, %v884
      %v949 = vsel %vm821, %v581, %v885
      %v950 = vsel %vm822, %v586, %v886
      %v951 = vsel %vm823, %v589, %v887
      %v952 = vsel %vm824, %v594, %v888
      %v953 = vsel %vm825, %v597, %v889
      %v954 = vsel %vm826, %v602, %v890
      %v955 = vsel %vm827, %v605, %v891
      %v956 = vsel %vm828, %v610, %v892
      %v957 = vsel %vm829, %v613, %v893
      %v958 = vsel %vm830, %v618, %v894
      %v959 = vsel %vm831, %v621, %v895
      %v960 = vsel %vm832, %v626, %v896
      %v961 = vsel %vm833, %v629, %v897
      %v962 = vsel %vm834, %v634, %v898
      %v963 = vsel %vm835, %v637, %v899
      %v964 = vsel %vm836, %v642, %v900
      %v965 = vsel %vm837, %v645, %v901
      %v966 = vsel %vm838, %v650, %v902
      %v967 = vsel %vm839, %v653, %v903
      %v968 = vsel %vm840, %v658, %v904
      %v969 = vsel %vm841, %v661, %v905
      %v970 = vsel %vm842, %v666, %v906
      %v971 = vsel %vm843, %v669, %v907
      %v972 = vsel %vm844, %v674, %v908
      %v973 = vsel %vm845, %v677, %v909
      %v974 = vsel %vm846, %v682, %v910
      %v975 = vsel %vm847, %v685, %v911
      %v976 = vsel %vm848, %v690, %v912
      %v977 = vsel %vm849, %v693, %v913
      %v978 = vsel %vm850, %v698, %v914
      %v979 = vsel %vm851, %v701, %v915
      %v980 = vsel %vm852, %v706, %v916
      %v981 = vsel %vm853, %v709, %v917
      %v982 = vsel %vm854, %v714, %v918
      %v983 = vsel %vm855, %v717, %v919
      %v984 = vsel %vm856, %v722, %v920
      %v985 = vsel %vm857, %v725, %v921
      %v986 = vsel %vm858, %v730, %v922
      %v987 = vsel %vm859, %v733, %v923
      %v988 = vsel %vm860, %v738, %v924
      %v989 = vsel %vm861, %v741, %v925
      %v990 = vsel %vm862, %v746, %v926
      %v991 = vsel %vm863, %v749, %v927
      %v992 = vsel %vm864, %v754, %v928
      %v993 = vsel %vm865, %v757, %v929
      %v994 = vsel %vm866, %v762, %v930
      %v995 = vsel %vm867, %v765, %v931
      %v996 = vsel %vm868, %v770, %v932
      %v997 = vsel %vm869, %v773, %v933
      %v998 = vsel %vm870, %v778, %v934
      %v999 = vsel %vm871, %v781, %v935
      %v1000 = vsel %vm872, %v786, %v936
      %v1001 = vsel %vm873, %v789, %v937
      %v1002 = vsel %vm874, %v794, %v938
      %v1003 = vsel %vm875, %v797, %v939
      %v1004 = vsel %vm876, %v802, %v940
      %v1005 = vsel %vm877, %v805, %v941
      %v1006 = vsel %vm878, %v810, %v942
      %v1007 = vsel %vm879, %v813, %v943
      %v1008 = vpack.c.bf16 %v945, %v944
      %v1009 = vpack.c.bf16 %v947, %v946
      %v1010 = vpack.c.bf16 %v949, %v948
      %v1011 = vpack.c.bf16 %v951, %v950
      %v1012 = vpack.c.bf16 %v953, %v952
      %v1013 = vpack.c.bf16 %v955, %v954
      %v1014 = vpack.c.bf16 %v957, %v956
      %v1015 = vpack.c.bf16 %v959, %v958
      %v1016 = vpack.c.bf16 %v961, %v960
      %v1017 = vpack.c.bf16 %v963, %v962
      %v1018 = vpack.c.bf16 %v965, %v964
      %v1019 = vpack.c.bf16 %v967, %v966
      %v1020 = vpack.c.bf16 %v969, %v968
      %v1021 = vpack.c.bf16 %v971, %v970
      %v1022 = vpack.c.bf16 %v973, %v972
      %v1023 = vpack.c.bf16 %v975, %v974
      %v1024 = vpack.c.bf16 %v977, %v976
      %v1025 = vpack.c.bf16 %v979, %v978
      %v1026 = vpack.c.bf16 %v981, %v980
      %v1027 = vpack.c.bf16 %v983, %v982
      %v1028 = vpack.c.bf16 %v985, %v984
      %v1029 = vpack.c.bf16 %v987, %v986
      %v1030 = vpack.c.bf16 %v989, %v988
      %v1031 = vpack.c.bf16 %v991, %v990
      %v1032 = vpack.c.bf16 %v993, %v992
      %v1033 = vpack.c.bf16 %v995, %v994
      %v1034 = vpack.c.bf16 %v997, %v996
      %v1035 = vpack.c.bf16 %v999, %v998
      %v1036 = vpack.c.bf16 %v1001, %v1000
      %v1037 = vpack.c.bf16 %v1003, %v1002
      %v1038 = vpack.c.bf16 %v1005, %v1004
      %v1039 = vpack.c.bf16 %v1007, %v1006
      %v1072 = vunpack.c.l.b16 %v1008
      %v1073 = vunpack.c.h.b16 %v1008
      %v1074 = vunpack.c.l.b16 %v1009
      %v1075 = vunpack.c.h.b16 %v1009
      %v1076 = vunpack.c.l.b16 %v1010
      %v1077 = vunpack.c.h.b16 %v1010
      %v1078 = vunpack.c.l.b16 %v1011
      %v1079 = vunpack.c.h.b16 %v1011
      %v1080 = vunpack.c.l.b16 %v1012
      %v1081 = vunpack.c.h.b16 %v1012
      %v1082 = vunpack.c.l.b16 %v1013
      %v1083 = vunpack.c.h.b16 %v1013
      %v1084 = vunpack.c.l.b16 %v1014
      %v1085 = vunpack.c.h.b16 %v1014
      %v1086 = vunpack.c.l.b16 %v1015
      %v1087 = vunpack.c.h.b16 %v1015
      %v1088 = vunpack.c.l.b16 %v1016
      %v1089 = vunpack.c.h.b16 %v1016
      %v1090 = vunpack.c.l.b16 %v1017
      %v1091 = vunpack.c.h.b16 %v1017
      %v1092 = vunpack.c.l.b16 %v1018
      %v1093 = vunpack.c.h.b16 %v1018
      %v1094 = vunpack.c.l.b16 %v1019
      %v1095 = vunpack.c.h.b16 %v1019
      %v1096 = vunpack.c.l.b16 %v1020
      %v1097 = vunpack.c.h.b16 %v1020
      %v1098 = vunpack.c.l.b16 %v1021
      %v1099 = vunpack.c.h.b16 %v1021
      %v1100 = vunpack.c.l.b16 %v1022
      %v1101 = vunpack.c.h.b16 %v1022
      %v1102 = vunpack.c.l.b16 %v1023
      %v1103 = vunpack.c.h.b16 %v1023
      %v1104 = vunpack.c.l.b16 %v1024
      %v1105 = vunpack.c.h.b16 %v1024
      %v1106 = vunpack.c.l.b16 %v1025
      %v1107 = vunpack.c.h.b16 %v1025
      %v1108 = vunpack.c.l.b16 %v1026
      %v1109 = vunpack.c.h.b16 %v1026
      %v1110 = vunpack.c.l.b16 %v1027
      %v1111 = vunpack.c.h.b16 %v1027
      %v1112 = vunpack.c.l.b16 %v1028
      %v1113 = vunpack.c.h.b16 %v1028
      %v1114 = vunpack.c.l.b16 %v1029
      %v1115 = vunpack.c.h.b16 %v1029
      %v1116 = vunpack.c.l.b16 %v1030
      %v1117 = vunpack.c.h.b16 %v1030
      %v1118 = vunpack.c.l.b16 %v1031
      %v1119 = vunpack.c.h.b16 %v1031
      %v1120 = vunpack.c.l.b16 %v1032
      %v1121 = vunpack.c.h.b16 %v1032
      %v1122 = vunpack.c.l.b16 %v1033
      %v1123 = vunpack.c.h.b16 %v1033
      %v1124 = vunpack.c.l.b16 %v1034
      %v1125 = vunpack.c.h.b16 %v1034
      %v1126 = vunpack.c.l.b16 %v1035
      %v1127 = vunpack.c.h.b16 %v1035
      %v1128 = vunpack.c.l.b16 %v1036
      %v1129 = vunpack.c.h.b16 %v1036
      %v1130 = vunpack.c.l.b16 %v1037
      %v1131 = vunpack.c.h.b16 %v1037
      %v1132 = vunpack.c.l.b16 %v1038
      %v1133 = vunpack.c.h.b16 %v1038
      %v1134 = vunpack.c.l.b16 %v1039
      %v1135 = vunpack.c.h.b16 %v1039
      %v1136 = vpack.c.b16 %v1072, %v1072
      %v1137 = vpack.c.b16 %v1073, %v1073
      %v1138 = vpack.c.b16 %v1074, %v1074
      %v1139 = vpack.c.b16 %v1075, %v1075
      %v1140 = vpack.c.b16 %v1076, %v1076
      %v1141 = vpack.c.b16 %v1077, %v1077
      %v1142 = vpack.c.b16 %v1078, %v1078
      %v1143 = vpack.c.b16 %v1079, %v1079
      %v1144 = vpack.c.b16 %v1080, %v1080
      %v1145 = vpack.c.b16 %v1081, %v1081
      %v1146 = vpack.c.b16 %v1082, %v1082
      %v1147 = vpack.c.b16 %v1083, %v1083
      %v1148 = vpack.c.b16 %v1084, %v1084
      %v1149 = vpack.c.b16 %v1085, %v1085
      %v1150 = vpack.c.b16 %v1086, %v1086
      %v1151 = vpack.c.b16 %v1087, %v1087
      %v1152 = vpack.c.b16 %v1088, %v1088
      %v1153 = vpack.c.b16 %v1089, %v1089
      %v1154 = vpack.c.b16 %v1090, %v1090
      %v1155 = vpack.c.b16 %v1091, %v1091
      %v1156 = vpack.c.b16 %v1092, %v1092
      %v1157 = vpack.c.b16 %v1093, %v1093
      %v1158 = vpack.c.b16 %v1094, %v1094
      %v1159 = vpack.c.b16 %v1095, %v1095
      %v1160 = vpack.c.b16 %v1096, %v1096
      %v1161 = vpack.c.b16 %v1097, %v1097
      %v1162 = vpack.c.b16 %v1098, %v1098
      %v1163 = vpack.c.b16 %v1099, %v1099
      %v1164 = vpack.c.b16 %v1100, %v1100
      %v1165 = vpack.c.b16 %v1101, %v1101
      %v1166 = vpack.c.b16 %v1102, %v1102
      %v1167 = vpack.c.b16 %v1103, %v1103
      %v1168 = vpack.c.b16 %v1104, %v1104
      %v1169 = vpack.c.b16 %v1105, %v1105
      %v1170 = vpack.c.b16 %v1106, %v1106
      %v1171 = vpack.c.b16 %v1107, %v1107
      %v1172 = vpack.c.b16 %v1108, %v1108
      %v1173 = vpack.c.b16 %v1109, %v1109
      %v1174 = vpack.c.b16 %v1110, %v1110
      %v1175 = vpack.c.b16 %v1111, %v1111
      %v1176 = vpack.c.b16 %v1112, %v1112
      %v1177 = vpack.c.b16 %v1113, %v1113
      %v1178 = vpack.c.b16 %v1114, %v1114
      %v1179 = vpack.c.b16 %v1115, %v1115
      %v1180 = vpack.c.b16 %v1116, %v1116
      %v1181 = vpack.c.b16 %v1117, %v1117
      %v1182 = vpack.c.b16 %v1118, %v1118
      %v1183 = vpack.c.b16 %v1119, %v1119
      %v1184 = vpack.c.b16 %v1120, %v1120
      %v1185 = vpack.c.b16 %v1121, %v1121
      %v1186 = vpack.c.b16 %v1122, %v1122
      %v1187 = vpack.c.b16 %v1123, %v1123
      %v1188 = vpack.c.b16 %v1124, %v1124
      %v1189 = vpack.c.b16 %v1125, %v1125
      %v1190 = vpack.c.b16 %v1126, %v1126
      %v1191 = vpack.c.b16 %v1127, %v1127
      %v1192 = vpack.c.b16 %v1128, %v1128
      %v1193 = vpack.c.b16 %v1129, %v1129
      %v1194 = vpack.c.b16 %v1130, %v1130
      %v1195 = vpack.c.b16 %v1131, %v1131
      %v1196 = vpack.c.b16 %v1132, %v1132
      %v1197 = vpack.c.b16 %v1133, %v1133
      %v1198 = vpack.c.b16 %v1134, %v1134
      %v1199 = vpack.c.b16 %v1135, %v1135
      %vm1264 = vcmask 60416
      %1265 = vst.msk [vmem:[%s172] sm:$0xf] %vm1264, %v1136
      %1266 = vst.msk [vmem:[%s172 + $0x4] sm:$0xf] %vm1264, %v1137
      %1267 = vst.msk [vmem:[%s172 + $0x8] sm:$0xf] %vm1264, %v1138
      %1268 = vst.msk [vmem:[%s172 + $0xc] sm:$0xf] %vm1264, %v1139
      %1269 = vst.msk [vmem:[%s172 + $0x10] sm:$0xf] %vm1264, %v1140
      %1270 = vst.msk [vmem:[%s172 + $0x14] sm:$0xf] %vm1264, %v1141
      %1271 = vst.msk [vmem:[%s172 + $0x18] sm:$0xf] %vm1264, %v1142
      %1272 = vst.msk [vmem:[%s172 + $0x1c] sm:$0xf] %vm1264, %v1143
      %1273 = vst.msk [vmem:[%s172 + $0x20] sm:$0xf] %vm1264, %v1144
      %1274 = vst.msk [vmem:[%s172 + $0x24] sm:$0xf] %vm1264, %v1145
      %1275 = vst.msk [vmem:[%s172 + $0x28] sm:$0xf] %vm1264, %v1146
      %1276 = vst.msk [vmem:[%s172 + $0x2c] sm:$0xf] %vm1264, %v1147
      %1277 = vst.msk [vmem:[%s172 + $0x30] sm:$0xf] %vm1264, %v1148
      %1278 = vst.msk [vmem:[%s172 + $0x34] sm:$0xf] %vm1264, %v1149
      %1279 = vst.msk [vmem:[%s172 + $0x38] sm:$0xf] %vm1264, %v1150
      %1280 = vst.msk [vmem:[%s172 + $0x3c] sm:$0xf] %vm1264, %v1151
      %1281 = vst.msk [vmem:[%s172 + $0x40] sm:$0xf] %vm1264, %v1152
      %1282 = vst.msk [vmem:[%s172 + $0x44] sm:$0xf] %vm1264, %v1153
      %1283 = vst.msk [vmem:[%s172 + $0x48] sm:$0xf] %vm1264, %v1154
      %1284 = vst.msk [vmem:[%s172 + $0x4c] sm:$0xf] %vm1264, %v1155
      %1285 = vst.msk [vmem:[%s172 + $0x50] sm:$0xf] %vm1264, %v1156
      %1286 = vst.msk [vmem:[%s172 + $0x54] sm:$0xf] %vm1264, %v1157
      %1287 = vst.msk [vmem:[%s172 + $0x58] sm:$0xf] %vm1264, %v1158
      %1288 = vst.msk [vmem:[%s172 + $0x5c] sm:$0xf] %vm1264, %v1159
      %1289 = vst.msk [vmem:[%s172 + $0x60] sm:$0xf] %vm1264, %v1160
      %1290 = vst.msk [vmem:[%s172 + $0x64] sm:$0xf] %vm1264, %v1161
      %1291 = vst.msk [vmem:[%s172 + $0x68] sm:$0xf] %vm1264, %v1162
      %1292 = vst.msk [vmem:[%s172 + $0x6c] sm:$0xf] %vm1264, %v1163
      %1293 = vst.msk [vmem:[%s172 + $0x70] sm:$0xf] %vm1264, %v1164
      %1294 = vst.msk [vmem:[%s172 + $0x74] sm:$0xf] %vm1264, %v1165
      %1295 = vst.msk [vmem:[%s172 + $0x78] sm:$0xf] %vm1264, %v1166
      %1296 = vst.msk [vmem:[%s172 + $0x7c] sm:$0xf] %vm1264, %v1167
      %1297 = vst.msk [vmem:[%s172 + $0x80] sm:$0xf] %vm1264, %v1168
      %1298 = vst.msk [vmem:[%s172 + $0x84] sm:$0xf] %vm1264, %v1169
      %1299 = vst.msk [vmem:[%s172 + $0x88] sm:$0xf] %vm1264, %v1170
      %1300 = vst.msk [vmem:[%s172 + $0x8c] sm:$0xf] %vm1264, %v1171
      %1301 = vst.msk [vmem:[%s172 + $0x90] sm:$0xf] %vm1264, %v1172
      %1302 = vst.msk [vmem:[%s172 + $0x94] sm:$0xf] %vm1264, %v1173
      %1303 = vst.msk [vmem:[%s172 + $0x98] sm:$0xf] %vm1264, %v1174
      %1304 = vst.msk [vmem:[%s172 + $0x9c] sm:$0xf] %vm1264, %v1175
      %1305 = vst.msk [vmem:[%s172 + $0xa0] sm:$0xf] %vm1264, %v1176
      %1306 = vst.msk [vmem:[%s172 + $0xa4] sm:$0xf] %vm1264, %v1177
      %1307 = vst.msk [vmem:[%s172 + $0xa8] sm:$0xf] %vm1264, %v1178
      %1308 = vst.msk [vmem:[%s172 + $0xac] sm:$0xf] %vm1264, %v1179
      %1309 = vst.msk [vmem:[%s172 + $0xb0] sm:$0xf] %vm1264, %v1180
      %1310 = vst.msk [vmem:[%s172 + $0xb4] sm:$0xf] %vm1264, %v1181
      %1311 = vst.msk [vmem:[%s172 + $0xb8] sm:$0xf] %vm1264, %v1182
      %1312 = vst.msk [vmem:[%s172 + $0xbc] sm:$0xf] %vm1264, %v1183
      %1313 = vst.msk [vmem:[%s172 + $0xc0] sm:$0xf] %vm1264, %v1184
      %1314 = vst.msk [vmem:[%s172 + $0xc4] sm:$0xf] %vm1264, %v1185
      %1315 = vst.msk [vmem:[%s172 + $0xc8] sm:$0xf] %vm1264, %v1186
      %1316 = vst.msk [vmem:[%s172 + $0xcc] sm:$0xf] %vm1264, %v1187
      %1317 = vst.msk [vmem:[%s172 + $0xd0] sm:$0xf] %vm1264, %v1188
      %1318 = vst.msk [vmem:[%s172 + $0xd4] sm:$0xf] %vm1264, %v1189
      %1319 = vst.msk [vmem:[%s172 + $0xd8] sm:$0xf] %vm1264, %v1190
      %1320 = vst.msk [vmem:[%s172 + $0xdc] sm:$0xf] %vm1264, %v1191
      %1321 = vst.msk [vmem:[%s172 + $0xe0] sm:$0xf] %vm1264, %v1192
      %1322 = vst.msk [vmem:[%s172 + $0xe4] sm:$0xf] %vm1264, %v1193
      %1323 = vst.msk [vmem:[%s172 + $0xe8] sm:$0xf] %vm1264, %v1194
      %1324 = vst.msk [vmem:[%s172 + $0xec] sm:$0xf] %vm1264, %v1195
      %1325 = vst.msk [vmem:[%s172 + $0xf0] sm:$0xf] %vm1264, %v1196
      %1326 = vst.msk [vmem:[%s172 + $0xf4] sm:$0xf] %vm1264, %v1197
      %1327 = vst.msk [vmem:[%s172 + $0xf8] sm:$0xf] %vm1264, %v1198
      %1328 = vst.msk [vmem:[%s172 + $0xfc] sm:$0xf] %vm1264, %v1199
      %s1329 = smul.u32 64, %s14
      %p1330 = scmp.lt.s32.totalorder %s1329, 575
      %s1331 = scalar_select %p1330, %s1329, 575
      %s1332 = smul.addr %s1331, 4
      %s1333 = scalar_lea.vmem %s3, %s1332
      // Predicated region
      $region33: #{forward.5} parent=31 // pred_check
        %p1334 = pneg %p100
      $region34: #{forward.5} parent=31 // pred_check_branch
        %1336 = sbr.rel (%p1334) target = $region36
      $region35: #{forward.5} parent=31 // pred_region
        %s1337 = smul.u32 64, %s14
      $region36: #{forward.5} parent=31 // pred_fallthru
        _
    $region32: #{forward.5} parent=5 // pred_fallthru
      _
    %p1338 = scmp.le.s32.totalorder 2, %s9
    // Predicated region
    $region37: #{forward.5} parent=5 // pred_check
      %p1339 = pneg %p1338
    $region38: #{forward.5} parent=5 // pred_check_branch
      %1341 = sbr.rel (%p1339) target = $region40
    $region39: #{forward.5} parent=5 // pred_region
      %s1342 = ssub.s32 %s9, 2
      // Predicated region
      $region41: #{forward.5} parent=39 // pred_check
        %p1343 = pneg %p106
      $region42: #{forward.5} parent=39 // pred_check_branch
        %1345 = sbr.rel (%p1343) target = $region44
      $region43: #{forward.5} parent=39 // pred_region
        %s1346 = smul.u32 64, %s15
        %p1347 = scmp.lt.s32.totalorder %s1346, 575
        %s1348 = scalar_select %p1347, %s1346, 575
        %s1349 = smul.addr %s1348, 4
        %s1350 = scalar_lea.vmem %s3, %s1349
      $region44: #{forward.5} parent=39 // pred_fallthru
        _
    $region40: #{forward.5} parent=5 // pred_fallthru
      _
  $region6: #{forward.5} parent=0 // loop_footer
    %s13 = sadd.s32 1, %s9
  $region7: #{forward.5} parent=0 // loop_footer_branch
    %8 = sbr.rel target = $region3
  $region8: #{forward.5} parent=0 // loop_exit
    _

// kernel: forward.6
$region0: #{forward.6}
  #allocation0 [shape = 'u32[]', space=smem, size = 0x4, offset = 0x4, fixed_abs, tag = 'smem constant byte address 0x4 - core index']
  #allocation1 [shape = 'u32[144,128]{1,0:T(1,128)}', space=vmem, size = 0x12000, scoped, tag = 'internal scratch']
  %s0 = inlined_call_operand.vmem [shape: bf16[1152,72], index: 0, kind: input, shape index: {}]
  %s1 = inlined_call_operand.vmem [shape: bf16[72,16], index: 1, kind: input, shape index: {}]
  %s2 = inlined_call_operand.vmem [shape: f32[1,16], index: 2, kind: input, shape index: {}]
  %s3 = inlined_call_operand.vmem [shape: bf16[1152,16], index: 3, kind: output, shape index: {}]
  %s4 = sld [smem:[#allocation0]]
  $region45: #{forward.6} parent=0
    _
  %s6 = ssub.s32 1, %s4
  %s7 = scalar_select 0, %s6, %s4
  loop: start=0, step=1, limit=5
  $region2: #{forward.6} parent=0 // loop_pre_header
    _
  $region3: #{forward.6} parent=0 // loop_header
    %s9 = sphi 0, %s13
    %p10 = scmp.ge.s32.totalorder %s9, 5
    %s19 = sphi 0, %s21
    %s22 = sphi 0, %s19
    %s23 = sphi 0, %s22
    %s39 = sphi 0, %s23
    %s43 = sphi 0, %s43
    %s45 = sphi 0, %s43
    %s46 = sphi 0, %s45
    %s60 = sphi 0, %s46
    %s64 = sphi 0, %s64
    %s66 = sphi 0, %s64
    %s67 = sphi 0, %s66
    %s81 = sphi 0, %s67
    %s87 = sphi 0, %s89
    %s90 = sphi 0, %s87
    %s91 = sphi 0, %s90
    %s107 = sphi 0, %s91
  $region4: #{forward.6} parent=0 // loop_header_branch
    %12 = sbr.rel (%p10) target = $region8
  $region5: #{forward.6} parent=0 // loop_body
    %s14 = ssub.s32 %s9, 1
    %s15 = ssub.s32 %s9, 2
    %s16 = sadd.s32 %s9, 1
    %s17 = ssub.s32 %s9, %s16
    %p18 = scmp.eq.s32.totalorder %s17, 0
    %s20 = sadd.s32 %s19, 1
    %s21 = scalar_select %p18, %s19, %s20
    %p24 = pneg %p18
    %p25 = scmp.eq.s32.totalorder %s9, 2
    %p26 = por %p24, %p25
    %p27 = scmp.ne.s32.totalorder %s19, %s22
    %p28 = scmp.eq.s32.totalorder %s9, 0
    %p29 = por %p27, %p28
    %p30 = scmp.ne.s32.totalorder %s19, %s22
    %p31 = scmp.eq.s32.totalorder %s14, 2
    %p32 = por %p30, %p31
    %p33 = scmp.ne.s32.totalorder %s22, %s23
    %p34 = scmp.eq.s32.totalorder %s14, 0
    %p35 = por %p33, %p34
    %p36 = scmp.ne.s32.totalorder %s22, %s23
    %p37 = scmp.eq.s32.totalorder %s15, 2
    %p38 = por %p36, %p37
    %p40 = scmp.ne.s32.totalorder %s23, %s39
    %p41 = scmp.eq.s32.totalorder %s15, 0
    %p42 = por %p40, %p41
    %s44 = sadd.s32 %s43, 1
    %p47 = scmp.eq.s32.totalorder %s9, 2
    %p48 = scmp.ne.s32.totalorder %s43, %s45
    %p49 = scmp.eq.s32.totalorder %s9, 0
    %p50 = por %p48, %p49
    %p51 = scmp.ne.s32.totalorder %s43, %s45
    %p52 = scmp.eq.s32.totalorder %s14, 2
    %p53 = por %p51, %p52
    %p54 = scmp.ne.s32.totalorder %s45, %s46
    %p55 = scmp.eq.s32.totalorder %s14, 0
    %p56 = por %p54, %p55
    %p57 = scmp.ne.s32.totalorder %s45, %s46
    %p58 = scmp.eq.s32.totalorder %s15, 2
    %p59 = por %p57, %p58
    %p61 = scmp.ne.s32.totalorder %s46, %s60
    %p62 = scmp.eq.s32.totalorder %s15, 0
    %p63 = por %p61, %p62
    %s65 = sadd.s32 %s64, 1
    %p68 = scmp.eq.s32.totalorder %s9, 2
    %p69 = scmp.ne.s32.totalorder %s64, %s66
    %p70 = scmp.eq.s32.totalorder %s9, 0
    %p71 = por %p69, %p70
    %p72 = scmp.ne.s32.totalorder %s64, %s66
    %p73 = scmp.eq.s32.totalorder %s14, 2
    %p74 = por %p72, %p73
    %p75 = scmp.ne.s32.totalorder %s66, %s67
    %p76 = scmp.eq.s32.totalorder %s14, 0
    %p77 = por %p75, %p76
    %p78 = scmp.ne.s32.totalorder %s66, %s67
    %p79 = scmp.eq.s32.totalorder %s15, 2
    %p80 = por %p78, %p79
    %p82 = scmp.ne.s32.totalorder %s67, %s81
    %p83 = scmp.eq.s32.totalorder %s15, 0
    %p84 = por %p82, %p83
    %s85 = ssub.s32 %s9, %s16
    %p86 = scmp.eq.s32.totalorder %s85, 0
    %s88 = sadd.s32 %s87, 1
    %s89 = scalar_select %p86, %s87, %s88
    %p92 = pneg %p86
    %p93 = scmp.eq.s32.totalorder %s9, 2
    %p94 = por %p92, %p93
    %p95 = scmp.ne.s32.totalorder %s87, %s90
    %p96 = scmp.eq.s32.totalorder %s9, 0
    %p97 = por %p95, %p96
    %p98 = scmp.ne.s32.totalorder %s87, %s90
    %p99 = scmp.eq.s32.totalorder %s14, 2
    %p100 = por %p98, %p99
    %p101 = scmp.ne.s32.totalorder %s90, %s91
    %p102 = scmp.eq.s32.totalorder %s14, 0
    %p103 = por %p101, %p102
    %p104 = scmp.ne.s32.totalorder %s90, %s91
    %p105 = scmp.eq.s32.totalorder %s15, 2
    %p106 = por %p104, %p105
    %p108 = scmp.ne.s32.totalorder %s91, %s107
    %p109 = scmp.eq.s32.totalorder %s15, 0
    %p110 = por %p108, %p109
    %p111 = scmp.le.s32.totalorder 1, %s9
    %p112 = scmp.lt.s32.totalorder %s9, 4
    %p113 = pnand %p111, %p112
    %p114 = pneg %p113
    // Predicated region
    $region9: #{forward.6} parent=5 // pred_check
      _
    $region10: #{forward.6} parent=5 // pred_check_branch
      %116 = sbr.rel (%p113) target = $region12
    $region11: #{forward.6} parent=5 // pred_region
      %s117 = ssub.s32 %s9, 1
      // Predicated region
      $region13: #{forward.6} parent=11 // pred_check
        %p118 = pneg %p56
      $region14: #{forward.6} parent=11 // pred_check_branch
        %120 = sbr.rel (%p118) target = $region16
      $region15: #{forward.6} parent=11 // pred_region
        _
      $region16: #{forward.6} parent=11 // pred_fallthru
        _
      // Predicated region
      $region17: #{forward.6} parent=11 // pred_check
        %p121 = pneg %p77
      $region18: #{forward.6} parent=11 // pred_check_branch
        %123 = sbr.rel (%p121) target = $region20
      $region19: #{forward.6} parent=11 // pred_region
        _
      $region20: #{forward.6} parent=11 // pred_fallthru
        _
    $region12: #{forward.6} parent=5 // pred_fallthru
      _
    %p124 = scmp.lt.s32.totalorder %s9, 3
    // Predicated region
    $region21: #{forward.6} parent=5 // pred_check
      %p125 = pneg %p124
    $region22: #{forward.6} parent=5 // pred_check_branch
      %127 = sbr.rel (%p125) target = $region24
    $region23: #{forward.6} parent=5 // pred_region
      // Predicated region
      $region25: #{forward.6} parent=23 // pred_check
        %p128 = pneg %p29
      $region26: #{forward.6} parent=23 // pred_check_branch
        %130 = sbr.rel (%p128) target = $region28
      $region27: #{forward.6} parent=23 // pred_region
        %s131 = smul.u32 48, %s9
        %p132 = scmp.lt.s32.totalorder %s131, 143
        %s133 = scalar_select %p132, %s131, 143
        %s134 = smul.addr %s133, 4
        %s135 = scalar_lea.vmem %s0, %s134
        %s136 = smul.u32 48, %s9
      $region28: #{forward.6} parent=23 // pred_fallthru
        _
    $region24: #{forward.6} parent=5 // pred_fallthru
      _
    %p137 = scmp.le.s32.totalorder 1, %s9
    %p138 = scmp.lt.s32.totalorder %s9, 4
    %p139 = pnand %p137, %p138
    %p140 = pneg %p139
    // Predicated region
    $region29: #{forward.6} parent=5 // pred_check
      _
    $region30: #{forward.6} parent=5 // pred_check_branch
      %142 = sbr.rel (%p139) target = $region32
    $region31: #{forward.6} parent=5 // pred_region
      %s143 = ssub.s32 %s9, 1
      %s144 = smul.u32 48, %s14
      %p145 = scmp.lt.s32.totalorder %s144, 143
      %s146 = scalar_select %p145, %s144, 143
      %s147 = smul.addr %s146, 4
      %s148 = scalar_lea.vmem %s0, %s147
      %p149 = pneg %p35
      %p150 = pneg %p32
      %p151 = pneg %p56
      %p152 = pneg %p53
      %p153 = pneg %p77
      %p154 = pneg %p74
      %p155 = pneg %p103
      %p156 = pneg %p100
      %s157 = smul.u32 48, %s14
      %p158 = scmp.lt.s32.totalorder %s157, 143
      %s159 = scalar_select %p158, %s157, 143
      %s160 = smul.addr %s159, 4
      %s161 = scalar_lea.vmem %s3, %s160
      %s162 = smul.u32 48, %s14
      %p163 = scmp.lt.s32.totalorder %s162, 143
      %s164 = scalar_select %p163, %s162, 143
      %s165 = smul.addr %s164, 4
      %s166 = scalar_lea.vmem %s0, %s165
      %s167 = smul.u32 48, %s14
      %s168 = smul.u32 48, %s14
      %p169 = scmp.lt.s32.totalorder %s168, 143
      %s170 = scalar_select %p169, %s168, 143
      %s171 = smul.addr %s170, 4
      %s172 = scalar_lea.vmem %s3, %s171
      %s173 = smul.u32 48, %s14
      %v175 = vld [vmem:[%s166] sm:$0xf]
      %v176 = vld [vmem:[%s166 + $0x4] sm:$0xf]
      %v177 = vld [vmem:[%s166 + $0x8] sm:$0xf]
      %v178 = vld [vmem:[%s166 + $0xc] sm:$0xf]
      %v179 = vld [vmem:[%s166 + $0x10] sm:$0xf]
      %v180 = vld [vmem:[%s166 + $0x14] sm:$0xf]
      %v181 = vld [vmem:[%s166 + $0x18] sm:$0xf]
      %v182 = vld [vmem:[%s166 + $0x1c] sm:$0xf]
      %v183 = vld [vmem:[%s166 + $0x20] sm:$0xf]
      %v184 = vld [vmem:[%s166 + $0x24] sm:$0xf]
      %v185 = vld [vmem:[%s166 + $0x28] sm:$0xf]
      %v186 = vld [vmem:[%s166 + $0x2c] sm:$0xf]
      %v187 = vld [vmem:[%s166 + $0x30] sm:$0xf]
      %v188 = vld [vmem:[%s166 + $0x34] sm:$0xf]
      %v189 = vld [vmem:[%s166 + $0x38] sm:$0xf]
      %v190 = vld [vmem:[%s166 + $0x3c] sm:$0xf]
      %v191 = vld [vmem:[%s166 + $0x40] sm:$0xf]
      %v192 = vld [vmem:[%s166 + $0x44] sm:$0xf]
      %v193 = vld [vmem:[%s166 + $0x48] sm:$0xf]
      %v194 = vld [vmem:[%s166 + $0x4c] sm:$0xf]
      %v195 = vld [vmem:[%s166 + $0x50] sm:$0xf]
      %v196 = vld [vmem:[%s166 + $0x54] sm:$0xf]
      %v197 = vld [vmem:[%s166 + $0x58] sm:$0xf]
      %v198 = vld [vmem:[%s166 + $0x5c] sm:$0xf]
      %v199 = vld [vmem:[%s166 + $0x60] sm:$0xf]
      %v200 = vld [vmem:[%s166 + $0x64] sm:$0xf]
      %v201 = vld [vmem:[%s166 + $0x68] sm:$0xf]
      %v202 = vld [vmem:[%s166 + $0x6c] sm:$0xf]
      %v203 = vld [vmem:[%s166 + $0x70] sm:$0xf]
      %v204 = vld [vmem:[%s166 + $0x74] sm:$0xf]
      %v205 = vld [vmem:[%s166 + $0x78] sm:$0xf]
      %v206 = vld [vmem:[%s166 + $0x7c] sm:$0xf]
      %v207 = vld [vmem:[%s166 + $0x80] sm:$0xf]
      %v208 = vld [vmem:[%s166 + $0x84] sm:$0xf]
      %v209 = vld [vmem:[%s166 + $0x88] sm:$0xf]
      %v210 = vld [vmem:[%s166 + $0x8c] sm:$0xf]
      %v211 = vld [vmem:[%s166 + $0x90] sm:$0xf]
      %v212 = vld [vmem:[%s166 + $0x94] sm:$0xf]
      %v213 = vld [vmem:[%s166 + $0x98] sm:$0xf]
      %v214 = vld [vmem:[%s166 + $0x9c] sm:$0xf]
      %v215 = vld [vmem:[%s166 + $0xa0] sm:$0xf]
      %v216 = vld [vmem:[%s166 + $0xa4] sm:$0xf]
      %v217 = vld [vmem:[%s166 + $0xa8] sm:$0xf]
      %v218 = vld [vmem:[%s166 + $0xac] sm:$0xf]
      %v219 = vld [vmem:[%s166 + $0xb0] sm:$0xf]
      %v220 = vld [vmem:[%s166 + $0xb4] sm:$0xf]
      %v221 = vld [vmem:[%s166 + $0xb8] sm:$0xf]
      %v222 = vld [vmem:[%s166 + $0xbc] sm:$0xf]
      %v223 = vld [vmem:[%s1] sm:$0xf]
      %v224 = vld [vmem:[%s1 + $0x4] sm:$0xf]
      %v225 = vld [vmem:[%s1 + $0x8] sm:$0xf]
      %v226 = vld [vmem:[%s1 + $0xc] sm:$0xf]
      %v227 = vld [vmem:[%s1 + $0x10] sm:$0xf]
      %v228 = vld [vmem:[%s1 + $0x14] sm:$0xf]
      %v229 = vld [vmem:[%s1 + $0x18] sm:$0xf]
      %v230 = vld [vmem:[%s1 + $0x1c] sm:$0xf]
      %v231 = vld [vmem:[%s1 + $0x20] sm:$0xf]
      %v232 = vld [vmem:[%s2] sm:$0x1]
      %v234 = vlaneseq
      %v235 = vshrl.u32 %v234, 7
      %v236 = vsub.s32 0, %v235
      %v237 = vrot.slane %v232, %v236
      %v287 = vunpack.c.l.b16 %v175
      %v288 = vunpack.c.l.b16 %v176
      %v289 = vunpack.c.l.b16 %v177
      %v290 = vunpack.c.l.b16 %v178
      %v291 = vunpack.c.l.b16 %v179
      %v292 = vunpack.c.l.b16 %v180
      %v293 = vunpack.c.l.b16 %v181
      %v294 = vunpack.c.l.b16 %v182
      %v295 = vunpack.c.l.b16 %v183
      %v296 = vunpack.c.l.b16 %v184
      %v297 = vunpack.c.l.b16 %v185
      %v298 = vunpack.c.l.b16 %v186
      %v299 = vunpack.c.l.b16 %v187
      %v300 = vunpack.c.l.b16 %v188
      %v301 = vunpack.c.l.b16 %v189
      %v302 = vunpack.c.l.b16 %v190
      %v303 = vunpack.c.l.b16 %v191
      %v304 = vunpack.c.l.b16 %v192
      %v305 = vunpack.c.l.b16 %v193
      %v306 = vunpack.c.l.b16 %v194
      %v307 = vunpack.c.l.b16 %v195
      %v308 = vunpack.c.l.b16 %v196
      %v309 = vunpack.c.l.b16 %v197
      %v310 = vunpack.c.l.b16 %v198
      %v311 = vunpack.c.l.b16 %v199
      %v312 = vunpack.c.l.b16 %v200
      %v313 = vunpack.c.l.b16 %v201
      %v314 = vunpack.c.l.b16 %v202
      %v315 = vunpack.c.l.b16 %v203
      %v316 = vunpack.c.l.b16 %v204
      %v317 = vunpack.c.l.b16 %v205
      %v318 = vunpack.c.l.b16 %v206
      %v319 = vunpack.c.l.b16 %v207
      %v320 = vunpack.c.l.b16 %v208
      %v321 = vunpack.c.l.b16 %v209
      %v322 = vunpack.c.l.b16 %v210
      %v323 = vunpack.c.l.b16 %v211
      %v324 = vunpack.c.l.b16 %v212
      %v325 = vunpack.c.l.b16 %v213
      %v326 = vunpack.c.l.b16 %v214
      %v327 = vunpack.c.l.b16 %v215
      %v328 = vunpack.c.l.b16 %v216
      %v329 = vunpack.c.l.b16 %v217
      %v330 = vunpack.c.l.b16 %v218
      %v331 = vunpack.c.l.b16 %v219
      %v332 = vunpack.c.l.b16 %v220
      %v333 = vunpack.c.l.b16 %v221
      %v334 = vunpack.c.l.b16 %v222
      %v335 = vpack.c.b16 %v288, %v287
      %v336 = vpack.c.b16 %v290, %v289
      %v337 = vpack.c.b16 %v292, %v291
      %v338 = vpack.c.b16 %v294, %v293
      %v339 = vpack.c.b16 %v296, %v295
      %v340 = vpack.c.b16 %v298, %v297
      %v341 = vpack.c.b16 %v300, %v299
      %v342 = vpack.c.b16 %v302, %v301
      %v343 = vpack.c.b16 %v304, %v303
      %v344 = vpack.c.b16 %v306, %v305
      %v345 = vpack.c.b16 %v308, %v307
      %v346 = vpack.c.b16 %v310, %v309
      %v347 = vpack.c.b16 %v312, %v311
      %v348 = vpack.c.b16 %v314, %v313
      %v349 = vpack.c.b16 %v316, %v315
      %v350 = vpack.c.b16 %v318, %v317
      %v351 = vpack.c.b16 %v320, %v319
      %v352 = vpack.c.b16 %v322, %v321
      %v353 = vpack.c.b16 %v324, %v323
      %v354 = vpack.c.b16 %v326, %v325
      %v355 = vpack.c.b16 %v328, %v327
      %v356 = vpack.c.b16 %v330, %v329
      %v357 = vpack.c.b16 %v332, %v331
      %v358 = vpack.c.b16 %v334, %v333
      %v368 = vunpack.c.l.b16 %v223
      %v369 = vunpack.c.l.b16 %v224
      %v370 = vunpack.c.l.b16 %v225
      %v371 = vunpack.c.l.b16 %v226
      %v372 = vunpack.c.l.b16 %v227
      %v373 = vunpack.c.l.b16 %v228
      %v374 = vunpack.c.l.b16 %v229
      %v375 = vunpack.c.l.b16 %v230
      %v376 = vunpack.c.l.b16 %v231
      %v377 = vpack.c.b16 %v369, %v368
      %v378 = vpack.c.b16 %v371, %v370
      %v379 = vpack.c.b16 %v373, %v372
      %v380 = vpack.c.b16 %v375, %v374
      %v381 = vpack.c.b16 %v376, %v376
      %vm386 = vcmask 588800
      %v388 = vsel %vm386, %v335, 0
      %v391 = vsel %vm386, %v336, 0
      %v394 = vsel %vm386, %v337, 0
      %v397 = vsel %vm386, %v338, 0
      %v400 = vsel %vm386, %v339, 0
      %v403 = vsel %vm386, %v340, 0
      %v406 = vsel %vm386, %v341, 0
      %v409 = vsel %vm386, %v342, 0
      %v412 = vsel %vm386, %v343, 0
      %v415 = vsel %vm386, %v344, 0
      %v418 = vsel %vm386, %v345, 0
      %v421 = vsel %vm386, %v346, 0
      %v424 = vsel %vm386, %v347, 0
      %v427 = vsel %vm386, %v348, 0
      %v430 = vsel %vm386, %v349, 0
      %v433 = vsel %vm386, %v350, 0
      %v436 = vsel %vm386, %v351, 0
      %v439 = vsel %vm386, %v352, 0
      %v442 = vsel %vm386, %v353, 0
      %v445 = vsel %vm386, %v354, 0
      %v448 = vsel %vm386, %v355, 0
      %v451 = vsel %vm386, %v356, 0
      %v454 = vsel %vm386, %v357, 0
      %v457 = vsel %vm386, %v358, 0
      %vm459 = vcmask 1043456
      %v461 = vsel %vm459, %v381, 0
      %463 = vmatprep.subr.bf16.mxu0 0
      %464 = vmatpush1.bf16.msra.mxu0 0
      %465 = vmatprep.subr.bf16.mxu0 0
      %466 = vmatpush1.bf16.msra.mxu0 0
      %467 = vmatprep.subr.bf16.mxu0 0
      %468 = vmatpush1.bf16.msra.mxu0 0
      %469 = vmatprep.subr.bf16.mxu0 0
      %470 = vmatpush1.bf16.msra.mxu0 %v461
      %471 = vmatprep.subr.bf16.mxu0 0
      %472 = vmatpush1.bf16.msra.mxu0 %v380
      %473 = vmatprep.subr.bf16.mxu0 0
      %474 = vmatpush1.bf16.msra.mxu0 %v379
      %475 = vmatprep.subr.bf16.mxu0 0
      %476 = vmatpush1.bf16.msra.mxu0 %v378
      %477 = vmatprep.subr.bf16.mxu0 0
      %478 = vmatpush1.bf16.msra.mxu0 %v377
      %479 = vmatprep.subr.bf16.mxu0 0
      %480 = vmatpush2.bf16.msra.mxu0 0
      %481 = vmatprep.subr.bf16.mxu0 0
      %482 = vmatpush2.bf16.msra.mxu0 0
      %483 = vmatprep.subr.bf16.mxu0 0
      %484 = vmatpush2.bf16.msra.mxu0 0
      %485 = vmatprep.subr.bf16.mxu0 0
      %486 = vmatpush2.bf16.msra.mxu0 0
      %487 = vmatprep.subr.bf16.mxu0 0
      %488 = vmatpush2.bf16.msra.mxu0 0
      %489 = vmatprep.subr.bf16.mxu0 0
      %490 = vmatpush2.bf16.msra.mxu0 0
      %491 = vmatprep.subr.bf16.mxu0 0
      %492 = vmatpush2.bf16.msra.mxu0 0
      %493 = vmatprep.subr.bf16.mxu0 0
      %494 = vmatpush2.bf16.msra.mxu0 0
      %495 = vmatprep.mubr.bf16.mxu0 0
      %496 = vmatmul.mubr.bf16.gmra.mxu0 %v388
      %v497 = vpop.f32.mrf.mxu0
      %v498 = vadd.f32 %v237, %v497
      %v499 = vpop.f32.mrf.mxu0
      %v500 = vpop.f32.mrf.mxu0
      %v501 = vadd.f32 %v237, %v500
      %v502 = vpop.f32.mrf.mxu0
      %503 = vmatprep.mubr.bf16.mxu0 0
      %504 = vmatmul.mubr.bf16.gmra.mxu0 %v391
      %v505 = vpop.f32.mrf.mxu0
      %v506 = vadd.f32 %v237, %v505
      %v507 = vpop.f32.mrf.mxu0
      %v508 = vpop.f32.mrf.mxu0
      %v509 = vadd.f32 %v237, %v508
      %v510 = vpop.f32.mrf.mxu0
      %511 = vmatprep.mubr.bf16.mxu0 0
      %512 = vmatmul.mubr.bf16.gmra.mxu0 %v394
      %v513 = vpop.f32.mrf.mxu0
      %v514 = vadd.f32 %v237, %v513
      %v515 = vpop.f32.mrf.mxu0
      %v516 = vpop.f32.mrf.mxu0
      %v517 = vadd.f32 %v237, %v516
      %v518 = vpop.f32.mrf.mxu0
      %519 = vmatprep.mubr.bf16.mxu0 0
      %520 = vmatmul.mubr.bf16.gmra.mxu0 %v397
      %v521 = vpop.f32.mrf.mxu0
      %v522 = vadd.f32 %v237, %v521
      %v523 = vpop.f32.mrf.mxu0
      %v524 = vpop.f32.mrf.mxu0
      %v525 = vadd.f32 %v237, %v524
      %v526 = vpop.f32.mrf.mxu0
      %527 = vmatprep.mubr.bf16.mxu0 0
      %528 = vmatmul.mubr.bf16.gmra.mxu0 %v400
      %v529 = vpop.f32.mrf.mxu0
      %v530 = vadd.f32 %v237, %v529
      %v531 = vpop.f32.mrf.mxu0
      %v532 = vpop.f32.mrf.mxu0
      %v533 = vadd.f32 %v237, %v532
      %v534 = vpop.f32.mrf.mxu0
      %535 = vmatprep.mubr.bf16.mxu0 0
      %536 = vmatmul.mubr.bf16.gmra.mxu0 %v403
      %v537 = vpop.f32.mrf.mxu0
      %v538 = vadd.f32 %v237, %v537
      %v539 = vpop.f32.mrf.mxu0
      %v540 = vpop.f32.mrf.mxu0
      %v541 = vadd.f32 %v237, %v540
      %v542 = vpop.f32.mrf.mxu0
      %543 = vmatprep.mubr.bf16.mxu0 0
      %544 = vmatmul.mubr.bf16.gmra.mxu0 %v406
      %v545 = vpop.f32.mrf.mxu0
      %v546 = vadd.f32 %v237, %v545
      %v547 = vpop.f32.mrf.mxu0
      %v548 = vpop.f32.mrf.mxu0
      %v549 = vadd.f32 %v237, %v548
      %v550 = vpop.f32.mrf.mxu0
      %551 = vmatprep.mubr.bf16.mxu0 0
      %552 = vmatmul.mubr.bf16.gmra.mxu0 %v409
      %v553 = vpop.f32.mrf.mxu0
      %v554 = vadd.f32 %v237, %v553
      %v555 = vpop.f32.mrf.mxu0
      %v556 = vpop.f32.mrf.mxu0
      %v557 = vadd.f32 %v237, %v556
      %v558 = vpop.f32.mrf.mxu0
      %559 = vmatprep.mubr.bf16.mxu0 0
      %560 = vmatmul.mubr.bf16.gmra.mxu0 %v412
      %v561 = vpop.f32.mrf.mxu0
      %v562 = vadd.f32 %v237, %v561
      %v563 = vpop.f32.mrf.mxu0
      %v564 = vpop.f32.mrf.mxu0
      %v565 = vadd.f32 %v237, %v564
      %v566 = vpop.f32.mrf.mxu0
      %567 = vmatprep.mubr.bf16.mxu0 0
      %568 = vmatmul.mubr.bf16.gmra.mxu0 %v415
      %v569 = vpop.f32.mrf.mxu0
      %v570 = vadd.f32 %v237, %v569
      %v571 = vpop.f32.mrf.mxu0
      %v572 = vpop.f32.mrf.mxu0
      %v573 = vadd.f32 %v237, %v572
      %v574 = vpop.f32.mrf.mxu0
      %575 = vmatprep.mubr.bf16.mxu0 0
      %576 = vmatmul.mubr.bf16.gmra.mxu0 %v418
      %v577 = vpop.f32.mrf.mxu0
      %v578 = vadd.f32 %v237, %v577
      %v579 = vpop.f32.mrf.mxu0
      %v580 = vpop.f32.mrf.mxu0
      %v581 = vadd.f32 %v237, %v580
      %v582 = vpop.f32.mrf.mxu0
      %583 = vmatprep.mubr.bf16.mxu0 0
      %584 = vmatmul.mubr.bf16.gmra.mxu0 %v421
      %v585 = vpop.f32.mrf.mxu0
      %v586 = vadd.f32 %v237, %v585
      %v587 = vpop.f32.mrf.mxu0
      %v588 = vpop.f32.mrf.mxu0
      %v589 = vadd.f32 %v237, %v588
      %v590 = vpop.f32.mrf.mxu0
      %591 = vmatprep.mubr.bf16.mxu0 0
      %592 = vmatmul.mubr.bf16.gmra.mxu0 %v424
      %v593 = vpop.f32.mrf.mxu0
      %v594 = vadd.f32 %v237, %v593
      %v595 = vpop.f32.mrf.mxu0
      %v596 = vpop.f32.mrf.mxu0
      %v597 = vadd.f32 %v237, %v596
      %v598 = vpop.f32.mrf.mxu0
      %599 = vmatprep.mubr.bf16.mxu0 0
      %600 = vmatmul.mubr.bf16.gmra.mxu0 %v427
      %v601 = vpop.f32.mrf.mxu0
      %v602 = vadd.f32 %v237, %v601
      %v603 = vpop.f32.mrf.mxu0
      %v604 = vpop.f32.mrf.mxu0
      %v605 = vadd.f32 %v237, %v604
      %v606 = vpop.f32.mrf.mxu0
      %607 = vmatprep.mubr.bf16.mxu0 0
      %608 = vmatmul.mubr.bf16.gmra.mxu0 %v430
      %v609 = vpop.f32.mrf.mxu0
      %v610 = vadd.f32 %v237, %v609
      %v611 = vpop.f32.mrf.mxu0
      %v612 = vpop.f32.mrf.mxu0
      %v613 = vadd.f32 %v237, %v612
      %v614 = vpop.f32.mrf.mxu0
      %615 = vmatprep.mubr.bf16.mxu0 0
      %616 = vmatmul.mubr.bf16.gmra.mxu0 %v433
      %v617 = vpop.f32.mrf.mxu0
      %v618 = vadd.f32 %v237, %v617
      %v619 = vpop.f32.mrf.mxu0
      %v620 = vpop.f32.mrf.mxu0
      %v621 = vadd.f32 %v237, %v620
      %v622 = vpop.f32.mrf.mxu0
      %623 = vmatprep.mubr.bf16.mxu0 0
      %624 = vmatmul.mubr.bf16.gmra.mxu0 %v436
      %v625 = vpop.f32.mrf.mxu0
      %v626 = vadd.f32 %v237, %v625
      %v627 = vpop.f32.mrf.mxu0
      %v628 = vpop.f32.mrf.mxu0
      %v629 = vadd.f32 %v237, %v628
      %v630 = vpop.f32.mrf.mxu0
      %631 = vmatprep.mubr.bf16.mxu0 0
      %632 = vmatmul.mubr.bf16.gmra.mxu0 %v439
      %v633 = vpop.f32.mrf.mxu0
      %v634 = vadd.f32 %v237, %v633
      %v635 = vpop.f32.mrf.mxu0
      %v636 = vpop.f32.mrf.mxu0
      %v637 = vadd.f32 %v237, %v636
      %v638 = vpop.f32.mrf.mxu0
      %639 = vmatprep.mubr.bf16.mxu0 0
      %640 = vmatmul.mubr.bf16.gmra.mxu0 %v442
      %v641 = vpop.f32.mrf.mxu0
      %v642 = vadd.f32 %v237, %v641
      %v643 = vpop.f32.mrf.mxu0
      %v644 = vpop.f32.mrf.mxu0
      %v645 = vadd.f32 %v237, %v644
      %v646 = vpop.f32.mrf.mxu0
      %647 = vmatprep.mubr.bf16.mxu0 0
      %648 = vmatmul.mubr.bf16.gmra.mxu0 %v445
      %v649 = vpop.f32.mrf.mxu0
      %v650 = vadd.f32 %v237, %v649
      %v651 = vpop.f32.mrf.mxu0
      %v652 = vpop.f32.mrf.mxu0
      %v653 = vadd.f32 %v237, %v652
      %v654 = vpop.f32.mrf.mxu0
      %655 = vmatprep.mubr.bf16.mxu0 0
      %656 = vmatmul.mubr.bf16.gmra.mxu0 %v448
      %v657 = vpop.f32.mrf.mxu0
      %v658 = vadd.f32 %v237, %v657
      %v659 = vpop.f32.mrf.mxu0
      %v660 = vpop.f32.mrf.mxu0
      %v661 = vadd.f32 %v237, %v660
      %v662 = vpop.f32.mrf.mxu0
      %663 = vmatprep.mubr.bf16.mxu0 0
      %664 = vmatmul.mubr.bf16.gmra.mxu0 %v451
      %v665 = vpop.f32.mrf.mxu0
      %v666 = vadd.f32 %v237, %v665
      %v667 = vpop.f32.mrf.mxu0
      %v668 = vpop.f32.mrf.mxu0
      %v669 = vadd.f32 %v237, %v668
      %v670 = vpop.f32.mrf.mxu0
      %671 = vmatprep.mubr.bf16.mxu0 0
      %672 = vmatmul.mubr.bf16.gmra.mxu0 %v454
      %v673 = vpop.f32.mrf.mxu0
      %v674 = vadd.f32 %v237, %v673
      %v675 = vpop.f32.mrf.mxu0
      %v676 = vpop.f32.mrf.mxu0
      %v677 = vadd.f32 %v237, %v676
      %v678 = vpop.f32.mrf.mxu0
      %679 = vmatprep.mubr.bf16.mxu0 0
      %680 = vmatmul.mubr.bf16.gmra.mxu0 %v457
      %v681 = vpop.f32.mrf.mxu0
      %v682 = vadd.f32 %v237, %v681
      %v683 = vpop.f32.mrf.mxu0
      %v684 = vpop.f32.mrf.mxu0
      %v685 = vadd.f32 %v237, %v684
      %v686 = vpop.f32.mrf.mxu0
      %687 = vdwg.mxu0
      %vm688 = vcmp.ge.f32.partialorder %v498, 0.0
      %vm689 = vcmp.ge.f32.partialorder %v501, 0.0
      %vm690 = vcmp.ge.f32.partialorder %v506, 0.0
      %vm691 = vcmp.ge.f32.partialorder %v509, 0.0
      %vm692 = vcmp.ge.f32.partialorder %v514, 0.0
      %vm693 = vcmp.ge.f32.partialorder %v517, 0.0
      %vm694 = vcmp.ge.f32.partialorder %v522, 0.0
      %vm695 = vcmp.ge.f32.partialorder %v525, 0.0
      %vm696 = vcmp.ge.f32.partialorder %v530, 0.0
      %vm697 = vcmp.ge.f32.partialorder %v533, 0.0
      %vm698 = vcmp.ge.f32.partialorder %v538, 0.0
      %vm699 = vcmp.ge.f32.partialorder %v541, 0.0
      %vm700 = vcmp.ge.f32.partialorder %v546, 0.0
      %vm701 = vcmp.ge.f32.partialorder %v549, 0.0
      %vm702 = vcmp.ge.f32.partialorder %v554, 0.0
      %vm703 = vcmp.ge.f32.partialorder %v557, 0.0
      %vm704 = vcmp.ge.f32.partialorder %v562, 0.0
      %vm705 = vcmp.ge.f32.partialorder %v565, 0.0
      %vm706 = vcmp.ge.f32.partialorder %v570, 0.0
      %vm707 = vcmp.ge.f32.partialorder %v573, 0.0
      %vm708 = vcmp.ge.f32.partialorder %v578, 0.0
      %vm709 = vcmp.ge.f32.partialorder %v581, 0.0
      %vm710 = vcmp.ge.f32.partialorder %v586, 0.0
      %vm711 = vcmp.ge.f32.partialorder %v589, 0.0
      %vm712 = vcmp.ge.f32.partialorder %v594, 0.0
      %vm713 = vcmp.ge.f32.partialorder %v597, 0.0
      %vm714 = vcmp.ge.f32.partialorder %v602, 0.0
      %vm715 = vcmp.ge.f32.partialorder %v605, 0.0
      %vm716 = vcmp.ge.f32.partialorder %v610, 0.0
      %vm717 = vcmp.ge.f32.partialorder %v613, 0.0
      %vm718 = vcmp.ge.f32.partialorder %v618, 0.0
      %vm719 = vcmp.ge.f32.partialorder %v621, 0.0
      %vm720 = vcmp.ge.f32.partialorder %v626, 0.0
      %vm721 = vcmp.ge.f32.partialorder %v629, 0.0
      %vm722 = vcmp.ge.f32.partialorder %v634, 0.0
      %vm723 = vcmp.ge.f32.partialorder %v637, 0.0
      %vm724 = vcmp.ge.f32.partialorder %v642, 0.0
      %vm725 = vcmp.ge.f32.partialorder %v645, 0.0
      %vm726 = vcmp.ge.f32.partialorder %v650, 0.0
      %vm727 = vcmp.ge.f32.partialorder %v653, 0.0
      %vm728 = vcmp.ge.f32.partialorder %v658, 0.0
      %vm729 = vcmp.ge.f32.partialorder %v661, 0.0
      %vm730 = vcmp.ge.f32.partialorder %v666, 0.0
      %vm731 = vcmp.ge.f32.partialorder %v669, 0.0
      %vm732 = vcmp.ge.f32.partialorder %v674, 0.0
      %vm733 = vcmp.ge.f32.partialorder %v677, 0.0
      %vm734 = vcmp.ge.f32.partialorder %v682, 0.0
      %vm735 = vcmp.ge.f32.partialorder %v685, 0.0
      %v736 = vmul.f32 %v498, 0.01
      %v737 = vmul.f32 %v501, 0.01
      %v738 = vmul.f32 %v506, 0.01
      %v739 = vmul.f32 %v509, 0.01
      %v740 = vmul.f32 %v514, 0.01
      %v741 = vmul.f32 %v517, 0.01
      %v742 = vmul.f32 %v522, 0.01
      %v743 = vmul.f32 %v525, 0.01
      %v744 = vmul.f32 %v530, 0.01
      %v745 = vmul.f32 %v533, 0.01
      %v746 = vmul.f32 %v538, 0.01
      %v747 = vmul.f32 %v541, 0.01
      %v748 = vmul.f32 %v546, 0.01
      %v749 = vmul.f32 %v549, 0.01
      %v750 = vmul.f32 %v554, 0.01
      %v751 = vmul.f32 %v557, 0.01
      %v752 = vmul.f32 %v562, 0.01
      %v753 = vmul.f32 %v565, 0.01
      %v754 = vmul.f32 %v570, 0.01
      %v755 = vmul.f32 %v573, 0.01
      %v756 = vmul.f32 %v578, 0.01
      %v757 = vmul.f32 %v581, 0.01
      %v758 = vmul.f32 %v586, 0.01
      %v759 = vmul.f32 %v589, 0.01
      %v760 = vmul.f32 %v594, 0.01
      %v761 = vmul.f32 %v597, 0.01
      %v762 = vmul.f32 %v602, 0.01
      %v763 = vmul.f32 %v605, 0.01
      %v764 = vmul.f32 %v610, 0.01
      %v765 = vmul.f32 %v613, 0.01
      %v766 = vmul.f32 %v618, 0.01
      %v767 = vmul.f32 %v621, 0.01
      %v768 = vmul.f32 %v626, 0.01
      %v769 = vmul.f32 %v629, 0.01
      %v770 = vmul.f32 %v634, 0.01
      %v771 = vmul.f32 %v637, 0.01
      %v772 = vmul.f32 %v642, 0.01
      %v773 = vmul.f32 %v645, 0.01
      %v774 = vmul.f32 %v650, 0.01
      %v775 = vmul.f32 %v653, 0.01
      %v776 = vmul.f32 %v658, 0.01
      %v777 = vmul.f32 %v661, 0.01
      %v778 = vmul.f32 %v666, 0.01
      %v779 = vmul.f32 %v669, 0.01
      %v780 = vmul.f32 %v674, 0.01
      %v781 = vmul.f32 %v677, 0.01
      %v782 = vmul.f32 %v682, 0.01
      %v783 = vmul.f32 %v685, 0.01
      %v784 = vsel %vm688, %v498, %v736
      %v785 = vsel %vm689, %v501, %v737
      %v786 = vsel %vm690, %v506, %v738
      %v787 = vsel %vm691, %v509, %v739
      %v788 = vsel %vm692, %v514, %v740
      %v789 = vsel %vm693, %v517, %v741
      %v790 = vsel %vm694, %v522, %v742
      %v791 = vsel %vm695, %v525, %v743
      %v792 = vsel %vm696, %v530, %v744
      %v793 = vsel %vm697, %v533, %v745
      %v794 = vsel %vm698, %v538, %v746
      %v795 = vsel %vm699, %v541, %v747
      %v796 = vsel %vm700, %v546, %v748
      %v797 = vsel %vm701, %v549, %v749
      %v798 = vsel %vm702, %v554, %v750
      %v799 = vsel %vm703, %v557, %v751
      %v800 = vsel %vm704, %v562, %v752
      %v801 = vsel %vm705, %v565, %v753
      %v802 = vsel %vm706, %v570, %v754
      %v803 = vsel %vm707, %v573, %v755
      %v804 = vsel %vm708, %v578, %v756
      %v805 = vsel %vm709, %v581, %v757
      %v806 = vsel %vm710, %v586, %v758
      %v807 = vsel %vm711, %v589, %v759
      %v808 = vsel %vm712, %v594, %v760
      %v809 = vsel %vm713, %v597, %v761
      %v810 = vsel %vm714, %v602, %v762
      %v811 = vsel %vm715, %v605, %v763
      %v812 = vsel %vm716, %v610, %v764
      %v813 = vsel %vm717, %v613, %v765
      %v814 = vsel %vm718, %v618, %v766
      %v815 = vsel %vm719, %v621, %v767
      %v816 = vsel %vm720, %v626, %v768
      %v817 = vsel %vm721, %v629, %v769
      %v818 = vsel %vm722, %v634, %v770
      %v819 = vsel %vm723, %v637, %v771
      %v820 = vsel %vm724, %v642, %v772
      %v821 = vsel %vm725, %v645, %v773
      %v822 = vsel %vm726, %v650, %v774
      %v823 = vsel %vm727, %v653, %v775
      %v824 = vsel %vm728, %v658, %v776
      %v825 = vsel %vm729, %v661, %v777
      %v826 = vsel %vm730, %v666, %v778
      %v827 = vsel %vm731, %v669, %v779
      %v828 = vsel %vm732, %v674, %v780
      %v829 = vsel %vm733, %v677, %v781
      %v830 = vsel %vm734, %v682, %v782
      %v831 = vsel %vm735, %v685, %v783
      %v832 = vpack.c.bf16 %v785, %v784
      %v833 = vpack.c.bf16 %v787, %v786
      %v834 = vpack.c.bf16 %v789, %v788
      %v835 = vpack.c.bf16 %v791, %v790
      %v836 = vpack.c.bf16 %v793, %v792
      %v837 = vpack.c.bf16 %v795, %v794
      %v838 = vpack.c.bf16 %v797, %v796
      %v839 = vpack.c.bf16 %v799, %v798
      %v840 = vpack.c.bf16 %v801, %v800
      %v841 = vpack.c.bf16 %v803, %v802
      %v842 = vpack.c.bf16 %v805, %v804
      %v843 = vpack.c.bf16 %v807, %v806
      %v844 = vpack.c.bf16 %v809, %v808
      %v845 = vpack.c.bf16 %v811, %v810
      %v846 = vpack.c.bf16 %v813, %v812
      %v847 = vpack.c.bf16 %v815, %v814
      %v848 = vpack.c.bf16 %v817, %v816
      %v849 = vpack.c.bf16 %v819, %v818
      %v850 = vpack.c.bf16 %v821, %v820
      %v851 = vpack.c.bf16 %v823, %v822
      %v852 = vpack.c.bf16 %v825, %v824
      %v853 = vpack.c.bf16 %v827, %v826
      %v854 = vpack.c.bf16 %v829, %v828
      %v855 = vpack.c.bf16 %v831, %v830
      %v880 = vunpack.c.l.b16 %v832
      %v881 = vunpack.c.h.b16 %v832
      %v882 = vunpack.c.l.b16 %v833
      %v883 = vunpack.c.h.b16 %v833
      %v884 = vunpack.c.l.b16 %v834
      %v885 = vunpack.c.h.b16 %v834
      %v886 = vunpack.c.l.b16 %v835
      %v887 = vunpack.c.h.b16 %v835
      %v888 = vunpack.c.l.b16 %v836
      %v889 = vunpack.c.h.b16 %v836
      %v890 = vunpack.c.l.b16 %v837
      %v891 = vunpack.c.h.b16 %v837
      %v892 = vunpack.c.l.b16 %v838
      %v893 = vunpack.c.h.b16 %v838
      %v894 = vunpack.c.l.b16 %v839
      %v895 = vunpack.c.h.b16 %v839
      %v896 = vunpack.c.l.b16 %v840
      %v897 = vunpack.c.h.b16 %v840
      %v898 = vunpack.c.l.b16 %v841
      %v899 = vunpack.c.h.b16 %v841
      %v900 = vunpack.c.l.b16 %v842
      %v901 = vunpack.c.h.b16 %v842
      %v902 = vunpack.c.l.b16 %v843
      %v903 = vunpack.c.h.b16 %v843
      %v904 = vunpack.c.l.b16 %v844
      %v905 = vunpack.c.h.b16 %v844
      %v906 = vunpack.c.l.b16 %v845
      %v907 = vunpack.c.h.b16 %v845
      %v908 = vunpack.c.l.b16 %v846
      %v909 = vunpack.c.h.b16 %v846
      %v910 = vunpack.c.l.b16 %v847
      %v911 = vunpack.c.h.b16 %v847
      %v912 = vunpack.c.l.b16 %v848
      %v913 = vunpack.c.h.b16 %v848
      %v914 = vunpack.c.l.b16 %v849
      %v915 = vunpack.c.h.b16 %v849
      %v916 = vunpack.c.l.b16 %v850
      %v917 = vunpack.c.h.b16 %v850
      %v918 = vunpack.c.l.b16 %v851
      %v919 = vunpack.c.h.b16 %v851
      %v920 = vunpack.c.l.b16 %v852
      %v921 = vunpack.c.h.b16 %v852
      %v922 = vunpack.c.l.b16 %v853
      %v923 = vunpack.c.h.b16 %v853
      %v924 = vunpack.c.l.b16 %v854
      %v925 = vunpack.c.h.b16 %v854
      %v926 = vunpack.c.l.b16 %v855
      %v927 = vunpack.c.h.b16 %v855
      %v928 = vpack.c.b16 %v880, %v880
      %v929 = vpack.c.b16 %v881, %v881
      %v930 = vpack.c.b16 %v882, %v882
      %v931 = vpack.c.b16 %v883, %v883
      %v932 = vpack.c.b16 %v884, %v884
      %v933 = vpack.c.b16 %v885, %v885
      %v934 = vpack.c.b16 %v886, %v886
      %v935 = vpack.c.b16 %v887, %v887
      %v936 = vpack.c.b16 %v888, %v888
      %v937 = vpack.c.b16 %v889, %v889
      %v938 = vpack.c.b16 %v890, %v890
      %v939 = vpack.c.b16 %v891, %v891
      %v940 = vpack.c.b16 %v892, %v892
      %v941 = vpack.c.b16 %v893, %v893
      %v942 = vpack.c.b16 %v894, %v894
      %v943 = vpack.c.b16 %v895, %v895
      %v944 = vpack.c.b16 %v896, %v896
      %v945 = vpack.c.b16 %v897, %v897
      %v946 = vpack.c.b16 %v898, %v898
      %v947 = vpack.c.b16 %v899, %v899
      %v948 = vpack.c.b16 %v900, %v900
      %v949 = vpack.c.b16 %v901, %v901
      %v950 = vpack.c.b16 %v902, %v902
      %v951 = vpack.c.b16 %v903, %v903
      %v952 = vpack.c.b16 %v904, %v904
      %v953 = vpack.c.b16 %v905, %v905
      %v954 = vpack.c.b16 %v906, %v906
      %v955 = vpack.c.b16 %v907, %v907
      %v956 = vpack.c.b16 %v908, %v908
      %v957 = vpack.c.b16 %v909, %v909
      %v958 = vpack.c.b16 %v910, %v910
      %v959 = vpack.c.b16 %v911, %v911
      %v960 = vpack.c.b16 %v912, %v912
      %v961 = vpack.c.b16 %v913, %v913
      %v962 = vpack.c.b16 %v914, %v914
      %v963 = vpack.c.b16 %v915, %v915
      %v964 = vpack.c.b16 %v916, %v916
      %v965 = vpack.c.b16 %v917, %v917
      %v966 = vpack.c.b16 %v918, %v918
      %v967 = vpack.c.b16 %v919, %v919
      %v968 = vpack.c.b16 %v920, %v920
      %v969 = vpack.c.b16 %v921, %v921
      %v970 = vpack.c.b16 %v922, %v922
      %v971 = vpack.c.b16 %v923, %v923
      %v972 = vpack.c.b16 %v924, %v924
      %v973 = vpack.c.b16 %v925, %v925
      %v974 = vpack.c.b16 %v926, %v926
      %v975 = vpack.c.b16 %v927, %v927
      %vm1024 = vcmask 125952
      %1025 = vst.msk [vmem:[%s172] sm:$0xf] %vm1024, %v928
      %1026 = vst.msk [vmem:[%s172 + $0x4] sm:$0xf] %vm1024, %v929
      %1027 = vst.msk [vmem:[%s172 + $0x8] sm:$0xf] %vm1024, %v930
      %1028 = vst.msk [vmem:[%s172 + $0xc] sm:$0xf] %vm1024, %v931
      %1029 = vst.msk [vmem:[%s172 + $0x10] sm:$0xf] %vm1024, %v932
      %1030 = vst.msk [vmem:[%s172 + $0x14] sm:$0xf] %vm1024, %v933
      %1031 = vst.msk [vmem:[%s172 + $0x18] sm:$0xf] %vm1024, %v934
      %1032 = vst.msk [vmem:[%s172 + $0x1c] sm:$0xf] %vm1024, %v935
      %1033 = vst.msk [vmem:[%s172 + $0x20] sm:$0xf] %vm1024, %v936
      %1034 = vst.msk [vmem:[%s172 + $0x24] sm:$0xf] %vm1024, %v937
      %1035 = vst.msk [vmem:[%s172 + $0x28] sm:$0xf] %vm1024, %v938
      %1036 = vst.msk [vmem:[%s172 + $0x2c] sm:$0xf] %vm1024, %v939
      %1037 = vst.msk [vmem:[%s172 + $0x30] sm:$0xf] %vm1024, %v940
      %1038 = vst.msk [vmem:[%s172 + $0x34] sm:$0xf] %vm1024, %v941
      %1039 = vst.msk [vmem:[%s172 + $0x38] sm:$0xf] %vm1024, %v942
      %1040 = vst.msk [vmem:[%s172 + $0x3c] sm:$0xf] %vm1024, %v943
      %1041 = vst.msk [vmem:[%s172 + $0x40] sm:$0xf] %vm1024, %v944
      %1042 = vst.msk [vmem:[%s172 + $0x44] sm:$0xf] %vm1024, %v945
      %1043 = vst.msk [vmem:[%s172 + $0x48] sm:$0xf] %vm1024, %v946
      %1044 = vst.msk [vmem:[%s172 + $0x4c] sm:$0xf] %vm1024, %v947
      %1045 = vst.msk [vmem:[%s172 + $0x50] sm:$0xf] %vm1024, %v948
      %1046 = vst.msk [vmem:[%s172 + $0x54] sm:$0xf] %vm1024, %v949
      %1047 = vst.msk [vmem:[%s172 + $0x58] sm:$0xf] %vm1024, %v950
      %1048 = vst.msk [vmem:[%s172 + $0x5c] sm:$0xf] %vm1024, %v951
      %1049 = vst.msk [vmem:[%s172 + $0x60] sm:$0xf] %vm1024, %v952
      %1050 = vst.msk [vmem:[%s172 + $0x64] sm:$0xf] %vm1024, %v953
      %1051 = vst.msk [vmem:[%s172 + $0x68] sm:$0xf] %vm1024, %v954
      %1052 = vst.msk [vmem:[%s172 + $0x6c] sm:$0xf] %vm1024, %v955
      %1053 = vst.msk [vmem:[%s172 + $0x70] sm:$0xf] %vm1024, %v956
      %1054 = vst.msk [vmem:[%s172 + $0x74] sm:$0xf] %vm1024, %v957
      %1055 = vst.msk [vmem:[%s172 + $0x78] sm:$0xf] %vm1024, %v958
      %1056 = vst.msk [vmem:[%s172 + $0x7c] sm:$0xf] %vm1024, %v959
      %1057 = vst.msk [vmem:[%s172 + $0x80] sm:$0xf] %vm1024, %v960
      %1058 = vst.msk [vmem:[%s172 + $0x84] sm:$0xf] %vm1024, %v961
      %1059 = vst.msk [vmem:[%s172 + $0x88] sm:$0xf] %vm1024, %v962
      %1060 = vst.msk [vmem:[%s172 + $0x8c] sm:$0xf] %vm1024, %v963
      %1061 = vst.msk [vmem:[%s172 + $0x90] sm:$0xf] %vm1024, %v964
      %1062 = vst.msk [vmem:[%s172 + $0x94] sm:$0xf] %vm1024, %v965
      %1063 = vst.msk [vmem:[%s172 + $0x98] sm:$0xf] %vm1024, %v966
      %1064 = vst.msk [vmem:[%s172 + $0x9c] sm:$0xf] %vm1024, %v967
      %1065 = vst.msk [vmem:[%s172 + $0xa0] sm:$0xf] %vm1024, %v968
      %1066 = vst.msk [vmem:[%s172 + $0xa4] sm:$0xf] %vm1024, %v969
      %1067 = vst.msk [vmem:[%s172 + $0xa8] sm:$0xf] %vm1024, %v970
      %1068 = vst.msk [vmem:[%s172 + $0xac] sm:$0xf] %vm1024, %v971
      %1069 = vst.msk [vmem:[%s172 + $0xb0] sm:$0xf] %vm1024, %v972
      %1070 = vst.msk [vmem:[%s172 + $0xb4] sm:$0xf] %vm1024, %v973
      %1071 = vst.msk [vmem:[%s172 + $0xb8] sm:$0xf] %vm1024, %v974
      %1072 = vst.msk [vmem:[%s172 + $0xbc] sm:$0xf] %vm1024, %v975
      %s1073 = smul.u32 48, %s14
      %p1074 = scmp.lt.s32.totalorder %s1073, 143
      %s1075 = scalar_select %p1074, %s1073, 143
      %s1076 = smul.addr %s1075, 4
      %s1077 = scalar_lea.vmem %s3, %s1076
      // Predicated region
      $region33: #{forward.6} parent=31 // pred_check
        %p1078 = pneg %p100
      $region34: #{forward.6} parent=31 // pred_check_branch
        %1080 = sbr.rel (%p1078) target = $region36
      $region35: #{forward.6} parent=31 // pred_region
        %s1081 = smul.u32 48, %s14
      $region36: #{forward.6} parent=31 // pred_fallthru
        _
    $region32: #{forward.6} parent=5 // pred_fallthru
      _
    %p1082 = scmp.le.s32.totalorder 2, %s9
    // Predicated region
    $region37: #{forward.6} parent=5 // pred_check
      %p1083 = pneg %p1082
    $region38: #{forward.6} parent=5 // pred_check_branch
      %1085 = sbr.rel (%p1083) target = $region40
    $region39: #{forward.6} parent=5 // pred_region
      %s1086 = ssub.s32 %s9, 2
      // Predicated region
      $region41: #{forward.6} parent=39 // pred_check
        %p1087 = pneg %p106
      $region42: #{forward.6} parent=39 // pred_check_branch
        %1089 = sbr.rel (%p1087) target = $region44
      $region43: #{forward.6} parent=39 // pred_region
        %s1090 = smul.u32 48, %s15
        %p1091 = scmp.lt.s32.totalorder %s1090, 143
        %s1092 = scalar_select %p1091, %s1090, 143
        %s1093 = smul.addr %s1092, 4
        %s1094 = scalar_lea.vmem %s3, %s1093
      $region44: #{forward.6} parent=39 // pred_fallthru
        _
    $region40: #{forward.6} parent=5 // pred_fallthru
      _
  $region6: #{forward.6} parent=0 // loop_footer
    %s13 = sadd.s32 1, %s9
  $region7: #{forward.6} parent=0 // loop_footer_branch
    %8 = sbr.rel target = $region3
  $region8: #{forward.6} parent=0 // loop_exit
    _

// kernel: forward.7
$region0: #{forward.7}
  #allocation0 [shape = 'u32[]', space=smem, size = 0x4, offset = 0x4, fixed_abs, tag = 'smem constant byte address 0x4 - core index']
  #allocation1 [shape = 'u32[144,128]{1,0:T(1,128)}', space=vmem, size = 0x12000, scoped, tag = 'internal scratch']
  %s0 = inlined_call_operand.vmem [shape: bf16[288,144], index: 0, kind: input, shape index: {}]
  %s1 = inlined_call_operand.vmem [shape: bf16[144,32], index: 1, kind: input, shape index: {}]
  %s2 = inlined_call_operand.vmem [shape: f32[1,32], index: 2, kind: input, shape index: {}]
  %s3 = inlined_call_operand.vmem [shape: bf16[288,32], index: 3, kind: output, shape index: {}]
  %s4 = sld [smem:[#allocation0]]
  $region45: #{forward.7} parent=0
    _
  %s6 = ssub.s32 1, %s4
  %s7 = scalar_select 0, %s6, %s4
  loop: start=0, step=1, limit=4
  $region2: #{forward.7} parent=0 // loop_pre_header
    _
  $region3: #{forward.7} parent=0 // loop_header
    %s9 = sphi 0, %s13
    %p10 = scmp.ge.s32.totalorder %s9, 4
    %s19 = sphi 0, %s21
    %s22 = sphi 0, %s19
    %s23 = sphi 0, %s22
    %s39 = sphi 0, %s23
    %s43 = sphi 0, %s43
    %s45 = sphi 0, %s43
    %s46 = sphi 0, %s45
    %s60 = sphi 0, %s46
    %s64 = sphi 0, %s64
    %s66 = sphi 0, %s64
    %s67 = sphi 0, %s66
    %s81 = sphi 0, %s67
    %s87 = sphi 0, %s89
    %s90 = sphi 0, %s87
    %s91 = sphi 0, %s90
    %s107 = sphi 0, %s91
  $region4: #{forward.7} parent=0 // loop_header_branch
    %12 = sbr.rel (%p10) target = $region8
  $region5: #{forward.7} parent=0 // loop_body
    %s14 = ssub.s32 %s9, 1
    %s15 = ssub.s32 %s9, 2
    %s16 = sadd.s32 %s9, 1
    %s17 = ssub.s32 %s9, %s16
    %p18 = scmp.eq.s32.totalorder %s17, 0
    %s20 = sadd.s32 %s19, 1
    %s21 = scalar_select %p18, %s19, %s20
    %p24 = pneg %p18
    %p25 = scmp.eq.s32.totalorder %s9, 1
    %p26 = por %p24, %p25
    %p27 = scmp.ne.s32.totalorder %s19, %s22
    %p28 = scmp.eq.s32.totalorder %s9, 0
    %p29 = por %p27, %p28
    %p30 = scmp.ne.s32.totalorder %s19, %s22
    %p31 = scmp.eq.s32.totalorder %s14, 1
    %p32 = por %p30, %p31
    %p33 = scmp.ne.s32.totalorder %s22, %s23
    %p34 = scmp.eq.s32.totalorder %s14, 0
    %p35 = por %p33, %p34
    %p36 = scmp.ne.s32.totalorder %s22, %s23
    %p37 = scmp.eq.s32.totalorder %s15, 1
    %p38 = por %p36, %p37
    %p40 = scmp.ne.s32.totalorder %s23, %s39
    %p41 = scmp.eq.s32.totalorder %s15, 0
    %p42 = por %p40, %p41
    %s44 = sadd.s32 %s43, 1
    %p47 = scmp.eq.s32.totalorder %s9, 1
    %p48 = scmp.ne.s32.totalorder %s43, %s45
    %p49 = scmp.eq.s32.totalorder %s9, 0
    %p50 = por %p48, %p49
    %p51 = scmp.ne.s32.totalorder %s43, %s45
    %p52 = scmp.eq.s32.totalorder %s14, 1
    %p53 = por %p51, %p52
    %p54 = scmp.ne.s32.totalorder %s45, %s46
    %p55 = scmp.eq.s32.totalorder %s14, 0
    %p56 = por %p54, %p55
    %p57 = scmp.ne.s32.totalorder %s45, %s46
    %p58 = scmp.eq.s32.totalorder %s15, 1
    %p59 = por %p57, %p58
    %p61 = scmp.ne.s32.totalorder %s46, %s60
    %p62 = scmp.eq.s32.totalorder %s15, 0
    %p63 = por %p61, %p62
    %s65 = sadd.s32 %s64, 1
    %p68 = scmp.eq.s32.totalorder %s9, 1
    %p69 = scmp.ne.s32.totalorder %s64, %s66
    %p70 = scmp.eq.s32.totalorder %s9, 0
    %p71 = por %p69, %p70
    %p72 = scmp.ne.s32.totalorder %s64, %s66
    %p73 = scmp.eq.s32.totalorder %s14, 1
    %p74 = por %p72, %p73
    %p75 = scmp.ne.s32.totalorder %s66, %s67
    %p76 = scmp.eq.s32.totalorder %s14, 0
    %p77 = por %p75, %p76
    %p78 = scmp.ne.s32.totalorder %s66, %s67
    %p79 = scmp.eq.s32.totalorder %s15, 1
    %p80 = por %p78, %p79
    %p82 = scmp.ne.s32.totalorder %s67, %s81
    %p83 = scmp.eq.s32.totalorder %s15, 0
    %p84 = por %p82, %p83
    %s85 = ssub.s32 %s9, %s16
    %p86 = scmp.eq.s32.totalorder %s85, 0
    %s88 = sadd.s32 %s87, 1
    %s89 = scalar_select %p86, %s87, %s88
    %p92 = pneg %p86
    %p93 = scmp.eq.s32.totalorder %s9, 1
    %p94 = por %p92, %p93
    %p95 = scmp.ne.s32.totalorder %s87, %s90
    %p96 = scmp.eq.s32.totalorder %s9, 0
    %p97 = por %p95, %p96
    %p98 = scmp.ne.s32.totalorder %s87, %s90
    %p99 = scmp.eq.s32.totalorder %s14, 1
    %p100 = por %p98, %p99
    %p101 = scmp.ne.s32.totalorder %s90, %s91
    %p102 = scmp.eq.s32.totalorder %s14, 0
    %p103 = por %p101, %p102
    %p104 = scmp.ne.s32.totalorder %s90, %s91
    %p105 = scmp.eq.s32.totalorder %s15, 1
    %p106 = por %p104, %p105
    %p108 = scmp.ne.s32.totalorder %s91, %s107
    %p109 = scmp.eq.s32.totalorder %s15, 0
    %p110 = por %p108, %p109
    %p111 = scmp.le.s32.totalorder 1, %s9
    %p112 = scmp.lt.s32.totalorder %s9, 3
    %p113 = pnand %p111, %p112
    %p114 = pneg %p113
    // Predicated region
    $region9: #{forward.7} parent=5 // pred_check
      _
    $region10: #{forward.7} parent=5 // pred_check_branch
      %116 = sbr.rel (%p113) target = $region12
    $region11: #{forward.7} parent=5 // pred_region
      %s117 = ssub.s32 %s9, 1
      // Predicated region
      $region13: #{forward.7} parent=11 // pred_check
        %p118 = pneg %p56
      $region14: #{forward.7} parent=11 // pred_check_branch
        %120 = sbr.rel (%p118) target = $region16
      $region15: #{forward.7} parent=11 // pred_region
        _
      $region16: #{forward.7} parent=11 // pred_fallthru
        _
      // Predicated region
      $region17: #{forward.7} parent=11 // pred_check
        %p121 = pneg %p77
      $region18: #{forward.7} parent=11 // pred_check_branch
        %123 = sbr.rel (%p121) target = $region20
      $region19: #{forward.7} parent=11 // pred_region
        _
      $region20: #{forward.7} parent=11 // pred_fallthru
        _
    $region12: #{forward.7} parent=5 // pred_fallthru
      _
    %p124 = scmp.lt.s32.totalorder %s9, 2
    // Predicated region
    $region21: #{forward.7} parent=5 // pred_check
      %p125 = pneg %p124
    $region22: #{forward.7} parent=5 // pred_check_branch
      %127 = sbr.rel (%p125) target = $region24
    $region23: #{forward.7} parent=5 // pred_region
      // Predicated region
      $region25: #{forward.7} parent=23 // pred_check
        %p128 = pneg %p29
      $region26: #{forward.7} parent=23 // pred_check_branch
        %130 = sbr.rel (%p128) target = $region28
      $region27: #{forward.7} parent=23 // pred_region
        %s131 = smul.u32 18, %s9
        %p132 = scmp.lt.s32.totalorder %s131, 35
        %s133 = scalar_select %p132, %s131, 35
        %s134 = smul.addr %s133, 2
        %s135 = smul.addr %s134, 4
        %s136 = scalar_lea.vmem %s0, %s135
        %s137 = smul.u32 18, %s9
      $region28: #{forward.7} parent=23 // pred_fallthru
        _
    $region24: #{forward.7} parent=5 // pred_fallthru
      _
    %p138 = scmp.le.s32.totalorder 1, %s9
    %p139 = scmp.lt.s32.totalorder %s9, 3
    %p140 = pnand %p138, %p139
    %p141 = pneg %p140
    // Predicated region
    $region29: #{forward.7} parent=5 // pred_check
      _
    $region30: #{forward.7} parent=5 // pred_check_branch
      %143 = sbr.rel (%p140) target = $region32
    $region31: #{forward.7} parent=5 // pred_region
      %s144 = ssub.s32 %s9, 1
      %s145 = smul.u32 18, %s14
      %p146 = scmp.lt.s32.totalorder %s145, 35
      %s147 = scalar_select %p146, %s145, 35
      %s148 = smul.addr %s147, 2
      %s149 = smul.addr %s148, 4
      %s150 = scalar_lea.vmem %s0, %s149
      %p151 = pneg %p35
      %p152 = pneg %p32
      %p153 = pneg %p56
      %p154 = pneg %p53
      %p155 = pneg %p77
      %p156 = pneg %p74
      %p157 = pneg %p103
      %p158 = pneg %p100
      %s159 = smul.u32 18, %s14
      %p160 = scmp.lt.s32.totalorder %s159, 35
      %s161 = scalar_select %p160, %s159, 35
      %s162 = smul.addr %s161, 4
      %s163 = scalar_lea.vmem %s3, %s162
      %s164 = smul.u32 18, %s14
      %p165 = scmp.lt.s32.totalorder %s164, 35
      %s166 = scalar_select %p165, %s164, 35
      %s167 = smul.addr %s166, 2
      %s168 = smul.addr %s167, 4
      %s169 = scalar_lea.vmem %s0, %s168
      %s170 = smul.u32 18, %s14
      %s171 = smul.u32 18, %s14
      %p172 = scmp.lt.s32.totalorder %s171, 35
      %s173 = scalar_select %p172, %s171, 35
      %s174 = smul.addr %s173, 4
      %s175 = scalar_lea.vmem %s3, %s174
      %s176 = smul.u32 18, %s14
      %v178 = vld [vmem:[%s169] sm:$0xff]
      %v179 = vld [vmem:[%s169 + $0x8] sm:$0xff]
      %v180 = vld [vmem:[%s169 + $0x10] sm:$0xff]
      %v181 = vld [vmem:[%s169 + $0x18] sm:$0xff]
      %v182 = vld [vmem:[%s169 + $0x20] sm:$0xff]
      %v183 = vld [vmem:[%s169 + $0x28] sm:$0xff]
      %v184 = vld [vmem:[%s169 + $0x30] sm:$0xff]
      %v185 = vld [vmem:[%s169 + $0x38] sm:$0xff]
      %v186 = vld [vmem:[%s169 + $0x40] sm:$0xff]
      %v187 = vld [vmem:[%s169 + $0x48] sm:$0xff]
      %v188 = vld [vmem:[%s169 + $0x50] sm:$0xff]
      %v189 = vld [vmem:[%s169 + $0x58] sm:$0xff]
      %v190 = vld [vmem:[%s169 + $0x60] sm:$0xff]
      %v191 = vld [vmem:[%s169 + $0x68] sm:$0xff]
      %v192 = vld [vmem:[%s169 + $0x70] sm:$0xff]
      %v193 = vld [vmem:[%s169 + $0x78] sm:$0xff]
      %v194 = vld [vmem:[%s169 + $0x80] sm:$0xff]
      %v195 = vld [vmem:[%s169 + $0x88] sm:$0xff]
      %v196 = vld [vmem:[%s1] sm:$0xf]
      %v197 = vld [vmem:[%s1 + $0x4] sm:$0xf]
      %v198 = vld [vmem:[%s1 + $0x8] sm:$0xf]
      %v199 = vld [vmem:[%s1 + $0xc] sm:$0xf]
      %v200 = vld [vmem:[%s1 + $0x10] sm:$0xf]
      %v201 = vld [vmem:[%s1 + $0x14] sm:$0xf]
      %v202 = vld [vmem:[%s1 + $0x18] sm:$0xf]
      %v203 = vld [vmem:[%s1 + $0x1c] sm:$0xf]
      %v204 = vld [vmem:[%s1 + $0x20] sm:$0xf]
      %v205 = vld [vmem:[%s1 + $0x24] sm:$0xf]
      %v206 = vld [vmem:[%s1 + $0x28] sm:$0xf]
      %v207 = vld [vmem:[%s1 + $0x2c] sm:$0xf]
      %v208 = vld [vmem:[%s1 + $0x30] sm:$0xf]
      %v209 = vld [vmem:[%s1 + $0x34] sm:$0xf]
      %v210 = vld [vmem:[%s1 + $0x38] sm:$0xf]
      %v211 = vld [vmem:[%s1 + $0x3c] sm:$0xf]
      %v212 = vld [vmem:[%s1 + $0x40] sm:$0xf]
      %v213 = vld [vmem:[%s1 + $0x44] sm:$0xf]
      %v214 = vld [vmem:[%s2] sm:$0x1]
      %v216 = vlaneseq
      %v217 = vshrl.u32 %v216, 7
      %v218 = vsub.s32 0, %v217
      %v219 = vrot.slane %v214, %v218
      %v239 = vunpack.c.l.b16 %v178
      %v240 = vunpack.c.h.b16 %v178
      %v241 = vunpack.c.l.b16 %v179
      %v242 = vunpack.c.h.b16 %v179
      %v243 = vunpack.c.l.b16 %v180
      %v244 = vunpack.c.h.b16 %v180
      %v245 = vunpack.c.l.b16 %v181
      %v246 = vunpack.c.h.b16 %v181
      %v247 = vunpack.c.l.b16 %v182
      %v248 = vunpack.c.h.b16 %v182
      %v249 = vunpack.c.l.b16 %v183
      %v250 = vunpack.c.h.b16 %v183
      %v251 = vunpack.c.l.b16 %v184
      %v252 = vunpack.c.h.b16 %v184
      %v253 = vunpack.c.l.b16 %v185
      %v254 = vunpack.c.h.b16 %v185
      %v255 = vunpack.c.l.b16 %v186
      %v256 = vunpack.c.h.b16 %v186
      %v257 = vunpack.c.l.b16 %v187
      %v258 = vunpack.c.h.b16 %v187
      %v259 = vunpack.c.l.b16 %v188
      %v260 = vunpack.c.h.b16 %v188
      %v261 = vunpack.c.l.b16 %v189
      %v262 = vunpack.c.h.b16 %v189
      %v263 = vunpack.c.l.b16 %v190
      %v264 = vunpack.c.h.b16 %v190
      %v265 = vunpack.c.l.b16 %v191
      %v266 = vunpack.c.h.b16 %v191
      %v267 = vunpack.c.l.b16 %v192
      %v268 = vunpack.c.h.b16 %v192
      %v269 = vunpack.c.l.b16 %v193
      %v270 = vunpack.c.h.b16 %v193
      %v271 = vunpack.c.l.b16 %v194
      %v272 = vunpack.c.h.b16 %v194
      %v273 = vunpack.c.l.b16 %v195
      %v274 = vunpack.c.h.b16 %v195
      %v275 = vpack.c.b16 %v241, %v239
      %v276 = vpack.c.b16 %v242, %v240
      %v277 = vpack.c.b16 %v245, %v243
      %v278 = vpack.c.b16 %v246, %v244
      %v279 = vpack.c.b16 %v249, %v247
      %v280 = vpack.c.b16 %v250, %v248
      %v281 = vpack.c.b16 %v253, %v251
      %v282 = vpack.c.b16 %v254, %v252
      %v283 = vpack.c.b16 %v257, %v255
      %v284 = vpack.c.b16 %v258, %v256
      %v285 = vpack.c.b16 %v261, %v259
      %v286 = vpack.c.b16 %v262, %v260
      %v287 = vpack.c.b16 %v265, %v263
      %v288 = vpack.c.b16 %v266, %v264
      %v289 = vpack.c.b16 %v269, %v267
      %v290 = vpack.c.b16 %v270, %v268
      %v291 = vpack.c.b16 %v273, %v271
      %v292 = vpack.c.b16 %v274, %v272
      %v320 = vunpack.c.l.b16 %v196
      %v321 = vunpack.c.l.b16 %v197
      %v322 = vunpack.c.l.b16 %v198
      %v323 = vunpack.c.l.b16 %v199
      %v324 = vunpack.c.l.b16 %v200
      %v325 = vunpack.c.l.b16 %v201
      %v326 = vunpack.c.l.b16 %v202
      %v327 = vunpack.c.l.b16 %v203
      %v328 = vunpack.c.l.b16 %v204
      %v329 = vunpack.c.l.b16 %v205
      %v330 = vunpack.c.l.b16 %v206
      %v331 = vunpack.c.l.b16 %v207
      %v332 = vunpack.c.l.b16 %v208
      %v333 = vunpack.c.l.b16 %v209
      %v334 = vunpack.c.l.b16 %v210
      %v335 = vunpack.c.l.b16 %v211
      %v336 = vunpack.c.l.b16 %v212
      %v337 = vunpack.c.l.b16 %v213
      %v338 = vpack.c.b16 %v321, %v320
      %v339 = vpack.c.b16 %v323, %v322
      %v340 = vpack.c.b16 %v325, %v324
      %v341 = vpack.c.b16 %v327, %v326
      %v342 = vpack.c.b16 %v329, %v328
      %v343 = vpack.c.b16 %v331, %v330
      %v344 = vpack.c.b16 %v333, %v332
      %v345 = vpack.c.b16 %v335, %v334
      %v346 = vpack.c.b16 %v337, %v336
      %vm356 = vcmask 130048
      %v358 = vsel %vm356, %v276, 0
      %v361 = vsel %vm356, %v278, 0
      %v364 = vsel %vm356, %v280, 0
      %v367 = vsel %vm356, %v282, 0
      %v370 = vsel %vm356, %v284, 0
      %v373 = vsel %vm356, %v286, 0
      %v376 = vsel %vm356, %v288, 0
      %v379 = vsel %vm356, %v290, 0
      %v382 = vsel %vm356, %v292, 0
      %384 = vmatprep.subr.bf16.mxu0 0
      %385 = vmatpush1.bf16.msra.mxu0 %v345
      %386 = vmatprep.subr.bf16.mxu0 0
      %387 = vmatpush1.bf16.msra.mxu0 %v344
      %388 = vmatprep.subr.bf16.mxu0 0
      %389 = vmatpush1.bf16.msra.mxu0 %v343
      %390 = vmatprep.subr.bf16.mxu0 0
      %391 = vmatpush1.bf16.msra.mxu0 %v342
      %392 = vmatprep.subr.bf16.mxu0 0
      %393 = vmatpush1.bf16.msra.mxu0 %v341
      %394 = vmatprep.subr.bf16.mxu0 0
      %395 = vmatpush1.bf16.msra.mxu0 %v340
      %396 = vmatprep.subr.bf16.mxu0 0
      %397 = vmatpush1.bf16.msra.mxu0 %v339
      %398 = vmatprep.subr.bf16.mxu0 0
      %399 = vmatpush1.bf16.msra.mxu0 %v338
      %400 = vmatprep.subr.bf16.mxu0 0
      %401 = vmatpush2.bf16.msra.mxu0 0
      %402 = vmatprep.subr.bf16.mxu0 0
      %403 = vmatpush2.bf16.msra.mxu0 0
      %404 = vmatprep.subr.bf16.mxu0 0
      %405 = vmatpush2.bf16.msra.mxu0 0
      %406 = vmatprep.subr.bf16.mxu0 0
      %407 = vmatpush2.bf16.msra.mxu0 0
      %408 = vmatprep.subr.bf16.mxu0 0
      %409 = vmatpush2.bf16.msra.mxu0 0
      %410 = vmatprep.subr.bf16.mxu0 0
      %411 = vmatpush2.bf16.msra.mxu0 0
      %412 = vmatprep.subr.bf16.mxu0 0
      %413 = vmatpush2.bf16.msra.mxu0 0
      %414 = vmatprep.subr.bf16.mxu0 0
      %415 = vmatpush2.bf16.msra.mxu0 %v346
      %416 = vmatprep.mubr.bf16.mxu0 %v358
      %417 = vmatmul.mubr.bf16.gmra.mxu0 %v275
      %v418 = vpop.f32.mrf.mxu0
      %v419 = vadd.f32 %v219, %v418
      %v420 = vpop.f32.mrf.mxu0
      %v421 = vpop.f32.mrf.mxu0
      %v422 = vadd.f32 %v219, %v421
      %v423 = vpop.f32.mrf.mxu0
      %424 = vmatprep.mubr.bf16.mxu0 %v361
      %425 = vmatmul.mubr.bf16.gmra.mxu0 %v277
      %v426 = vpop.f32.mrf.mxu0
      %v427 = vadd.f32 %v219, %v426
      %v428 = vpop.f32.mrf.mxu0
      %v429 = vpop.f32.mrf.mxu0
      %v430 = vadd.f32 %v219, %v429
      %v431 = vpop.f32.mrf.mxu0
      %432 = vmatprep.mubr.bf16.mxu0 %v364
      %433 = vmatmul.mubr.bf16.gmra.mxu0 %v279
      %v434 = vpop.f32.mrf.mxu0
      %v435 = vadd.f32 %v219, %v434
      %v436 = vpop.f32.mrf.mxu0
      %v437 = vpop.f32.mrf.mxu0
      %v438 = vadd.f32 %v219, %v437
      %v439 = vpop.f32.mrf.mxu0
      %440 = vmatprep.mubr.bf16.mxu0 %v367
      %441 = vmatmul.mubr.bf16.gmra.mxu0 %v281
      %v442 = vpop.f32.mrf.mxu0
      %v443 = vadd.f32 %v219, %v442
      %v444 = vpop.f32.mrf.mxu0
      %v445 = vpop.f32.mrf.mxu0
      %v446 = vadd.f32 %v219, %v445
      %v447 = vpop.f32.mrf.mxu0
      %448 = vmatprep.mubr.bf16.mxu0 %v370
      %449 = vmatmul.mubr.bf16.gmra.mxu0 %v283
      %v450 = vpop.f32.mrf.mxu0
      %v451 = vadd.f32 %v219, %v450
      %v452 = vpop.f32.mrf.mxu0
      %v453 = vpop.f32.mrf.mxu0
      %v454 = vadd.f32 %v219, %v453
      %v455 = vpop.f32.mrf.mxu0
      %456 = vmatprep.mubr.bf16.mxu0 %v373
      %457 = vmatmul.mubr.bf16.gmra.mxu0 %v285
      %v458 = vpop.f32.mrf.mxu0
      %v459 = vadd.f32 %v219, %v458
      %v460 = vpop.f32.mrf.mxu0
      %v461 = vpop.f32.mrf.mxu0
      %v462 = vadd.f32 %v219, %v461
      %v463 = vpop.f32.mrf.mxu0
      %464 = vmatprep.mubr.bf16.mxu0 %v376
      %465 = vmatmul.mubr.bf16.gmra.mxu0 %v287
      %v466 = vpop.f32.mrf.mxu0
      %v467 = vadd.f32 %v219, %v466
      %v468 = vpop.f32.mrf.mxu0
      %v469 = vpop.f32.mrf.mxu0
      %v470 = vadd.f32 %v219, %v469
      %v471 = vpop.f32.mrf.mxu0
      %472 = vmatprep.mubr.bf16.mxu0 %v379
      %473 = vmatmul.mubr.bf16.gmra.mxu0 %v289
      %v474 = vpop.f32.mrf.mxu0
      %v475 = vadd.f32 %v219, %v474
      %v476 = vpop.f32.mrf.mxu0
      %v477 = vpop.f32.mrf.mxu0
      %v478 = vadd.f32 %v219, %v477
      %v479 = vpop.f32.mrf.mxu0
      %480 = vmatprep.mubr.bf16.mxu0 %v382
      %481 = vmatmul.mubr.bf16.gmra.mxu0 %v291
      %v482 = vpop.f32.mrf.mxu0
      %v483 = vadd.f32 %v219, %v482
      %v484 = vpop.f32.mrf.mxu0
      %v485 = vpop.f32.mrf.mxu0
      %v486 = vadd.f32 %v219, %v485
      %v487 = vpop.f32.mrf.mxu0
      %488 = vdwg.mxu0
      %vm489 = vcmp.ge.f32.partialorder %v419, 0.0
      %vm490 = vcmp.ge.f32.partialorder %v422, 0.0
      %vm491 = vcmp.ge.f32.partialorder %v427, 0.0
      %vm492 = vcmp.ge.f32.partialorder %v430, 0.0
      %vm493 = vcmp.ge.f32.partialorder %v435, 0.0
      %vm494 = vcmp.ge.f32.partialorder %v438, 0.0
      %vm495 = vcmp.ge.f32.partialorder %v443, 0.0
      %vm496 = vcmp.ge.f32.partialorder %v446, 0.0
      %vm497 = vcmp.ge.f32.partialorder %v451, 0.0
      %vm498 = vcmp.ge.f32.partialorder %v454, 0.0
      %vm499 = vcmp.ge.f32.partialorder %v459, 0.0
      %vm500 = vcmp.ge.f32.partialorder %v462, 0.0
      %vm501 = vcmp.ge.f32.partialorder %v467, 0.0
      %vm502 = vcmp.ge.f32.partialorder %v470, 0.0
      %vm503 = vcmp.ge.f32.partialorder %v475, 0.0
      %vm504 = vcmp.ge.f32.partialorder %v478, 0.0
      %vm505 = vcmp.ge.f32.partialorder %v483, 0.0
      %vm506 = vcmp.ge.f32.partialorder %v486, 0.0
      %v507 = vmul.f32 %v419, 0.01
      %v508 = vmul.f32 %v422, 0.01
      %v509 = vmul.f32 %v427, 0.01
      %v510 = vmul.f32 %v430, 0.01
      %v511 = vmul.f32 %v435, 0.01
      %v512 = vmul.f32 %v438, 0.01
      %v513 = vmul.f32 %v443, 0.01
      %v514 = vmul.f32 %v446, 0.01
      %v515 = vmul.f32 %v451, 0.01
      %v516 = vmul.f32 %v454, 0.01
      %v517 = vmul.f32 %v459, 0.01
      %v518 = vmul.f32 %v462, 0.01
      %v519 = vmul.f32 %v467, 0.01
      %v520 = vmul.f32 %v470, 0.01
      %v521 = vmul.f32 %v475, 0.01
      %v522 = vmul.f32 %v478, 0.01
      %v523 = vmul.f32 %v483, 0.01
      %v524 = vmul.f32 %v486, 0.01
      %v525 = vsel %vm489, %v419, %v507
      %v526 = vsel %vm490, %v422, %v508
      %v527 = vsel %vm491, %v427, %v509
      %v528 = vsel %vm492, %v430, %v510
      %v529 = vsel %vm493, %v435, %v511
      %v530 = vsel %vm494, %v438, %v512
      %v531 = vsel %vm495, %v443, %v513
      %v532 = vsel %vm496, %v446, %v514
      %v533 = vsel %vm497, %v451, %v515
      %v534 = vsel %vm498, %v454, %v516
      %v535 = vsel %vm499, %v459, %v517
      %v536 = vsel %vm500, %v462, %v518
      %v537 = vsel %vm501, %v467, %v519
      %v538 = vsel %vm502, %v470, %v520
      %v539 = vsel %vm503, %v475, %v521
      %v540 = vsel %vm504, %v478, %v522
      %v541 = vsel %vm505, %v483, %v523
      %v542 = vsel %vm506, %v486, %v524
      %v543 = vpack.c.bf16 %v526, %v525
      %v544 = vpack.c.bf16 %v528, %v527
      %v545 = vpack.c.bf16 %v530, %v529
      %v546 = vpack.c.bf16 %v532, %v531
      %v547 = vpack.c.bf16 %v534, %v533
      %v548 = vpack.c.bf16 %v536, %v535
      %v549 = vpack.c.bf16 %v538, %v537
      %v550 = vpack.c.bf16 %v540, %v539
      %v551 = vpack.c.bf16 %v542, %v541
      %v561 = vunpack.c.l.b16 %v543
      %v562 = vunpack.c.h.b16 %v543
      %v563 = vunpack.c.l.b16 %v544
      %v564 = vunpack.c.h.b16 %v544
      %v565 = vunpack.c.l.b16 %v545
      %v566 = vunpack.c.h.b16 %v545
      %v567 = vunpack.c.l.b16 %v546
      %v568 = vunpack.c.h.b16 %v546
      %v569 = vunpack.c.l.b16 %v547
      %v570 = vunpack.c.h.b16 %v547
      %v571 = vunpack.c.l.b16 %v548
      %v572 = vunpack.c.h.b16 %v548
      %v573 = vunpack.c.l.b16 %v549
      %v574 = vunpack.c.h.b16 %v549
      %v575 = vunpack.c.l.b16 %v550
      %v576 = vunpack.c.h.b16 %v550
      %v577 = vunpack.c.l.b16 %v551
      %v578 = vunpack.c.h.b16 %v551
      %v579 = vpack.c.b16 %v561, %v561
      %v580 = vpack.c.b16 %v562, %v562
      %v581 = vpack.c.b16 %v563, %v563
      %v582 = vpack.c.b16 %v564, %v564
      %v583 = vpack.c.b16 %v565, %v565
      %v584 = vpack.c.b16 %v566, %v566
      %v585 = vpack.c.b16 %v567, %v567
      %v586 = vpack.c.b16 %v568, %v568
      %v587 = vpack.c.b16 %v569, %v569
      %v588 = vpack.c.b16 %v570, %v570
      %v589 = vpack.c.b16 %v571, %v571
      %v590 = vpack.c.b16 %v572, %v572
      %v591 = vpack.c.b16 %v573, %v573
      %v592 = vpack.c.b16 %v574, %v574
      %v593 = vpack.c.b16 %v575, %v575
      %v594 = vpack.c.b16 %v576, %v576
      %v595 = vpack.c.b16 %v577, %v577
      %v596 = vpack.c.b16 %v578, %v578
      %vm615 = vcmask 257024
      %616 = vst.msk [vmem:[%s175] sm:$0xf] %vm615, %v579
      %617 = vst.msk [vmem:[%s175 + $0x4] sm:$0xf] %vm615, %v580
      %618 = vst.msk [vmem:[%s175 + $0x8] sm:$0xf] %vm615, %v581
      %619 = vst.msk [vmem:[%s175 + $0xc] sm:$0xf] %vm615, %v582
      %620 = vst.msk [vmem:[%s175 + $0x10] sm:$0xf] %vm615, %v583
      %621 = vst.msk [vmem:[%s175 + $0x14] sm:$0xf] %vm615, %v584
      %622 = vst.msk [vmem:[%s175 + $0x18] sm:$0xf] %vm615, %v585
      %623 = vst.msk [vmem:[%s175 + $0x1c] sm:$0xf] %vm615, %v586
      %624 = vst.msk [vmem:[%s175 + $0x20] sm:$0xf] %vm615, %v587
      %625 = vst.msk [vmem:[%s175 + $0x24] sm:$0xf] %vm615, %v588
      %626 = vst.msk [vmem:[%s175 + $0x28] sm:$0xf] %vm615, %v589
      %627 = vst.msk [vmem:[%s175 + $0x2c] sm:$0xf] %vm615, %v590
      %628 = vst.msk [vmem:[%s175 + $0x30] sm:$0xf] %vm615, %v591
      %629 = vst.msk [vmem:[%s175 + $0x34] sm:$0xf] %vm615, %v592
      %630 = vst.msk [vmem:[%s175 + $0x38] sm:$0xf] %vm615, %v593
      %631 = vst.msk [vmem:[%s175 + $0x3c] sm:$0xf] %vm615, %v594
      %632 = vst.msk [vmem:[%s175 + $0x40] sm:$0xf] %vm615, %v595
      %633 = vst.msk [vmem:[%s175 + $0x44] sm:$0xf] %vm615, %v596
      %s634 = smul.u32 18, %s14
      %p635 = scmp.lt.s32.totalorder %s634, 35
      %s636 = scalar_select %p635, %s634, 35
      %s637 = smul.addr %s636, 4
      %s638 = scalar_lea.vmem %s3, %s637
      // Predicated region
      $region33: #{forward.7} parent=31 // pred_check
        %p639 = pneg %p100
      $region34: #{forward.7} parent=31 // pred_check_branch
        %641 = sbr.rel (%p639) target = $region36
      $region35: #{forward.7} parent=31 // pred_region
        %s642 = smul.u32 18, %s14
      $region36: #{forward.7} parent=31 // pred_fallthru
        _
    $region32: #{forward.7} parent=5 // pred_fallthru
      _
    %p643 = scmp.le.s32.totalorder 2, %s9
    // Predicated region
    $region37: #{forward.7} parent=5 // pred_check
      %p644 = pneg %p643
    $region38: #{forward.7} parent=5 // pred_check_branch
      %646 = sbr.rel (%p644) target = $region40
    $region39: #{forward.7} parent=5 // pred_region
      %s647 = ssub.s32 %s9, 2
      // Predicated region
      $region41: #{forward.7} parent=39 // pred_check
        %p648 = pneg %p106
      $region42: #{forward.7} parent=39 // pred_check_branch
        %650 = sbr.rel (%p648) target = $region44
      $region43: #{forward.7} parent=39 // pred_region
        %s651 = smul.u32 18, %s15
        %p652 = scmp.lt.s32.totalorder %s651, 35
        %s653 = scalar_select %p652, %s651, 35
        %s654 = smul.addr %s653, 4
        %s655 = scalar_lea.vmem %s3, %s654
      $region44: #{forward.7} parent=39 // pred_fallthru
        _
    $region40: #{forward.7} parent=5 // pred_fallthru
      _
  $region6: #{forward.7} parent=0 // loop_footer
    %s13 = sadd.s32 1, %s9
  $region7: #{forward.7} parent=0 // loop_footer_branch
    %8 = sbr.rel target = $region3
  $region8: #{forward.7} parent=0 // loop_exit
    _

// kernel: forward.8
$region0: #{forward.8}
  #allocation0 [shape = 'u32[]', space=smem, size = 0x4, offset = 0x4, fixed_abs, tag = 'smem constant byte address 0x4 - core index']
  #allocation1 [shape = 'u32[144,128]{1,0:T(1,128)}', space=vmem, size = 0x12000, scoped, tag = 'internal scratch']
  %s0 = inlined_call_operand.vmem [shape: bf16[72,288], index: 0, kind: input, shape index: {}]
  %s1 = inlined_call_operand.vmem [shape: bf16[288,64], index: 1, kind: input, shape index: {}]
  %s2 = inlined_call_operand.vmem [shape: f32[1,64], index: 2, kind: input, shape index: {}]
  %s3 = inlined_call_operand.vmem [shape: bf16[72,64], index: 3, kind: output, shape index: {}]
  %s4 = sld [smem:[#allocation0]]
  $region22: #{forward.8} parent=0
    _
  %s6 = ssub.s32 1, %s4
  %s7 = scalar_select 0, %s6, %s4
  // Predicated region
  $region2: #{forward.8} parent=0 // pred_check
    _
  $region3: #{forward.8} parent=0 // pred_check_branch
    %9 = sbr.rel (0) target = $region5
  $region4: #{forward.8} parent=0 // pred_region
    _
  $region5: #{forward.8} parent=0 // pred_fallthru
    _
  // Predicated region
  $region6: #{forward.8} parent=0 // pred_check
    _
  $region7: #{forward.8} parent=0 // pred_check_branch
    %11 = sbr.rel (0) target = $region9
  $region8: #{forward.8} parent=0 // pred_region
    _
  $region9: #{forward.8} parent=0 // pred_fallthru
    _
  // Predicated region
  $region10: #{forward.8} parent=0 // pred_check
    _
  $region11: #{forward.8} parent=0 // pred_check_branch
    %13 = sbr.rel (0) target = $region13
  $region12: #{forward.8} parent=0 // pred_region
    _
  $region13: #{forward.8} parent=0 // pred_fallthru
    _
  %v15 = vld [vmem:[%s0] sm:$0xff]
  %v16 = vld [vmem:[%s0 + $0x8] sm:$0xf]
  %v17 = vld [vmem:[%s0 + $0xc] sm:$0xff]
  %v18 = vld [vmem:[%s0 + $0x14] sm:$0xf]
  %v19 = vld [vmem:[%s0 + $0x18] sm:$0xff]
  %v20 = vld [vmem:[%s0 + $0x20] sm:$0xf]
  %v21 = vld [vmem:[%s0 + $0x24] sm:$0xff]
  %v22 = vld [vmem:[%s0 + $0x2c] sm:$0xf]
  %v23 = vld [vmem:[%s0 + $0x30] sm:$0xff]
  %v24 = vld [vmem:[%s0 + $0x38] sm:$0xf]
  %v25 = vld [vmem:[%s0 + $0x3c] sm:$0xff]
  %v26 = vld [vmem:[%s0 + $0x44] sm:$0xf]
  %v27 = vld [vmem:[%s0 + $0x48] sm:$0xff]
  %v28 = vld [vmem:[%s0 + $0x50] sm:$0xf]
  %v29 = vld [vmem:[%s0 + $0x54] sm:$0xff]
  %v30 = vld [vmem:[%s0 + $0x5c] sm:$0xf]
  %v31 = vld [vmem:[%s0 + $0x60] sm:$0xff]
  %v32 = vld [vmem:[%s0 + $0x68] sm:$0xf]
  %v33 = vld [vmem:[%s1] sm:$0xf]
  %v34 = vld [vmem:[%s1 + $0x4] sm:$0xf]
  %v35 = vld [vmem:[%s1 + $0x8] sm:$0xf]
  %v36 = vld [vmem:[%s1 + $0xc] sm:$0xf]
  %v37 = vld [vmem:[%s1 + $0x10] sm:$0xf]
  %v38 = vld [vmem:[%s1 + $0x14] sm:$0xf]
  %v39 = vld [vmem:[%s1 + $0x18] sm:$0xf]
  %v40 = vld [vmem:[%s1 + $0x1c] sm:$0xf]
  %v41 = vld [vmem:[%s1 + $0x20] sm:$0xf]
  %v42 = vld [vmem:[%s1 + $0x24] sm:$0xf]
  %v43 = vld [vmem:[%s1 + $0x28] sm:$0xf]
  %v44 = vld [vmem:[%s1 + $0x2c] sm:$0xf]
  %v45 = vld [vmem:[%s1 + $0x30] sm:$0xf]
  %v46 = vld [vmem:[%s1 + $0x34] sm:$0xf]
  %v47 = vld [vmem:[%s1 + $0x38] sm:$0xf]
  %v48 = vld [vmem:[%s1 + $0x3c] sm:$0xf]
  %v49 = vld [vmem:[%s1 + $0x40] sm:$0xf]
  %v50 = vld [vmem:[%s1 + $0x44] sm:$0xf]
  %v51 = vld [vmem:[%s1 + $0x48] sm:$0xf]
  %v52 = vld [vmem:[%s1 + $0x4c] sm:$0xf]
  %v53 = vld [vmem:[%s1 + $0x50] sm:$0xf]
  %v54 = vld [vmem:[%s1 + $0x54] sm:$0xf]
  %v55 = vld [vmem:[%s1 + $0x58] sm:$0xf]
  %v56 = vld [vmem:[%s1 + $0x5c] sm:$0xf]
  %v57 = vld [vmem:[%s1 + $0x60] sm:$0xf]
  %v58 = vld [vmem:[%s1 + $0x64] sm:$0xf]
  %v59 = vld [vmem:[%s1 + $0x68] sm:$0xf]
  %v60 = vld [vmem:[%s1 + $0x6c] sm:$0xf]
  %v61 = vld [vmem:[%s1 + $0x70] sm:$0xf]
  %v62 = vld [vmem:[%s1 + $0x74] sm:$0xf]
  %v63 = vld [vmem:[%s1 + $0x78] sm:$0xf]
  %v64 = vld [vmem:[%s1 + $0x7c] sm:$0xf]
  %v65 = vld [vmem:[%s1 + $0x80] sm:$0xf]
  %v66 = vld [vmem:[%s1 + $0x84] sm:$0xf]
  %v67 = vld [vmem:[%s1 + $0x88] sm:$0xf]
  %v68 = vld [vmem:[%s1 + $0x8c] sm:$0xf]
  %v69 = vld [vmem:[%s2] sm:$0x1]
  %v71 = vlaneseq
  %v72 = vshrl.u32 %v71, 7
  %v73 = vsub.s32 0, %v72
  %v74 = vrot.slane %v69, %v73
  %v94 = vunpack.c.l.b16 %v15
  %v95 = vunpack.c.h.b16 %v15
  %v96 = vunpack.c.l.b16 %v16
  %v97 = vunpack.c.l.b16 %v17
  %v98 = vunpack.c.h.b16 %v17
  %v99 = vunpack.c.l.b16 %v18
  %v100 = vunpack.c.l.b16 %v19
  %v101 = vunpack.c.h.b16 %v19
  %v102 = vunpack.c.l.b16 %v20
  %v103 = vunpack.c.l.b16 %v21
  %v104 = vunpack.c.h.b16 %v21
  %v105 = vunpack.c.l.b16 %v22
  %v106 = vunpack.c.l.b16 %v23
  %v107 = vunpack.c.h.b16 %v23
  %v108 = vunpack.c.l.b16 %v24
  %v109 = vunpack.c.l.b16 %v25
  %v110 = vunpack.c.h.b16 %v25
  %v111 = vunpack.c.l.b16 %v26
  %v112 = vunpack.c.l.b16 %v27
  %v113 = vunpack.c.h.b16 %v27
  %v114 = vunpack.c.l.b16 %v28
  %v115 = vunpack.c.l.b16 %v29
  %v116 = vunpack.c.h.b16 %v29
  %v117 = vunpack.c.l.b16 %v30
  %v118 = vunpack.c.l.b16 %v31
  %v119 = vunpack.c.h.b16 %v31
  %v120 = vunpack.c.l.b16 %v32
  %v121 = vpack.c.b16 %v97, %v94
  %v122 = vpack.c.b16 %v98, %v95
  %v123 = vpack.c.b16 %v99, %v96
  %v124 = vpack.c.b16 %v103, %v100
  %v125 = vpack.c.b16 %v104, %v101
  %v126 = vpack.c.b16 %v105, %v102
  %v127 = vpack.c.b16 %v109, %v106
  %v128 = vpack.c.b16 %v110, %v107
  %v129 = vpack.c.b16 %v111, %v108
  %v130 = vpack.c.b16 %v115, %v112
  %v131 = vpack.c.b16 %v116, %v113
  %v132 = vpack.c.b16 %v117, %v114
  %v133 = vpack.c.b16 %v118, %v118
  %v134 = vpack.c.b16 %v119, %v119
  %v135 = vpack.c.b16 %v120, %v120
  %v182 = vunpack.c.l.b16 %v33
  %v183 = vunpack.c.l.b16 %v34
  %v184 = vunpack.c.l.b16 %v35
  %v185 = vunpack.c.l.b16 %v36
  %v186 = vunpack.c.l.b16 %v37
  %v187 = vunpack.c.l.b16 %v38
  %v188 = vunpack.c.l.b16 %v39
  %v189 = vunpack.c.l.b16 %v40
  %v190 = vunpack.c.l.b16 %v41
  %v191 = vunpack.c.l.b16 %v42
  %v192 = vunpack.c.l.b16 %v43
  %v193 = vunpack.c.l.b16 %v44
  %v194 = vunpack.c.l.b16 %v45
  %v195 = vunpack.c.l.b16 %v46
  %v196 = vunpack.c.l.b16 %v47
  %v197 = vunpack.c.l.b16 %v48
  %v198 = vunpack.c.l.b16 %v49
  %v199 = vunpack.c.l.b16 %v50
  %v200 = vunpack.c.l.b16 %v51
  %v201 = vunpack.c.l.b16 %v52
  %v202 = vunpack.c.l.b16 %v53
  %v203 = vunpack.c.l.b16 %v54
  %v204 = vunpack.c.l.b16 %v55
  %v205 = vunpack.c.l.b16 %v56
  %v206 = vunpack.c.l.b16 %v57
  %v207 = vunpack.c.l.b16 %v58
  %v208 = vunpack.c.l.b16 %v59
  %v209 = vunpack.c.l.b16 %v60
  %v210 = vunpack.c.l.b16 %v61
  %v211 = vunpack.c.l.b16 %v62
  %v212 = vunpack.c.l.b16 %v63
  %v213 = vunpack.c.l.b16 %v64
  %v214 = vunpack.c.l.b16 %v65
  %v215 = vunpack.c.l.b16 %v66
  %v216 = vunpack.c.l.b16 %v67
  %v217 = vunpack.c.l.b16 %v68
  %v218 = vpack.c.b16 %v183, %v182
  %v219 = vpack.c.b16 %v185, %v184
  %v220 = vpack.c.b16 %v187, %v186
  %v221 = vpack.c.b16 %v189, %v188
  %v222 = vpack.c.b16 %v191, %v190
  %v223 = vpack.c.b16 %v193, %v192
  %v224 = vpack.c.b16 %v195, %v194
  %v225 = vpack.c.b16 %v197, %v196
  %v226 = vpack.c.b16 %v199, %v198
  %v227 = vpack.c.b16 %v201, %v200
  %v228 = vpack.c.b16 %v203, %v202
  %v229 = vpack.c.b16 %v205, %v204
  %v230 = vpack.c.b16 %v207, %v206
  %v231 = vpack.c.b16 %v209, %v208
  %v232 = vpack.c.b16 %v211, %v210
  %v233 = vpack.c.b16 %v213, %v212
  %v234 = vpack.c.b16 %v215, %v214
  %v235 = vpack.c.b16 %v217, %v216
  %vm254 = vcmask 261120
  %v256 = vsel %vm254, %v123, 0
  %v259 = vsel %vm254, %v126, 0
  %v262 = vsel %vm254, %v129, 0
  %v265 = vsel %vm254, %v132, 0
  %v268 = vsel %vm254, %v135, 0
  %270 = vmatprep.subr.bf16.mxu0 0
  %271 = vmatpush1.bf16.msra.mxu0 %v225
  %272 = vmatprep.subr.bf16.mxu0 0
  %273 = vmatpush1.bf16.msra.mxu0 %v224
  %274 = vmatprep.subr.bf16.mxu0 0
  %275 = vmatpush1.bf16.msra.mxu0 %v223
  %276 = vmatprep.subr.bf16.mxu0 0
  %277 = vmatpush1.bf16.msra.mxu0 %v222
  %278 = vmatprep.subr.bf16.mxu0 0
  %279 = vmatpush1.bf16.msra.mxu0 %v221
  %280 = vmatprep.subr.bf16.mxu0 0
  %281 = vmatpush1.bf16.msra.mxu0 %v220
  %282 = vmatprep.subr.bf16.mxu0 0
  %283 = vmatpush1.bf16.msra.mxu0 %v219
  %284 = vmatprep.subr.bf16.mxu0 0
  %285 = vmatpush1.bf16.msra.mxu0 %v218
  %286 = vmatprep.subr.bf16.mxu0 0
  %287 = vmatpush2.bf16.msra.mxu0 %v233
  %288 = vmatprep.subr.bf16.mxu0 0
  %289 = vmatpush2.bf16.msra.mxu0 %v232
  %290 = vmatprep.subr.bf16.mxu0 0
  %291 = vmatpush2.bf16.msra.mxu0 %v231
  %292 = vmatprep.subr.bf16.mxu0 0
  %293 = vmatpush2.bf16.msra.mxu0 %v230
  %294 = vmatprep.subr.bf16.mxu0 0
  %295 = vmatpush2.bf16.msra.mxu0 %v229
  %296 = vmatprep.subr.bf16.mxu0 0
  %297 = vmatpush2.bf16.msra.mxu0 %v228
  %298 = vmatprep.subr.bf16.mxu0 0
  %299 = vmatpush2.bf16.msra.mxu0 %v227
  %300 = vmatprep.subr.bf16.mxu0 0
  %301 = vmatpush2.bf16.msra.mxu0 %v226
  %302 = vmatprep.mubr.bf16.mxu0 %v122
  %303 = vmatmul.mubr.bf16.gmra.mxu0 %v121
  %v304 = vpop.f32.mrf.mxu0
  %v305 = vadd.f32 %v74, %v304
  %v306 = vpop.f32.mrf.mxu0
  %v307 = vpop.f32.mrf.mxu0
  %v308 = vadd.f32 %v74, %v307
  %v309 = vpop.f32.mrf.mxu0
  %310 = vmatprep.mubr.bf16.mxu0 %v125
  %311 = vmatmul.mubr.bf16.gmra.mxu0 %v124
  %v312 = vpop.f32.mrf.mxu0
  %v313 = vadd.f32 %v74, %v312
  %v314 = vpop.f32.mrf.mxu0
  %v315 = vpop.f32.mrf.mxu0
  %v316 = vadd.f32 %v74, %v315
  %v317 = vpop.f32.mrf.mxu0
  %318 = vmatprep.mubr.bf16.mxu0 %v128
  %319 = vmatmul.mubr.bf16.gmra.mxu0 %v127
  %v320 = vpop.f32.mrf.mxu0
  %v321 = vadd.f32 %v74, %v320
  %v322 = vpop.f32.mrf.mxu0
  %v323 = vpop.f32.mrf.mxu0
  %v324 = vadd.f32 %v74, %v323
  %v325 = vpop.f32.mrf.mxu0
  %326 = vmatprep.mubr.bf16.mxu0 %v131
  %327 = vmatmul.mubr.bf16.gmra.mxu0 %v130
  %v328 = vpop.f32.mrf.mxu0
  %v329 = vadd.f32 %v74, %v328
  %v330 = vpop.f32.mrf.mxu0
  %v331 = vpop.f32.mrf.mxu0
  %v332 = vadd.f32 %v74, %v331
  %v333 = vpop.f32.mrf.mxu0
  %334 = vmatprep.mubr.bf16.mxu0 %v134
  %335 = vmatmul.mubr.bf16.gmra.mxu0 %v133
  %v336 = vpop.f32.mrf.mxu0
  %v337 = vadd.f32 %v74, %v336
  %v338 = vpop.f32.mrf.mxu0
  %v339 = vpop.f32.mrf.mxu0
  %v340 = vpop.f32.mrf.mxu0
  %341 = vdwg.mxu0
  %342 = vmatprep.subr.bf16.mxu0 0
  %343 = vmatpush1.bf16.msra.mxu0 0
  %344 = vmatprep.subr.bf16.mxu0 0
  %345 = vmatpush1.bf16.msra.mxu0 0
  %346 = vmatprep.subr.bf16.mxu0 0
  %347 = vmatpush1.bf16.msra.mxu0 0
  %348 = vmatprep.subr.bf16.mxu0 0
  %349 = vmatpush1.bf16.msra.mxu0 0
  %350 = vmatprep.subr.bf16.mxu0 0
  %351 = vmatpush1.bf16.msra.mxu0 0
  %352 = vmatprep.subr.bf16.mxu0 0
  %353 = vmatpush1.bf16.msra.mxu0 0
  %354 = vmatprep.subr.bf16.mxu0 0
  %355 = vmatpush1.bf16.msra.mxu0 %v235
  %356 = vmatprep.subr.bf16.mxu0 0
  %357 = vmatpush1.bf16.msra.mxu0 %v234
  %358 = vmatprep.subr.bf16.mxu0 0
  %359 = vmatpush2.bf16.msra.mxu0 0
  %360 = vmatprep.subr.bf16.mxu0 0
  %361 = vmatpush2.bf16.msra.mxu0 0
  %362 = vmatprep.subr.bf16.mxu0 0
  %363 = vmatpush2.bf16.msra.mxu0 0
  %364 = vmatprep.subr.bf16.mxu0 0
  %365 = vmatpush2.bf16.msra.mxu0 0
  %366 = vmatprep.subr.bf16.mxu0 0
  %367 = vmatpush2.bf16.msra.mxu0 0
  %368 = vmatprep.subr.bf16.mxu0 0
  %369 = vmatpush2.bf16.msra.mxu0 0
  %370 = vmatprep.subr.bf16.mxu0 0
  %371 = vmatpush2.bf16.msra.mxu0 0
  %372 = vmatprep.subr.bf16.mxu0 0
  %373 = vmatpush2.bf16.msra.mxu0 0
  %374 = vmatprep.mubr.bf16.mxu0 0
  %375 = vmatmul.mubr.bf16.gmra.mxu0 %v256
  %v376 = vpop.f32.mrf.mxu0
  %v377 = vadd.f32 %v305, %v376
  %v378 = vpop.f32.mrf.mxu0
  %v379 = vpop.f32.mrf.mxu0
  %v380 = vadd.f32 %v308, %v379
  %v381 = vpop.f32.mrf.mxu0
  %382 = vmatprep.mubr.bf16.mxu0 0
  %383 = vmatmul.mubr.bf16.gmra.mxu0 %v259
  %v384 = vpop.f32.mrf.mxu0
  %v385 = vadd.f32 %v313, %v384
  %v386 = vpop.f32.mrf.mxu0
  %v387 = vpop.f32.mrf.mxu0
  %v388 = vadd.f32 %v316, %v387
  %v389 = vpop.f32.mrf.mxu0
  %390 = vmatprep.mubr.bf16.mxu0 0
  %391 = vmatmul.mubr.bf16.gmra.mxu0 %v262
  %v392 = vpop.f32.mrf.mxu0
  %v393 = vadd.f32 %v321, %v392
  %v394 = vpop.f32.mrf.mxu0
  %v395 = vpop.f32.mrf.mxu0
  %v396 = vadd.f32 %v324, %v395
  %v397 = vpop.f32.mrf.mxu0
  %398 = vmatprep.mubr.bf16.mxu0 0
  %399 = vmatmul.mubr.bf16.gmra.mxu0 %v265
  %v400 = vpop.f32.mrf.mxu0
  %v401 = vadd.f32 %v329, %v400
  %v402 = vpop.f32.mrf.mxu0
  %v403 = vpop.f32.mrf.mxu0
  %v404 = vadd.f32 %v332, %v403
  %v405 = vpop.f32.mrf.mxu0
  %406 = vmatprep.mubr.bf16.mxu0 0
  %407 = vmatmul.mubr.bf16.gmra.mxu0 %v268
  %v408 = vpop.f32.mrf.mxu0
  %v409 = vadd.f32 %v337, %v408
  %v410 = vpop.f32.mrf.mxu0
  %v411 = vpop.f32.mrf.mxu0
  %v412 = vpop.f32.mrf.mxu0
  %413 = vdwg.mxu0
  %vm414 = vcmp.ge.f32.partialorder %v377, 0.0
  %vm415 = vcmp.ge.f32.partialorder %v380, 0.0
  %vm416 = vcmp.ge.f32.partialorder %v385, 0.0
  %vm417 = vcmp.ge.f32.partialorder %v388, 0.0
  %vm418 = vcmp.ge.f32.partialorder %v393, 0.0
  %vm419 = vcmp.ge.f32.partialorder %v396, 0.0
  %vm420 = vcmp.ge.f32.partialorder %v401, 0.0
  %vm421 = vcmp.ge.f32.partialorder %v404, 0.0
  %vm422 = vcmp.ge.f32.partialorder %v409, 0.0
  %v423 = vmul.f32 %v377, 0.01
  %v424 = vmul.f32 %v380, 0.01
  %v425 = vmul.f32 %v385, 0.01
  %v426 = vmul.f32 %v388, 0.01
  %v427 = vmul.f32 %v393, 0.01
  %v428 = vmul.f32 %v396, 0.01
  %v429 = vmul.f32 %v401, 0.01
  %v430 = vmul.f32 %v404, 0.01
  %v431 = vmul.f32 %v409, 0.01
  %v432 = vsel %vm414, %v377, %v423
  %v433 = vsel %vm415, %v380, %v424
  %v434 = vsel %vm416, %v385, %v425
  %v435 = vsel %vm417, %v388, %v426
  %v436 = vsel %vm418, %v393, %v427
  %v437 = vsel %vm419, %v396, %v428
  %v438 = vsel %vm420, %v401, %v429
  %v439 = vsel %vm421, %v404, %v430
  %v440 = vsel %vm422, %v409, %v431
  %v441 = vpack.c.bf16 %v433, %v432
  %v442 = vpack.c.bf16 %v435, %v434
  %v443 = vpack.c.bf16 %v437, %v436
  %v444 = vpack.c.bf16 %v439, %v438
  %v445 = vpack.c.bf16 %v440, %v440
  %v451 = vunpack.c.l.b16 %v441
  %v452 = vunpack.c.h.b16 %v441
  %v453 = vunpack.c.l.b16 %v442
  %v454 = vunpack.c.h.b16 %v442
  %v455 = vunpack.c.l.b16 %v443
  %v456 = vunpack.c.h.b16 %v443
  %v457 = vunpack.c.l.b16 %v444
  %v458 = vunpack.c.h.b16 %v444
  %v459 = vunpack.c.l.b16 %v445
  %v460 = vpack.c.b16 %v451, %v451
  %v461 = vpack.c.b16 %v452, %v452
  %v462 = vpack.c.b16 %v453, %v453
  %v463 = vpack.c.b16 %v454, %v454
  %v464 = vpack.c.b16 %v455, %v455
  %v465 = vpack.c.b16 %v456, %v456
  %v466 = vpack.c.b16 %v457, %v457
  %v467 = vpack.c.b16 %v458, %v458
  %v468 = vpack.c.b16 %v459, %v459
  %vm478 = vcmask 519168
  %479 = vst.msk [vmem:[%s3] sm:$0xf] %vm478, %v460
  %480 = vst.msk [vmem:[%s3 + $0x4] sm:$0xf] %vm478, %v461
  %481 = vst.msk [vmem:[%s3 + $0x8] sm:$0xf] %vm478, %v462
  %482 = vst.msk [vmem:[%s3 + $0xc] sm:$0xf] %vm478, %v463
  %483 = vst.msk [vmem:[%s3 + $0x10] sm:$0xf] %vm478, %v464
  %484 = vst.msk [vmem:[%s3 + $0x14] sm:$0xf] %vm478, %v465
  %485 = vst.msk [vmem:[%s3 + $0x18] sm:$0xf] %vm478, %v466
  %486 = vst.msk [vmem:[%s3 + $0x1c] sm:$0xf] %vm478, %v467
  %487 = vst.msk [vmem:[%s3 + $0x20] sm:$0xf] %vm478, %v468
  // Predicated region
  $region14: #{forward.8} parent=0 // pred_check
    _
  $region15: #{forward.8} parent=0 // pred_check_branch
    %489 = sbr.rel (0) target = $region17
  $region16: #{forward.8} parent=0 // pred_region
    _
  $region17: #{forward.8} parent=0 // pred_fallthru
    _
  // Predicated region
  $region18: #{forward.8} parent=0 // pred_check
    _
  $region19: #{forward.8} parent=0 // pred_check_branch
    %491 = sbr.rel (0) target = $region21
  $region20: #{forward.8} parent=0 // pred_region
    _
  $region21: #{forward.8} parent=0 // pred_fallthru
    _

// kernel: forward.9
$region0: #{forward.9}
  #allocation0 [shape = 'u32[]', space=smem, size = 0x4, offset = 0x4, fixed_abs, tag = 'smem constant byte address 0x4 - core index']
  #allocation1 [shape = 'u32[144,128]{1,0:T(1,128)}', space=vmem, size = 0x12000, scoped, tag = 'internal scratch']
  %s0 = inlined_call_operand.vmem [shape: bf16[72,64], index: 0, kind: input, shape index: {}]
  %s1 = inlined_call_operand.vmem [shape: f32[18,1], index: 1, kind: input, shape index: {}]
  %s2 = inlined_call_operand.vmem [shape: f32[18,128], index: 2, kind: input, shape index: {}]
  %s3 = inlined_call_operand.vmem [shape: f32[18,128], index: 3, kind: input, shape index: {}]
  %s4 = inlined_call_operand.vmem [shape: bf16[64,128], index: 4, kind: input, shape index: {}]
  %s5 = inlined_call_operand.vmem [shape: f32[1,128], index: 5, kind: input, shape index: {}]
  %s6 = inlined_call_operand.vmem [shape: bf16[128,19], index: 6, kind: input, shape index: {}]
  %s7 = inlined_call_operand.vmem [shape: f32[1,19], index: 7, kind: input, shape index: {}]
  %s8 = inlined_call_operand.vmem [shape: bf16[128,128], index: 8, kind: input, shape index: {}]
  %s9 = inlined_call_operand.vmem [shape: f32[1,128], index: 9, kind: input, shape index: {}]
  %s10 = inlined_call_operand.vmem [shape: f32[90,18], index: 10, kind: input, shape index: {}]
  %s11 = inlined_call_operand.vmem [shape: f32[90,72], index: 11, kind: input, shape index: {}]
  %s12 = inlined_call_operand.vmem [shape: f32[2,90], index: 12, kind: input, shape index: {}]
  %s13 = inlined_call_operand.vmem [shape: f32[2,90], index: 13, kind: input, shape index: {}]
  %s14 = inlined_call_operand.vmem [shape: f32[90,36], index: 14, kind: input, shape index: {}]
  %s15 = inlined_call_operand.vmem [shape: f32[36,4], index: 15, kind: input, shape index: {}]
  %s16 = inlined_call_operand.vmem [shape: f32[128,36], index: 16, kind: input, shape index: {}]
  %s17 = inlined_call_operand.vmem [shape: f32[128,4], index: 17, kind: input, shape index: {}]
  %s18 = inlined_call_operand.vmem [shape: f32[1,4], index: 18, kind: input, shape index: {}]
  %s19 = inlined_call_operand.vmem [shape: f32[18,19], index: 19, kind: output, shape index: {0}]
  %s20 = inlined_call_operand.hbm [shape: f32[2,4], index: 20, kind: output, shape index: {1}]
  %21 = xla_tuple %s19, %s20
  %s22 = sld [smem:[#allocation0]]
  $region94: #{forward.9} parent=0
    _
  %s24 = ssub.s32 1, %s22
  %s25 = scalar_select 0, %s24, %s22
  $region1: #{forward.9} parent=0
    #allocation2 [shape = 'u8[1024]{0}', space=vmem, size = 0x400, scoped, tag = 'output window, operand 1, single buffered']
    #allocation3 [shape = 's32[1]{0}', space=sflag, size = 0x4, scoped, tag = 'scoped memory for forward.9']
    %26 = vsyncpa [#allocation3], 0
    // Predicated region
    $region2: #{forward.9} parent=1 // pred_check
      _
    $region3: #{forward.9} parent=1 // pred_check_branch
      %28 = sbr.rel (0) target = $region5
    $region4: #{forward.9} parent=1 // pred_region
      _
    $region5: #{forward.9} parent=1 // pred_fallthru
      _
    // Predicated region
    $region6: #{forward.9} parent=1 // pred_check
      _
    $region7: #{forward.9} parent=1 // pred_check_branch
      %30 = sbr.rel (0) target = $region9
    $region8: #{forward.9} parent=1 // pred_region
      _
    $region9: #{forward.9} parent=1 // pred_fallthru
      _
    // Predicated region
    $region10: #{forward.9} parent=1 // pred_check
      _
    $region11: #{forward.9} parent=1 // pred_check_branch
      %32 = sbr.rel (0) target = $region13
    $region12: #{forward.9} parent=1 // pred_region
      _
    $region13: #{forward.9} parent=1 // pred_fallthru
      _
    // Predicated region
    $region14: #{forward.9} parent=1 // pred_check
      _
    $region15: #{forward.9} parent=1 // pred_check_branch
      %34 = sbr.rel (0) target = $region17
    $region16: #{forward.9} parent=1 // pred_region
      _
    $region17: #{forward.9} parent=1 // pred_fallthru
      _
    // Predicated region
    $region18: #{forward.9} parent=1 // pred_check
      _
    $region19: #{forward.9} parent=1 // pred_check_branch
      %36 = sbr.rel (0) target = $region21
    $region20: #{forward.9} parent=1 // pred_region
      _
    $region21: #{forward.9} parent=1 // pred_fallthru
      _
    // Predicated region
    $region22: #{forward.9} parent=1 // pred_check
      _
    $region23: #{forward.9} parent=1 // pred_check_branch
      %38 = sbr.rel (0) target = $region25
    $region24: #{forward.9} parent=1 // pred_region
      _
    $region25: #{forward.9} parent=1 // pred_fallthru
      _
    // Predicated region
    $region26: #{forward.9} parent=1 // pred_check
      _
    $region27: #{forward.9} parent=1 // pred_check_branch
      %40 = sbr.rel (0) target = $region29
    $region28: #{forward.9} parent=1 // pred_region
      _
    $region29: #{forward.9} parent=1 // pred_fallthru
      _
    // Predicated region
    $region30: #{forward.9} parent=1 // pred_check
      _
    $region31: #{forward.9} parent=1 // pred_check_branch
      %42 = sbr.rel (0) target = $region33
    $region32: #{forward.9} parent=1 // pred_region
      _
    $region33: #{forward.9} parent=1 // pred_fallthru
      _
    // Predicated region
    $region34: #{forward.9} parent=1 // pred_check
      _
    $region35: #{forward.9} parent=1 // pred_check_branch
      %44 = sbr.rel (0) target = $region37
    $region36: #{forward.9} parent=1 // pred_region
      _
    $region37: #{forward.9} parent=1 // pred_fallthru
      _
    // Predicated region
    $region38: #{forward.9} parent=1 // pred_check
      _
    $region39: #{forward.9} parent=1 // pred_check_branch
      %46 = sbr.rel (0) target = $region41
    $region40: #{forward.9} parent=1 // pred_region
      _
    $region41: #{forward.9} parent=1 // pred_fallthru
      _
    // Predicated region
    $region42: #{forward.9} parent=1 // pred_check
      _
    $region43: #{forward.9} parent=1 // pred_check_branch
      %48 = sbr.rel (0) target = $region45
    $region44: #{forward.9} parent=1 // pred_region
      _
    $region45: #{forward.9} parent=1 // pred_fallthru
      _
    // Predicated region
    $region46: #{forward.9} parent=1 // pred_check
      _
    $region47: #{forward.9} parent=1 // pred_check_branch
      %50 = sbr.rel (0) target = $region49
    $region48: #{forward.9} parent=1 // pred_region
      _
    $region49: #{forward.9} parent=1 // pred_fallthru
      _
    // Predicated region
    $region50: #{forward.9} parent=1 // pred_check
      _
    $region51: #{forward.9} parent=1 // pred_check_branch
      %52 = sbr.rel (0) target = $region53
    $region52: #{forward.9} parent=1 // pred_region
      _
    $region53: #{forward.9} parent=1 // pred_fallthru
      _
    // Predicated region
    $region54: #{forward.9} parent=1 // pred_check
      _
    $region55: #{forward.9} parent=1 // pred_check_branch
      %54 = sbr.rel (0) target = $region57
    $region56: #{forward.9} parent=1 // pred_region
      _
    $region57: #{forward.9} parent=1 // pred_fallthru
      _
    // Predicated region
    $region58: #{forward.9} parent=1 // pred_check
      _
    $region59: #{forward.9} parent=1 // pred_check_branch
      %56 = sbr.rel (0) target = $region61
    $region60: #{forward.9} parent=1 // pred_region
      _
    $region61: #{forward.9} parent=1 // pred_fallthru
      _
    // Predicated region
    $region62: #{forward.9} parent=1 // pred_check
      _
    $region63: #{forward.9} parent=1 // pred_check_branch
      %58 = sbr.rel (0) target = $region65
    $region64: #{forward.9} parent=1 // pred_region
      _
    $region65: #{forward.9} parent=1 // pred_fallthru
      _
    // Predicated region
    $region66: #{forward.9} parent=1 // pred_check
      _
    $region67: #{forward.9} parent=1 // pred_check_branch
      %60 = sbr.rel (0) target = $region69
    $region68: #{forward.9} parent=1 // pred_region
      _
    $region69: #{forward.9} parent=1 // pred_fallthru
      _
    // Predicated region
    $region70: #{forward.9} parent=1 // pred_check
      _
    $region71: #{forward.9} parent=1 // pred_check_branch
      %62 = sbr.rel (0) target = $region73
    $region72: #{forward.9} parent=1 // pred_region
      _
    $region73: #{forward.9} parent=1 // pred_fallthru
      _
    // Predicated region
    $region74: #{forward.9} parent=1 // pred_check
      _
    $region75: #{forward.9} parent=1 // pred_check_branch
      %64 = sbr.rel (0) target = $region77
    $region76: #{forward.9} parent=1 // pred_region
      _
    $region77: #{forward.9} parent=1 // pred_fallthru
      _
    %v66 = vld [vmem:[%s0] sm:$0xf]
    %v67 = vld [vmem:[%s0 + $0x4] sm:$0xf]
    %v68 = vld [vmem:[%s0 + $0x8] sm:$0xf]
    %v69 = vld [vmem:[%s0 + $0xc] sm:$0xf]
    %v70 = vld [vmem:[%s0 + $0x10] sm:$0xf]
    %v71 = vld [vmem:[%s0 + $0x14] sm:$0xf]
    %v72 = vld [vmem:[%s0 + $0x18] sm:$0xf]
    %v73 = vld [vmem:[%s0 + $0x1c] sm:$0xf]
    %v74 = vld [vmem:[%s0 + $0x20] sm:$0xf]
    %v75 = vld [vmem:[%s4] sm:$0xf]
    %v76 = vld [vmem:[%s4 + $0x4] sm:$0xf]
    %v77 = vld [vmem:[%s4 + $0x8] sm:$0xf]
    %v78 = vld [vmem:[%s4 + $0xc] sm:$0xf]
    %v79 = vld [vmem:[%s4 + $0x10] sm:$0xf]
    %v80 = vld [vmem:[%s4 + $0x14] sm:$0xf]
    %v81 = vld [vmem:[%s4 + $0x18] sm:$0xf]
    %v82 = vld [vmem:[%s4 + $0x1c] sm:$0xf]
    %v83 = vld [vmem:[%s5] sm:$0x1]
    %v85 = vlaneseq
    %v86 = vshrl.u32 %v85, 7
    %v87 = vsub.s32 0, %v86
    %v88 = vrot.slane %v83, %v87
    %v99 = vunpack.c.l.b16 %v66
    %v100 = vunpack.c.l.b16 %v67
    %v101 = vunpack.c.l.b16 %v68
    %v102 = vunpack.c.l.b16 %v69
    %v103 = vunpack.c.l.b16 %v70
    %v104 = vunpack.c.l.b16 %v71
    %v105 = vunpack.c.l.b16 %v72
    %v106 = vunpack.c.l.b16 %v73
    %v107 = vunpack.c.l.b16 %v74
    %v108 = vpack.c.b16 %v100, %v99
    %v109 = vpack.c.b16 %v102, %v101
    %v110 = vpack.c.b16 %v104, %v103
    %v111 = vpack.c.b16 %v106, %v105
    %v112 = vpack.c.b16 %v107, %v107
    %v121 = vunpack.c.l.b16 %v75
    %v122 = vunpack.c.l.b16 %v76
    %v123 = vunpack.c.l.b16 %v77
    %v124 = vunpack.c.l.b16 %v78
    %v125 = vunpack.c.l.b16 %v79
    %v126 = vunpack.c.l.b16 %v80
    %v127 = vunpack.c.l.b16 %v81
    %v128 = vunpack.c.l.b16 %v82
    %v129 = vpack.c.b16 %v122, %v121
    %v130 = vpack.c.b16 %v124, %v123
    %v131 = vpack.c.b16 %v126, %v125
    %v132 = vpack.c.b16 %v128, %v127
    %vm137 = vcmask 523264
    %v139 = vsel %vm137, %v108, 0
    %v142 = vsel %vm137, %v109, 0
    %v145 = vsel %vm137, %v110, 0
    %v148 = vsel %vm137, %v111, 0
    %v151 = vsel %vm137, %v112, 0
    %153 = vmatprep.subr.bf16.mxu0 0
    %154 = vmatpush1.bf16.msra.mxu0 0
    %155 = vmatprep.subr.bf16.mxu0 0
    %156 = vmatpush1.bf16.msra.mxu0 0
    %157 = vmatprep.subr.bf16.mxu0 0
    %158 = vmatpush1.bf16.msra.mxu0 0
    %159 = vmatprep.subr.bf16.mxu0 0
    %160 = vmatpush1.bf16.msra.mxu0 0
    %161 = vmatprep.subr.bf16.mxu0 0
    %162 = vmatpush1.bf16.msra.mxu0 %v132
    %163 = vmatprep.subr.bf16.mxu0 0
    %164 = vmatpush1.bf16.msra.mxu0 %v131
    %165 = vmatprep.subr.bf16.mxu0 0
    %166 = vmatpush1.bf16.msra.mxu0 %v130
    %167 = vmatprep.subr.bf16.mxu0 0
    %168 = vmatpush1.bf16.msra.mxu0 %v129
    %169 = vmatprep.subr.bf16.mxu0 0
    %170 = vmatpush2.bf16.msra.mxu0 0
    %171 = vmatprep.subr.bf16.mxu0 0
    %172 = vmatpush2.bf16.msra.mxu0 0
    %173 = vmatprep.subr.bf16.mxu0 0
    %174 = vmatpush2.bf16.msra.mxu0 0
    %175 = vmatprep.subr.bf16.mxu0 0
    %176 = vmatpush2.bf16.msra.mxu0 0
    %177 = vmatprep.subr.bf16.mxu0 0
    %178 = vmatpush2.bf16.msra.mxu0 0
    %179 = vmatprep.subr.bf16.mxu0 0
    %180 = vmatpush2.bf16.msra.mxu0 0
    %181 = vmatprep.subr.bf16.mxu0 0
    %182 = vmatpush2.bf16.msra.mxu0 0
    %183 = vmatprep.subr.bf16.mxu0 0
    %184 = vmatpush2.bf16.msra.mxu0 0
    %185 = vmatprep.mubr.bf16.mxu0 0
    %186 = vmatmul.mubr.bf16.gmra.mxu0 %v139
    %v187 = vpop.f32.mrf.mxu0
    %v188 = vadd.f32 %v88, %v187
    %v189 = vpop.f32.mrf.mxu0
    %v190 = vpop.f32.mrf.mxu0
    %v191 = vadd.f32 %v88, %v190
    %v192 = vpop.f32.mrf.mxu0
    %193 = vmatprep.mubr.bf16.mxu0 0
    %194 = vmatmul.mubr.bf16.gmra.mxu0 %v142
    %v195 = vpop.f32.mrf.mxu0
    %v196 = vadd.f32 %v88, %v195
    %v197 = vpop.f32.mrf.mxu0
    %v198 = vpop.f32.mrf.mxu0
    %v199 = vadd.f32 %v88, %v198
    %v200 = vpop.f32.mrf.mxu0
    %201 = vmatprep.mubr.bf16.mxu0 0
    %202 = vmatmul.mubr.bf16.gmra.mxu0 %v145
    %v203 = vpop.f32.mrf.mxu0
    %v204 = vadd.f32 %v88, %v203
    %v205 = vpop.f32.mrf.mxu0
    %v206 = vpop.f32.mrf.mxu0
    %v207 = vadd.f32 %v88, %v206
    %v208 = vpop.f32.mrf.mxu0
    %209 = vmatprep.mubr.bf16.mxu0 0
    %210 = vmatmul.mubr.bf16.gmra.mxu0 %v148
    %v211 = vpop.f32.mrf.mxu0
    %v212 = vadd.f32 %v88, %v211
    %v213 = vpop.f32.mrf.mxu0
    %v214 = vpop.f32.mrf.mxu0
    %v215 = vadd.f32 %v88, %v214
    %v216 = vpop.f32.mrf.mxu0
    %217 = vmatprep.mubr.bf16.mxu0 0
    %218 = vmatmul.mubr.bf16.gmra.mxu0 %v151
    %v219 = vpop.f32.mrf.mxu0
    %v220 = vadd.f32 %v88, %v219
    %v221 = vpop.f32.mrf.mxu0
    %v222 = vpop.f32.mrf.mxu0
    %v223 = vpop.f32.mrf.mxu0
    %224 = vdwg.mxu0
    %v225 = vld [vmem:[%s1] sm:$0xff]
    %v226 = vld [vmem:[%s1 + $0x8] sm:$0xff]
    %v227 = vld [vmem:[%s1 + $0x10] sm:$0x3]
    %v228 = vld [vmem:[%s2] sm:$0xff]
    %v229 = vld [vmem:[%s2 + $0x8] sm:$0xff]
    %v230 = vld [vmem:[%s2 + $0x10] sm:$0x3]
    %232 = vset.pattern.permute.xlu0 0
    %233 = vperm.xlu0 %232, %v225
    %v234 = vpop.permute.xlu0 %233
    %237 = vset.pattern.permute.xlu0 0
    %238 = vperm.xlu0 %237, %v226
    %v239 = vpop.permute.xlu0 %238
    %242 = vset.pattern.permute.xlu0 0
    %243 = vperm.xlu0 %242, %v227
    %v244 = vpop.permute.xlu0 %243
    %v246 = vmul.f32 %v234, %v228
    %v247 = vmul.f32 %v239, %v229
    %v248 = vmul.f32 %v244, %v230
    %v249 = vld [vmem:[%s3] sm:$0xff]
    %v250 = vld [vmem:[%s3 + $0x8] sm:$0xff]
    %v251 = vld [vmem:[%s3 + $0x10] sm:$0x3]
    %v252 = vadd.f32 %v246, %v249
    %v253 = vadd.f32 %v247, %v250
    %v254 = vadd.f32 %v248, %v251
    %vm255 = vcmp.ge.f32.partialorder %v252, 0.0
    %vm256 = vcmp.ge.f32.partialorder %v253, 0.0
    %vm257 = vcmp.ge.f32.partialorder %v254, 0.0
    %v258 = vmul.f32 %v252, 0.01
    %v259 = vmul.f32 %v253, 0.01
    %v260 = vmul.f32 %v254, 0.01
    %v261 = vsel %vm255, %v252, %v258
    %v262 = vsel %vm256, %v253, %v259
    %v263 = vsel %vm257, %v254, %v260
    %v264 = vpack.c.bf16 %v262, %v261
    %v265 = vpack.c.bf16 %v263, %v263
    %v266 = vld [vmem:[%s6] sm:$0xf]
    %v267 = vld [vmem:[%s6 + $0x4] sm:$0xf]
    %v268 = vld [vmem:[%s6 + $0x8] sm:$0xf]
    %v269 = vld [vmem:[%s6 + $0xc] sm:$0xf]
    %v270 = vld [vmem:[%s6 + $0x10] sm:$0xf]
    %v271 = vld [vmem:[%s6 + $0x14] sm:$0xf]
    %v272 = vld [vmem:[%s6 + $0x18] sm:$0xf]
    %v273 = vld [vmem:[%s6 + $0x1c] sm:$0xf]
    %v274 = vld [vmem:[%s6 + $0x20] sm:$0xf]
    %v275 = vld [vmem:[%s6 + $0x24] sm:$0xf]
    %v276 = vld [vmem:[%s6 + $0x28] sm:$0xf]
    %v277 = vld [vmem:[%s6 + $0x2c] sm:$0xf]
    %v278 = vld [vmem:[%s6 + $0x30] sm:$0xf]
    %v279 = vld [vmem:[%s6 + $0x34] sm:$0xf]
    %v280 = vld [vmem:[%s6 + $0x38] sm:$0xf]
    %v281 = vld [vmem:[%s6 + $0x3c] sm:$0xf]
    %v282 = vld [vmem:[%s7] sm:$0x1]
    %v284 = vlaneseq
    %v285 = vshrl.u32 %v284, 7
    %v286 = vsub.s32 0, %v285
    %v287 = vrot.slane %v282, %v286
    %v305 = vunpack.c.l.b16 %v266
    %v306 = vunpack.c.l.b16 %v267
    %v307 = vunpack.c.l.b16 %v268
    %v308 = vunpack.c.l.b16 %v269
    %v309 = vunpack.c.l.b16 %v270
    %v310 = vunpack.c.l.b16 %v271
    %v311 = vunpack.c.l.b16 %v272
    %v312 = vunpack.c.l.b16 %v273
    %v313 = vunpack.c.l.b16 %v274
    %v314 = vunpack.c.l.b16 %v275
    %v315 = vunpack.c.l.b16 %v276
    %v316 = vunpack.c.l.b16 %v277
    %v317 = vunpack.c.l.b16 %v278
    %v318 = vunpack.c.l.b16 %v279
    %v319 = vunpack.c.l.b16 %v280
    %v320 = vunpack.c.l.b16 %v281
    %v321 = vpack.c.b16 %v306, %v305
    %v322 = vpack.c.b16 %v308, %v307
    %v323 = vpack.c.b16 %v310, %v309
    %v324 = vpack.c.b16 %v312, %v311
    %v325 = vpack.c.b16 %v314, %v313
    %v326 = vpack.c.b16 %v316, %v315
    %v327 = vpack.c.b16 %v318, %v317
    %v328 = vpack.c.b16 %v320, %v319
    %337 = vmatprep.subr.bf16.mxu0 0
    %338 = vmatpush1.bf16.msra.mxu0 %v328
    %339 = vmatprep.subr.bf16.mxu0 0
    %340 = vmatpush1.bf16.msra.mxu0 %v327
    %341 = vmatprep.subr.bf16.mxu0 0
    %342 = vmatpush1.bf16.msra.mxu0 %v326
    %343 = vmatprep.subr.bf16.mxu0 0
    %344 = vmatpush1.bf16.msra.mxu0 %v325
    %345 = vmatprep.subr.bf16.mxu0 0
    %346 = vmatpush1.bf16.msra.mxu0 %v324
    %347 = vmatprep.subr.bf16.mxu0 0
    %348 = vmatpush1.bf16.msra.mxu0 %v323
    %349 = vmatprep.subr.bf16.mxu0 0
    %350 = vmatpush1.bf16.msra.mxu0 %v322
    %351 = vmatprep.subr.bf16.mxu0 0
    %352 = vmatpush1.bf16.msra.mxu0 %v321
    %353 = vmatprep.subr.bf16.mxu0 0
    %354 = vmatpush2.bf16.msra.mxu0 0
    %355 = vmatprep.subr.bf16.mxu0 0
    %356 = vmatpush2.bf16.msra.mxu0 0
    %357 = vmatprep.subr.bf16.mxu0 0
    %358 = vmatpush2.bf16.msra.mxu0 0
    %359 = vmatprep.subr.bf16.mxu0 0
    %360 = vmatpush2.bf16.msra.mxu0 0
    %361 = vmatprep.subr.bf16.mxu0 0
    %362 = vmatpush2.bf16.msra.mxu0 0
    %363 = vmatprep.subr.bf16.mxu0 0
    %364 = vmatpush2.bf16.msra.mxu0 0
    %365 = vmatprep.subr.bf16.mxu0 0
    %366 = vmatpush2.bf16.msra.mxu0 0
    %367 = vmatprep.subr.bf16.mxu0 0
    %368 = vmatpush2.bf16.msra.mxu0 0
    %369 = vmatprep.mubr.bf16.mxu0 0
    %370 = vmatmul.mubr.bf16.gmra.mxu0 %v264
    %v371 = vpop.f32.mrf.mxu0
    %v372 = vadd.f32 %v287, %v371
    %v373 = vpop.f32.mrf.mxu0
    %v374 = vpop.f32.mrf.mxu0
    %v375 = vadd.f32 %v287, %v374
    %v376 = vpop.f32.mrf.mxu0
    %377 = vmatprep.mubr.bf16.mxu0 0
    %378 = vmatmul.mubr.bf16.gmra.mxu0 %v265
    %v379 = vpop.f32.mrf.mxu0
    %v380 = vadd.f32 %v287, %v379
    %v381 = vpop.f32.mrf.mxu0
    %v382 = vpop.f32.mrf.mxu0
    %v383 = vpop.f32.mrf.mxu0
    %384 = vdwg.mxu0
    %vm385 = vcmask 154624
    %386 = vst.msk [vmem:[%s19] sm:$0xff] %vm385, %v372
    %387 = vst.msk [vmem:[%s19 + $0x8] sm:$0xff] %vm385, %v375
    %vm388 = vcmask 148480
    %389 = vst.msk [vmem:[%s19 + $0x10] sm:$0x3] %vm388, %v380
    %v390 = vld [vmem:[%s8] sm:$0xf]
    %v391 = vld [vmem:[%s8 + $0x4] sm:$0xf]
    %v392 = vld [vmem:[%s8 + $0x8] sm:$0xf]
    %v393 = vld [vmem:[%s8 + $0xc] sm:$0xf]
    %v394 = vld [vmem:[%s8 + $0x10] sm:$0xf]
    %v395 = vld [vmem:[%s8 + $0x14] sm:$0xf]
    %v396 = vld [vmem:[%s8 + $0x18] sm:$0xf]
    %v397 = vld [vmem:[%s8 + $0x1c] sm:$0xf]
    %v398 = vld [vmem:[%s8 + $0x20] sm:$0xf]
    %v399 = vld [vmem:[%s8 + $0x24] sm:$0xf]
    %v400 = vld [vmem:[%s8 + $0x28] sm:$0xf]
    %v401 = vld [vmem:[%s8 + $0x2c] sm:$0xf]
    %v402 = vld [vmem:[%s8 + $0x30] sm:$0xf]
    %v403 = vld [vmem:[%s8 + $0x34] sm:$0xf]
    %v404 = vld [vmem:[%s8 + $0x38] sm:$0xf]
    %v405 = vld [vmem:[%s8 + $0x3c] sm:$0xf]
    %v422 = vunpack.c.l.b16 %v390
    %v423 = vunpack.c.l.b16 %v391
    %v424 = vunpack.c.l.b16 %v392
    %v425 = vunpack.c.l.b16 %v393
    %v426 = vunpack.c.l.b16 %v394
    %v427 = vunpack.c.l.b16 %v395
    %v428 = vunpack.c.l.b16 %v396
    %v429 = vunpack.c.l.b16 %v397
    %v430 = vunpack.c.l.b16 %v398
    %v431 = vunpack.c.l.b16 %v399
    %v432 = vunpack.c.l.b16 %v400
    %v433 = vunpack.c.l.b16 %v401
    %v434 = vunpack.c.l.b16 %v402
    %v435 = vunpack.c.l.b16 %v403
    %v436 = vunpack.c.l.b16 %v404
    %v437 = vunpack.c.l.b16 %v405
    %v438 = vpack.c.b16 %v423, %v422
    %v439 = vpack.c.b16 %v425, %v424
    %v440 = vpack.c.b16 %v427, %v426
    %v441 = vpack.c.b16 %v429, %v428
    %v442 = vpack.c.b16 %v431, %v430
    %v443 = vpack.c.b16 %v433, %v432
    %v444 = vpack.c.b16 %v435, %v434
    %v445 = vpack.c.b16 %v437, %v436
    %454 = vmatprep.subr.bf16.mxu0 0
    %455 = vmatpush1.bf16.msra.mxu0 %v445
    %456 = vmatprep.subr.bf16.mxu0 0
    %457 = vmatpush1.bf16.msra.mxu0 %v444
    %458 = vmatprep.subr.bf16.mxu0 0
    %459 = vmatpush1.bf16.msra.mxu0 %v443
    %460 = vmatprep.subr.bf16.mxu0 0
    %461 = vmatpush1.bf16.msra.mxu0 %v442
    %462 = vmatprep.subr.bf16.mxu0 0
    %463 = vmatpush1.bf16.msra.mxu0 %v441
    %464 = vmatprep.subr.bf16.mxu0 0
    %465 = vmatpush1.bf16.msra.mxu0 %v440
    %466 = vmatprep.subr.bf16.mxu0 0
    %467 = vmatpush1.bf16.msra.mxu0 %v439
    %468 = vmatprep.subr.bf16.mxu0 0
    %469 = vmatpush1.bf16.msra.mxu0 %v438
    %470 = vmatprep.subr.bf16.mxu0 0
    %471 = vmatpush2.bf16.msra.mxu0 0
    %472 = vmatprep.subr.bf16.mxu0 0
    %473 = vmatpush2.bf16.msra.mxu0 0
    %474 = vmatprep.subr.bf16.mxu0 0
    %475 = vmatpush2.bf16.msra.mxu0 0
    %476 = vmatprep.subr.bf16.mxu0 0
    %477 = vmatpush2.bf16.msra.mxu0 0
    %478 = vmatprep.subr.bf16.mxu0 0
    %479 = vmatpush2.bf16.msra.mxu0 0
    %480 = vmatprep.subr.bf16.mxu0 0
    %481 = vmatpush2.bf16.msra.mxu0 0
    %482 = vmatprep.subr.bf16.mxu0 0
    %483 = vmatpush2.bf16.msra.mxu0 0
    %484 = vmatprep.subr.bf16.mxu0 0
    %485 = vmatpush2.bf16.msra.mxu0 0
    %486 = vmatprep.mubr.bf16.mxu0 0
    %487 = vmatmul.mubr.bf16.gmra.mxu0 %v264
    %v488 = vpop.f32.mrf.mxu0
    %v489 = vadd.f32 0.0, %v488
    %v490 = vpop.f32.mrf.mxu0
    %v491 = vpop.f32.mrf.mxu0
    %v492 = vadd.f32 0.0, %v491
    %v493 = vpop.f32.mrf.mxu0
    %494 = vmatprep.mubr.bf16.mxu0 0
    %495 = vmatmul.mubr.bf16.gmra.mxu0 %v265
    %v496 = vpop.f32.mrf.mxu0
    %v497 = vadd.f32 0.0, %v496
    %v498 = vpop.f32.mrf.mxu0
    %v499 = vpop.f32.mrf.mxu0
    %v500 = vpop.f32.mrf.mxu0
    %501 = vdwg.mxu0
    %v502 = vpack.c.bf16 %v191, %v188
    %v503 = vpack.c.bf16 %v199, %v196
    %v504 = vpack.c.bf16 %v207, %v204
    %v505 = vpack.c.bf16 %v215, %v212
    %v506 = vpack.c.bf16 %v220, %v220
    %507 = vmatprep.subr.bf16.mxu0 0
    %508 = vmatpush1.bf16.msra.mxu0 %v445
    %509 = vmatprep.subr.bf16.mxu0 0
    %510 = vmatpush1.bf16.msra.mxu0 %v444
    %511 = vmatprep.subr.bf16.mxu0 0
    %512 = vmatpush1.bf16.msra.mxu0 %v443
    %513 = vmatprep.subr.bf16.mxu0 0
    %514 = vmatpush1.bf16.msra.mxu0 %v442
    %515 = vmatprep.subr.bf16.mxu0 0
    %516 = vmatpush1.bf16.msra.mxu0 %v441
    %517 = vmatprep.subr.bf16.mxu0 0
    %518 = vmatpush1.bf16.msra.mxu0 %v440
    %519 = vmatprep.subr.bf16.mxu0 0
    %520 = vmatpush1.bf16.msra.mxu0 %v439
    %521 = vmatprep.subr.bf16.mxu0 0
    %522 = vmatpush1.bf16.msra.mxu0 %v438
    %523 = vmatprep.subr.bf16.mxu0 0
    %524 = vmatpush2.bf16.msra.mxu0 0
    %525 = vmatprep.subr.bf16.mxu0 0
    %526 = vmatpush2.bf16.msra.mxu0 0
    %527 = vmatprep.subr.bf16.mxu0 0
    %528 = vmatpush2.bf16.msra.mxu0 0
    %529 = vmatprep.subr.bf16.mxu0 0
    %530 = vmatpush2.bf16.msra.mxu0 0
    %531 = vmatprep.subr.bf16.mxu0 0
    %532 = vmatpush2.bf16.msra.mxu0 0
    %533 = vmatprep.subr.bf16.mxu0 0
    %534 = vmatpush2.bf16.msra.mxu0 0
    %535 = vmatprep.subr.bf16.mxu0 0
    %536 = vmatpush2.bf16.msra.mxu0 0
    %537 = vmatprep.subr.bf16.mxu0 0
    %538 = vmatpush2.bf16.msra.mxu0 0
    %539 = vmatprep.mubr.bf16.mxu0 0
    %540 = vmatmul.mubr.bf16.gmra.mxu0 %v502
    %v541 = vpop.f32.mrf.mxu0
    %v542 = vadd.f32 0.0, %v541
    %v543 = vpop.f32.mrf.mxu0
    %v544 = vpop.f32.mrf.mxu0
    %v545 = vadd.f32 0.0, %v544
    %v546 = vpop.f32.mrf.mxu0
    %547 = vmatprep.mubr.bf16.mxu0 0
    %548 = vmatmul.mubr.bf16.gmra.mxu0 %v503
    %v549 = vpop.f32.mrf.mxu0
    %v550 = vadd.f32 0.0, %v549
    %v551 = vpop.f32.mrf.mxu0
    %v552 = vpop.f32.mrf.mxu0
    %v553 = vadd.f32 0.0, %v552
    %v554 = vpop.f32.mrf.mxu0
    %555 = vmatprep.mubr.bf16.mxu0 0
    %556 = vmatmul.mubr.bf16.gmra.mxu0 %v504
    %v557 = vpop.f32.mrf.mxu0
    %v558 = vadd.f32 0.0, %v557
    %v559 = vpop.f32.mrf.mxu0
    %v560 = vpop.f32.mrf.mxu0
    %v561 = vadd.f32 0.0, %v560
    %v562 = vpop.f32.mrf.mxu0
    %563 = vmatprep.mubr.bf16.mxu0 0
    %564 = vmatmul.mubr.bf16.gmra.mxu0 %v505
    %v565 = vpop.f32.mrf.mxu0
    %v566 = vadd.f32 0.0, %v565
    %v567 = vpop.f32.mrf.mxu0
    %v568 = vpop.f32.mrf.mxu0
    %v569 = vadd.f32 0.0, %v568
    %v570 = vpop.f32.mrf.mxu0
    %571 = vmatprep.mubr.bf16.mxu0 0
    %572 = vmatmul.mubr.bf16.gmra.mxu0 %v506
    %v573 = vpop.f32.mrf.mxu0
    %v574 = vadd.f32 0.0, %v573
    %v575 = vpop.f32.mrf.mxu0
    %v576 = vpop.f32.mrf.mxu0
    %v577 = vpop.f32.mrf.mxu0
    %578 = vdwg.mxu0
    %v579 = vld [vmem:[%s10] sm:$0xff]
    %v580 = vld [vmem:[%s10 + $0x8] sm:$0xff]
    %v581 = vld [vmem:[%s10 + $0x10] sm:$0xff]
    %v582 = vld [vmem:[%s10 + $0x18] sm:$0xff]
    %v583 = vld [vmem:[%s10 + $0x20] sm:$0xff]
    %v584 = vld [vmem:[%s10 + $0x28] sm:$0xff]
    %v585 = vld [vmem:[%s10 + $0x30] sm:$0xff]
    %v586 = vld [vmem:[%s10 + $0x38] sm:$0xff]
    %v587 = vld [vmem:[%s10 + $0x40] sm:$0xff]
    %v588 = vld [vmem:[%s10 + $0x48] sm:$0xff]
    %v589 = vld [vmem:[%s10 + $0x50] sm:$0xff]
    %v590 = vld [vmem:[%s10 + $0x58] sm:$0x3]
    %v591 = vld [vmem:[%s11] sm:$0xff]
    %v592 = vld [vmem:[%s11 + $0x8] sm:$0xff]
    %v593 = vld [vmem:[%s11 + $0x10] sm:$0xff]
    %v594 = vld [vmem:[%s11 + $0x18] sm:$0xff]
    %v595 = vld [vmem:[%s11 + $0x20] sm:$0xff]
    %v596 = vld [vmem:[%s11 + $0x28] sm:$0xff]
    %v597 = vld [vmem:[%s11 + $0x30] sm:$0xff]
    %v598 = vld [vmem:[%s11 + $0x38] sm:$0xff]
    %v599 = vld [vmem:[%s11 + $0x40] sm:$0xff]
    %v600 = vld [vmem:[%s11 + $0x48] sm:$0xff]
    %v601 = vld [vmem:[%s11 + $0x50] sm:$0xff]
    %v602 = vld [vmem:[%s11 + $0x58] sm:$0x3]
    %vm603 = vcmask 588800
    %v605 = vsel %vm603, %v591, 0
    %v608 = vsel %vm603, %v592, 0
    %v611 = vsel %vm603, %v593, 0
    %v614 = vsel %vm603, %v594, 0
    %v617 = vsel %vm603, %v595, 0
    %v620 = vsel %vm603, %v596, 0
    %v623 = vsel %vm603, %v597, 0
    %v626 = vsel %vm603, %v598, 0
    %v629 = vsel %vm603, %v599, 0
    %v632 = vsel %vm603, %v600, 0
    %v635 = vsel %vm603, %v601, 0
    %v638 = vsel %vm603, %v602, 0
    %640 = vmatprep.subr.mxu0 0.0
    %641 = vmatpush1.msra.mxu0 0.0
    %642 = vmatprep.subr.mxu0 0.0
    %643 = vmatpush1.msra.mxu0 0.0
    %644 = vmatprep.subr.mxu0 0.0
    %645 = vmatpush1.msra.mxu0 0.0
    %646 = vmatprep.subr.mxu0 0.0
    %647 = vmatpush1.msra.mxu0 0.0
    %648 = vmatprep.subr.mxu0 0.0
    %649 = vmatpush1.msra.mxu0 0.0
    %650 = vmatprep.subr.mxu0 0.0
    %651 = vmatpush1.msra.mxu0 0.0
    %652 = vmatprep.subr.mxu0 0.0
    %653 = vmatpush1.msra.mxu0 0.0
    %654 = vmatprep.subr.mxu0 0.0
    %655 = vmatpush1.msra.mxu0 %v574
    %656 = vmatprep.subr.mxu0 0.0
    %657 = vmatpush1.msra.mxu0 %v569
    %658 = vmatprep.subr.mxu0 0.0
    %659 = vmatpush1.msra.mxu0 %v566
    %660 = vmatprep.subr.mxu0 0.0
    %661 = vmatpush1.msra.mxu0 %v561
    %662 = vmatprep.subr.mxu0 0.0
    %663 = vmatpush1.msra.mxu0 %v558
    %664 = vmatprep.subr.mxu0 0.0
    %665 = vmatpush1.msra.mxu0 %v553
    %666 = vmatprep.subr.mxu0 0.0
    %667 = vmatpush1.msra.mxu0 %v550
    %668 = vmatprep.subr.mxu0 0.0
    %669 = vmatpush1.msra.mxu0 %v545
    %670 = vmatprep.subr.mxu0 0.0
    %671 = vmatpush1.msra.mxu0 %v542
    %672 = vmatprep.subr.mxu0 0.0
    %673 = vmatpush2.msra.mxu0 0.0
    %674 = vmatprep.subr.mxu0 0.0
    %675 = vmatpush2.msra.mxu0 0.0
    %676 = vmatprep.subr.mxu0 0.0
    %677 = vmatpush2.msra.mxu0 0.0
    %678 = vmatprep.subr.mxu0 0.0
    %679 = vmatpush2.msra.mxu0 0.0
    %680 = vmatprep.subr.mxu0 0.0
    %681 = vmatpush2.msra.mxu0 0.0
    %682 = vmatprep.subr.mxu0 0.0
    %683 = vmatpush2.msra.mxu0 0.0
    %684 = vmatprep.subr.mxu0 0.0
    %685 = vmatpush2.msra.mxu0 0.0
    %686 = vmatprep.subr.mxu0 0.0
    %687 = vmatpush2.msra.mxu0 0.0
    %688 = vmatprep.subr.mxu0 0.0
    %689 = vmatpush2.msra.mxu0 0.0
    %690 = vmatprep.subr.mxu0 0.0
    %691 = vmatpush2.msra.mxu0 0.0
    %692 = vmatprep.subr.mxu0 0.0
    %693 = vmatpush2.msra.mxu0 0.0
    %694 = vmatprep.subr.mxu0 0.0
    %695 = vmatpush2.msra.mxu0 0.0
    %696 = vmatprep.subr.mxu0 0.0
    %697 = vmatpush2.msra.mxu0 0.0
    %698 = vmatprep.subr.mxu0 0.0
    %699 = vmatpush2.msra.mxu0 0.0
    %700 = vmatprep.subr.mxu0 0.0
    %701 = vmatpush2.msra.mxu0 0.0
    %702 = vmatprep.subr.mxu0 0.0
    %703 = vmatpush2.msra.mxu0 0.0
    %704 = vmatprep.mubr.f32.mxu0 0.0
    %705 = vmatmul.mubr.f32.gmra.mxu0 %v605
    %v706 = vpop.f32.mrf.mxu0
    %v707 = vadd.f32 0.0, %v706
    %v708 = vpop.f32.mrf.mxu0
    %709 = vmatprep.mubr.f32.mxu0 0.0
    %710 = vmatmul.mubr.f32.gmra.mxu0 %v608
    %v711 = vpop.f32.mrf.mxu0
    %v712 = vadd.f32 0.0, %v711
    %v713 = vpop.f32.mrf.mxu0
    %714 = vmatprep.mubr.f32.mxu0 0.0
    %715 = vmatmul.mubr.f32.gmra.mxu0 %v611
    %v716 = vpop.f32.mrf.mxu0
    %v717 = vadd.f32 0.0, %v716
    %v718 = vpop.f32.mrf.mxu0
    %719 = vmatprep.mubr.f32.mxu0 0.0
    %720 = vmatmul.mubr.f32.gmra.mxu0 %v614
    %v721 = vpop.f32.mrf.mxu0
    %v722 = vadd.f32 0.0, %v721
    %v723 = vpop.f32.mrf.mxu0
    %724 = vmatprep.mubr.f32.mxu0 0.0
    %725 = vmatmul.mubr.f32.gmra.mxu0 %v617
    %v726 = vpop.f32.mrf.mxu0
    %v727 = vadd.f32 0.0, %v726
    %v728 = vpop.f32.mrf.mxu0
    %729 = vmatprep.mubr.f32.mxu0 0.0
    %730 = vmatmul.mubr.f32.gmra.mxu0 %v620
    %v731 = vpop.f32.mrf.mxu0
    %v732 = vadd.f32 0.0, %v731
    %v733 = vpop.f32.mrf.mxu0
    %734 = vmatprep.mubr.f32.mxu0 0.0
    %735 = vmatmul.mubr.f32.gmra.mxu0 %v623
    %v736 = vpop.f32.mrf.mxu0
    %v737 = vadd.f32 0.0, %v736
    %v738 = vpop.f32.mrf.mxu0
    %739 = vmatprep.mubr.f32.mxu0 0.0
    %740 = vmatmul.mubr.f32.gmra.mxu0 %v626
    %v741 = vpop.f32.mrf.mxu0
    %v742 = vadd.f32 0.0, %v741
    %v743 = vpop.f32.mrf.mxu0
    %744 = vmatprep.mubr.f32.mxu0 0.0
    %745 = vmatmul.mubr.f32.gmra.mxu0 %v629
    %v746 = vpop.f32.mrf.mxu0
    %v747 = vadd.f32 0.0, %v746
    %v748 = vpop.f32.mrf.mxu0
    %749 = vmatprep.mubr.f32.mxu0 0.0
    %750 = vmatmul.mubr.f32.gmra.mxu0 %v632
    %v751 = vpop.f32.mrf.mxu0
    %v752 = vadd.f32 0.0, %v751
    %v753 = vpop.f32.mrf.mxu0
    %754 = vmatprep.mubr.f32.mxu0 0.0
    %755 = vmatmul.mubr.f32.gmra.mxu0 %v635
    %v756 = vpop.f32.mrf.mxu0
    %v757 = vadd.f32 0.0, %v756
    %v758 = vpop.f32.mrf.mxu0
    %759 = vmatprep.mubr.f32.mxu0 0.0
    %760 = vmatmul.mubr.f32.gmra.mxu0 %v638
    %v761 = vpop.f32.mrf.mxu0
    %v762 = vadd.f32 0.0, %v761
    %v763 = vpop.f32.mrf.mxu0
    %764 = vdwg.mxu0
    %vm765 = vcmask 146432
    %v767 = vsel %vm765, %v579, 0
    %v770 = vsel %vm765, %v580, 0
    %v773 = vsel %vm765, %v581, 0
    %v776 = vsel %vm765, %v582, 0
    %v779 = vsel %vm765, %v583, 0
    %v782 = vsel %vm765, %v584, 0
    %v785 = vsel %vm765, %v585, 0
    %v788 = vsel %vm765, %v586, 0
    %v791 = vsel %vm765, %v587, 0
    %v794 = vsel %vm765, %v588, 0
    %v797 = vsel %vm765, %v589, 0
    %v800 = vsel %vm765, %v590, 0
    %vm802 = vcmask 1041408
    %v804 = vsel %vm802, %v497, 0
    %806 = vmatprep.subr.mxu0 0.0
    %807 = vmatpush1.msra.mxu0 0.0
    %808 = vmatprep.subr.mxu0 0.0
    %809 = vmatpush1.msra.mxu0 0.0
    %810 = vmatprep.subr.mxu0 0.0
    %811 = vmatpush1.msra.mxu0 0.0
    %812 = vmatprep.subr.mxu0 0.0
    %813 = vmatpush1.msra.mxu0 0.0
    %814 = vmatprep.subr.mxu0 0.0
    %815 = vmatpush1.msra.mxu0 0.0
    %816 = vmatprep.subr.mxu0 0.0
    %817 = vmatpush1.msra.mxu0 0.0
    %818 = vmatprep.subr.mxu0 0.0
    %819 = vmatpush1.msra.mxu0 0.0
    %820 = vmatprep.subr.mxu0 0.0
    %821 = vmatpush1.msra.mxu0 0.0
    %822 = vmatprep.subr.mxu0 0.0
    %823 = vmatpush1.msra.mxu0 0.0
    %824 = vmatprep.subr.mxu0 0.0
    %825 = vmatpush1.msra.mxu0 0.0
    %826 = vmatprep.subr.mxu0 0.0
    %827 = vmatpush1.msra.mxu0 0.0
    %828 = vmatprep.subr.mxu0 0.0
    %829 = vmatpush1.msra.mxu0 0.0
    %830 = vmatprep.subr.mxu0 0.0
    %831 = vmatpush1.msra.mxu0 0.0
    %832 = vmatprep.subr.mxu0 0.0
    %833 = vmatpush1.msra.mxu0 %v804
    %834 = vmatprep.subr.mxu0 0.0
    %835 = vmatpush1.msra.mxu0 %v492
    %836 = vmatprep.subr.mxu0 0.0
    %837 = vmatpush1.msra.mxu0 %v489
    %838 = vmatprep.subr.mxu0 0.0
    %839 = vmatpush2.msra.mxu0 0.0
    %840 = vmatprep.subr.mxu0 0.0
    %841 = vmatpush2.msra.mxu0 0.0
    %842 = vmatprep.subr.mxu0 0.0
    %843 = vmatpush2.msra.mxu0 0.0
    %844 = vmatprep.subr.mxu0 0.0
    %845 = vmatpush2.msra.mxu0 0.0
    %846 = vmatprep.subr.mxu0 0.0
    %847 = vmatpush2.msra.mxu0 0.0
    %848 = vmatprep.subr.mxu0 0.0
    %849 = vmatpush2.msra.mxu0 0.0
    %850 = vmatprep.subr.mxu0 0.0
    %851 = vmatpush2.msra.mxu0 0.0
    %852 = vmatprep.subr.mxu0 0.0
    %853 = vmatpush2.msra.mxu0 0.0
    %854 = vmatprep.subr.mxu0 0.0
    %855 = vmatpush2.msra.mxu0 0.0
    %856 = vmatprep.subr.mxu0 0.0
    %857 = vmatpush2.msra.mxu0 0.0
    %858 = vmatprep.subr.mxu0 0.0
    %859 = vmatpush2.msra.mxu0 0.0
    %860 = vmatprep.subr.mxu0 0.0
    %861 = vmatpush2.msra.mxu0 0.0
    %862 = vmatprep.subr.mxu0 0.0
    %863 = vmatpush2.msra.mxu0 0.0
    %864 = vmatprep.subr.mxu0 0.0
    %865 = vmatpush2.msra.mxu0 0.0
    %866 = vmatprep.subr.mxu0 0.0
    %867 = vmatpush2.msra.mxu0 0.0
    %868 = vmatprep.subr.mxu0 0.0
    %869 = vmatpush2.msra.mxu0 0.0
    %870 = vmatprep.mubr.f32.mxu0 0.0
    %871 = vmatmul.mubr.f32.gmra.mxu0 %v767
    %v872 = vpop.f32.mrf.mxu0
    %v873 = vadd.f32 %v707, %v872
    %v874 = vpop.f32.mrf.mxu0
    %875 = vmatprep.mubr.f32.mxu0 0.0
    %876 = vmatmul.mubr.f32.gmra.mxu0 %v770
    %v877 = vpop.f32.mrf.mxu0
    %v878 = vadd.f32 %v712, %v877
    %v879 = vpop.f32.mrf.mxu0
    %880 = vmatprep.mubr.f32.mxu0 0.0
    %881 = vmatmul.mubr.f32.gmra.mxu0 %v773
    %v882 = vpop.f32.mrf.mxu0
    %v883 = vadd.f32 %v717, %v882
    %v884 = vpop.f32.mrf.mxu0
    %885 = vmatprep.mubr.f32.mxu0 0.0
    %886 = vmatmul.mubr.f32.gmra.mxu0 %v776
    %v887 = vpop.f32.mrf.mxu0
    %v888 = vadd.f32 %v722, %v887
    %v889 = vpop.f32.mrf.mxu0
    %890 = vmatprep.mubr.f32.mxu0 0.0
    %891 = vmatmul.mubr.f32.gmra.mxu0 %v779
    %v892 = vpop.f32.mrf.mxu0
    %v893 = vadd.f32 %v727, %v892
    %v894 = vpop.f32.mrf.mxu0
    %895 = vmatprep.mubr.f32.mxu0 0.0
    %896 = vmatmul.mubr.f32.gmra.mxu0 %v782
    %v897 = vpop.f32.mrf.mxu0
    %v898 = vadd.f32 %v732, %v897
    %v899 = vpop.f32.mrf.mxu0
    %900 = vmatprep.mubr.f32.mxu0 0.0
    %901 = vmatmul.mubr.f32.gmra.mxu0 %v785
    %v902 = vpop.f32.mrf.mxu0
    %v903 = vadd.f32 %v737, %v902
    %v904 = vpop.f32.mrf.mxu0
    %905 = vmatprep.mubr.f32.mxu0 0.0
    %906 = vmatmul.mubr.f32.gmra.mxu0 %v788
    %v907 = vpop.f32.mrf.mxu0
    %v908 = vadd.f32 %v742, %v907
    %v909 = vpop.f32.mrf.mxu0
    %910 = vmatprep.mubr.f32.mxu0 0.0
    %911 = vmatmul.mubr.f32.gmra.mxu0 %v791
    %v912 = vpop.f32.mrf.mxu0
    %v913 = vadd.f32 %v747, %v912
    %v914 = vpop.f32.mrf.mxu0
    %915 = vmatprep.mubr.f32.mxu0 0.0
    %916 = vmatmul.mubr.f32.gmra.mxu0 %v794
    %v917 = vpop.f32.mrf.mxu0
    %v918 = vadd.f32 %v752, %v917
    %v919 = vpop.f32.mrf.mxu0
    %920 = vmatprep.mubr.f32.mxu0 0.0
    %921 = vmatmul.mubr.f32.gmra.mxu0 %v797
    %v922 = vpop.f32.mrf.mxu0
    %v923 = vadd.f32 %v757, %v922
    %v924 = vpop.f32.mrf.mxu0
    %925 = vmatprep.mubr.f32.mxu0 0.0
    %926 = vmatmul.mubr.f32.gmra.mxu0 %v800
    %v927 = vpop.f32.mrf.mxu0
    %v928 = vadd.f32 %v762, %v927
    %v929 = vpop.f32.mrf.mxu0
    %930 = vdwg.mxu0
    %v931 = vld [vmem:[%s9] sm:$0x1]
    %v933 = vlaneseq
    %v934 = vshrl.u32 %v933, 7
    %v935 = vsub.s32 0, %v934
    %v936 = vrot.slane %v931, %v935
    %v938 = vadd.f32 %v873, %v936
    %v939 = vadd.f32 %v878, %v936
    %v940 = vadd.f32 %v883, %v936
    %v941 = vadd.f32 %v888, %v936
    %v942 = vadd.f32 %v893, %v936
    %v943 = vadd.f32 %v898, %v936
    %v944 = vadd.f32 %v903, %v936
    %v945 = vadd.f32 %v908, %v936
    %v946 = vadd.f32 %v913, %v936
    %v947 = vadd.f32 %v918, %v936
    %v948 = vadd.f32 %v923, %v936
    %v949 = vadd.f32 %v928, %v936
    %vm950 = vcmp.ge.f32.partialorder %v938, 0.0
    %vm951 = vcmp.ge.f32.partialorder %v939, 0.0
    %vm952 = vcmp.ge.f32.partialorder %v940, 0.0
    %vm953 = vcmp.ge.f32.partialorder %v941, 0.0
    %vm954 = vcmp.ge.f32.partialorder %v942, 0.0
    %vm955 = vcmp.ge.f32.partialorder %v943, 0.0
    %vm956 = vcmp.ge.f32.partialorder %v944, 0.0
    %vm957 = vcmp.ge.f32.partialorder %v945, 0.0
    %vm958 = vcmp.ge.f32.partialorder %v946, 0.0
    %vm959 = vcmp.ge.f32.partialorder %v947, 0.0
    %vm960 = vcmp.ge.f32.partialorder %v948, 0.0
    %vm961 = vcmp.ge.f32.partialorder %v949, 0.0
    %v962 = vmul.f32 %v938, 0.01
    %v963 = vmul.f32 %v939, 0.01
    %v964 = vmul.f32 %v940, 0.01
    %v965 = vmul.f32 %v941, 0.01
    %v966 = vmul.f32 %v942, 0.01
    %v967 = vmul.f32 %v943, 0.01
    %v968 = vmul.f32 %v944, 0.01
    %v969 = vmul.f32 %v945, 0.01
    %v970 = vmul.f32 %v946, 0.01
    %v971 = vmul.f32 %v947, 0.01
    %v972 = vmul.f32 %v948, 0.01
    %v973 = vmul.f32 %v949, 0.01
    %v974 = vsel %vm950, %v938, %v962
    %v975 = vsel %vm951, %v939, %v963
    %v976 = vsel %vm952, %v940, %v964
    %v977 = vsel %vm953, %v941, %v965
    %v978 = vsel %vm954, %v942, %v966
    %v979 = vsel %vm955, %v943, %v967
    %v980 = vsel %vm956, %v944, %v968
    %v981 = vsel %vm957, %v945, %v969
    %v982 = vsel %vm958, %v946, %v970
    %v983 = vsel %vm959, %v947, %v971
    %v984 = vsel %vm960, %v948, %v972
    %v985 = vsel %vm961, %v949, %v973
    %v986 = vld [vmem:[%s12] sm:$0x3]
    %vm987 = vcmask 736256
    %v989 = vsel %vm987, %v986, 0
    %v992 = vsel %vm802, %v985, 0
    %994 = vmatprep.subr.mxu0 0.0
    %995 = vmatpush1.msra.mxu0 0.0
    %996 = vmatprep.subr.mxu0 0.0
    %997 = vmatpush1.msra.mxu0 0.0
    %998 = vmatprep.subr.mxu0 0.0
    %999 = vmatpush1.msra.mxu0 0.0
    %1000 = vmatprep.subr.mxu0 0.0
    %1001 = vmatpush1.msra.mxu0 0.0
    %1002 = vmatprep.subr.mxu0 0.0
    %1003 = vmatpush1.msra.mxu0 %v992
    %1004 = vmatprep.subr.mxu0 0.0
    %1005 = vmatpush1.msra.mxu0 %v984
    %1006 = vmatprep.subr.mxu0 0.0
    %1007 = vmatpush1.msra.mxu0 %v983
    %1008 = vmatprep.subr.mxu0 0.0
    %1009 = vmatpush1.msra.mxu0 %v982
    %1010 = vmatprep.subr.mxu0 0.0
    %1011 = vmatpush1.msra.mxu0 %v981
    %1012 = vmatprep.subr.mxu0 0.0
    %1013 = vmatpush1.msra.mxu0 %v980
    %1014 = vmatprep.subr.mxu0 0.0
    %1015 = vmatpush1.msra.mxu0 %v979
    %1016 = vmatprep.subr.mxu0 0.0
    %1017 = vmatpush1.msra.mxu0 %v978
    %1018 = vmatprep.subr.mxu0 0.0
    %1019 = vmatpush1.msra.mxu0 %v977
    %1020 = vmatprep.subr.mxu0 0.0
    %1021 = vmatpush1.msra.mxu0 %v976
    %1022 = vmatprep.subr.mxu0 0.0
    %1023 = vmatpush1.msra.mxu0 %v975
    %1024 = vmatprep.subr.mxu0 0.0
    %1025 = vmatpush1.msra.mxu0 %v974
    %1026 = vmatprep.subr.mxu0 0.0
    %1027 = vmatpush2.msra.mxu0 0.0
    %1028 = vmatprep.subr.mxu0 0.0
    %1029 = vmatpush2.msra.mxu0 0.0
    %1030 = vmatprep.subr.mxu0 0.0
    %1031 = vmatpush2.msra.mxu0 0.0
    %1032 = vmatprep.subr.mxu0 0.0
    %1033 = vmatpush2.msra.mxu0 0.0
    %1034 = vmatprep.subr.mxu0 0.0
    %1035 = vmatpush2.msra.mxu0 0.0
    %1036 = vmatprep.subr.mxu0 0.0
    %1037 = vmatpush2.msra.mxu0 0.0
    %1038 = vmatprep.subr.mxu0 0.0
    %1039 = vmatpush2.msra.mxu0 0.0
    %1040 = vmatprep.subr.mxu0 0.0
    %1041 = vmatpush2.msra.mxu0 0.0
    %1042 = vmatprep.subr.mxu0 0.0
    %1043 = vmatpush2.msra.mxu0 0.0
    %1044 = vmatprep.subr.mxu0 0.0
    %1045 = vmatpush2.msra.mxu0 0.0
    %1046 = vmatprep.subr.mxu0 0.0
    %1047 = vmatpush2.msra.mxu0 0.0
    %1048 = vmatprep.subr.mxu0 0.0
    %1049 = vmatpush2.msra.mxu0 0.0
    %1050 = vmatprep.subr.mxu0 0.0
    %1051 = vmatpush2.msra.mxu0 0.0
    %1052 = vmatprep.subr.mxu0 0.0
    %1053 = vmatpush2.msra.mxu0 0.0
    %1054 = vmatprep.subr.mxu0 0.0
    %1055 = vmatpush2.msra.mxu0 0.0
    %1056 = vmatprep.subr.mxu0 0.0
    %1057 = vmatpush2.msra.mxu0 0.0
    %1058 = vmatprep.mubr.f32.mxu0 0.0
    %1059 = vmatmul.mubr.f32.gmra.mxu0 %v989
    %v1060 = vpop.f32.mrf.mxu0
    %v1061 = vadd.f32 0.0, %v1060
    %v1062 = vpop.f32.mrf.mxu0
    %1063 = vdwg.mxu0
    %v1064 = vld [vmem:[%s16] sm:$0xff]
    %v1065 = vld [vmem:[%s16 + $0x8] sm:$0xff]
    %v1066 = vld [vmem:[%s16 + $0x10] sm:$0xff]
    %v1067 = vld [vmem:[%s16 + $0x18] sm:$0xff]
    %v1068 = vld [vmem:[%s16 + $0x20] sm:$0xff]
    %v1069 = vld [vmem:[%s16 + $0x28] sm:$0xff]
    %v1070 = vld [vmem:[%s16 + $0x30] sm:$0xff]
    %v1071 = vld [vmem:[%s16 + $0x38] sm:$0xff]
    %v1072 = vld [vmem:[%s16 + $0x40] sm:$0xff]
    %v1073 = vld [vmem:[%s16 + $0x48] sm:$0xff]
    %v1074 = vld [vmem:[%s16 + $0x50] sm:$0xff]
    %v1075 = vld [vmem:[%s16 + $0x58] sm:$0xff]
    %v1076 = vld [vmem:[%s16 + $0x60] sm:$0xff]
    %v1077 = vld [vmem:[%s16 + $0x68] sm:$0xff]
    %v1078 = vld [vmem:[%s16 + $0x70] sm:$0xff]
    %v1079 = vld [vmem:[%s16 + $0x78] sm:$0xff]
    %1080 = vmatprep.subr.mxu0 0.0
    %1081 = vmatpush1.msra.mxu0 %v1079
    %1082 = vmatprep.subr.mxu0 0.0
    %1083 = vmatpush1.msra.mxu0 %v1078
    %1084 = vmatprep.subr.mxu0 0.0
    %1085 = vmatpush1.msra.mxu0 %v1077
    %1086 = vmatprep.subr.mxu0 0.0
    %1087 = vmatpush1.msra.mxu0 %v1076
    %1088 = vmatprep.subr.mxu0 0.0
    %1089 = vmatpush1.msra.mxu0 %v1075
    %1090 = vmatprep.subr.mxu0 0.0
    %1091 = vmatpush1.msra.mxu0 %v1074
    %1092 = vmatprep.subr.mxu0 0.0
    %1093 = vmatpush1.msra.mxu0 %v1073
    %1094 = vmatprep.subr.mxu0 0.0
    %1095 = vmatpush1.msra.mxu0 %v1072
    %1096 = vmatprep.subr.mxu0 0.0
    %1097 = vmatpush1.msra.mxu0 %v1071
    %1098 = vmatprep.subr.mxu0 0.0
    %1099 = vmatpush1.msra.mxu0 %v1070
    %1100 = vmatprep.subr.mxu0 0.0
    %1101 = vmatpush1.msra.mxu0 %v1069
    %1102 = vmatprep.subr.mxu0 0.0
    %1103 = vmatpush1.msra.mxu0 %v1068
    %1104 = vmatprep.subr.mxu0 0.0
    %1105 = vmatpush1.msra.mxu0 %v1067
    %1106 = vmatprep.subr.mxu0 0.0
    %1107 = vmatpush1.msra.mxu0 %v1066
    %1108 = vmatprep.subr.mxu0 0.0
    %1109 = vmatpush1.msra.mxu0 %v1065
    %1110 = vmatprep.subr.mxu0 0.0
    %1111 = vmatpush1.msra.mxu0 %v1064
    %1112 = vmatprep.subr.mxu0 0.0
    %1113 = vmatpush2.msra.mxu0 0.0
    %1114 = vmatprep.subr.mxu0 0.0
    %1115 = vmatpush2.msra.mxu0 0.0
    %1116 = vmatprep.subr.mxu0 0.0
    %1117 = vmatpush2.msra.mxu0 0.0
    %1118 = vmatprep.subr.mxu0 0.0
    %1119 = vmatpush2.msra.mxu0 0.0
    %1120 = vmatprep.subr.mxu0 0.0
    %1121 = vmatpush2.msra.mxu0 0.0
    %1122 = vmatprep.subr.mxu0 0.0
    %1123 = vmatpush2.msra.mxu0 0.0
    %1124 = vmatprep.subr.mxu0 0.0
    %1125 = vmatpush2.msra.mxu0 0.0
    %1126 = vmatprep.subr.mxu0 0.0
    %1127 = vmatpush2.msra.mxu0 0.0
    %1128 = vmatprep.subr.mxu0 0.0
    %1129 = vmatpush2.msra.mxu0 0.0
    %1130 = vmatprep.subr.mxu0 0.0
    %1131 = vmatpush2.msra.mxu0 0.0
    %1132 = vmatprep.subr.mxu0 0.0
    %1133 = vmatpush2.msra.mxu0 0.0
    %1134 = vmatprep.subr.mxu0 0.0
    %1135 = vmatpush2.msra.mxu0 0.0
    %1136 = vmatprep.subr.mxu0 0.0
    %1137 = vmatpush2.msra.mxu0 0.0
    %1138 = vmatprep.subr.mxu0 0.0
    %1139 = vmatpush2.msra.mxu0 0.0
    %1140 = vmatprep.subr.mxu0 0.0
    %1141 = vmatpush2.msra.mxu0 0.0
    %1142 = vmatprep.subr.mxu0 0.0
    %1143 = vmatpush2.msra.mxu0 0.0
    %1144 = vmatprep.mubr.f32.mxu0 0.0
    %1145 = vmatmul.mubr.f32.gmra.mxu0 %v974
    %v1146 = vpop.f32.mrf.mxu0
    %v1147 = vadd.f32 0.0, %v1146
    %v1148 = vpop.f32.mrf.mxu0
    %1149 = vmatprep.mubr.f32.mxu0 0.0
    %1150 = vmatmul.mubr.f32.gmra.mxu0 %v975
    %v1151 = vpop.f32.mrf.mxu0
    %v1152 = vadd.f32 0.0, %v1151
    %v1153 = vpop.f32.mrf.mxu0
    %1154 = vmatprep.mubr.f32.mxu0 0.0
    %1155 = vmatmul.mubr.f32.gmra.mxu0 %v976
    %v1156 = vpop.f32.mrf.mxu0
    %v1157 = vadd.f32 0.0, %v1156
    %v1158 = vpop.f32.mrf.mxu0
    %1159 = vmatprep.mubr.f32.mxu0 0.0
    %1160 = vmatmul.mubr.f32.gmra.mxu0 %v977
    %v1161 = vpop.f32.mrf.mxu0
    %v1162 = vadd.f32 0.0, %v1161
    %v1163 = vpop.f32.mrf.mxu0
    %1164 = vmatprep.mubr.f32.mxu0 0.0
    %1165 = vmatmul.mubr.f32.gmra.mxu0 %v978
    %v1166 = vpop.f32.mrf.mxu0
    %v1167 = vadd.f32 0.0, %v1166
    %v1168 = vpop.f32.mrf.mxu0
    %1169 = vmatprep.mubr.f32.mxu0 0.0
    %1170 = vmatmul.mubr.f32.gmra.mxu0 %v979
    %v1171 = vpop.f32.mrf.mxu0
    %v1172 = vadd.f32 0.0, %v1171
    %v1173 = vpop.f32.mrf.mxu0
    %1174 = vmatprep.mubr.f32.mxu0 0.0
    %1175 = vmatmul.mubr.f32.gmra.mxu0 %v980
    %v1176 = vpop.f32.mrf.mxu0
    %v1177 = vadd.f32 0.0, %v1176
    %v1178 = vpop.f32.mrf.mxu0
    %1179 = vmatprep.mubr.f32.mxu0 0.0
    %1180 = vmatmul.mubr.f32.gmra.mxu0 %v981
    %v1181 = vpop.f32.mrf.mxu0
    %v1182 = vadd.f32 0.0, %v1181
    %v1183 = vpop.f32.mrf.mxu0
    %1184 = vmatprep.mubr.f32.mxu0 0.0
    %1185 = vmatmul.mubr.f32.gmra.mxu0 %v982
    %v1186 = vpop.f32.mrf.mxu0
    %v1187 = vadd.f32 0.0, %v1186
    %v1188 = vpop.f32.mrf.mxu0
    %1189 = vmatprep.mubr.f32.mxu0 0.0
    %1190 = vmatmul.mubr.f32.gmra.mxu0 %v983
    %v1191 = vpop.f32.mrf.mxu0
    %v1192 = vadd.f32 0.0, %v1191
    %v1193 = vpop.f32.mrf.mxu0
    %1194 = vmatprep.mubr.f32.mxu0 0.0
    %1195 = vmatmul.mubr.f32.gmra.mxu0 %v984
    %v1196 = vpop.f32.mrf.mxu0
    %v1197 = vadd.f32 0.0, %v1196
    %v1198 = vpop.f32.mrf.mxu0
    %1199 = vmatprep.mubr.f32.mxu0 0.0
    %1200 = vmatmul.mubr.f32.gmra.mxu0 %v985
    %v1201 = vpop.f32.mrf.mxu0
    %v1202 = vadd.f32 0.0, %v1201
    %v1203 = vpop.f32.mrf.mxu0
    %1204 = vdwg.mxu0
    %v1205 = vld [vmem:[%s14] sm:$0xff]
    %v1206 = vld [vmem:[%s14 + $0x8] sm:$0xff]
    %v1207 = vld [vmem:[%s14 + $0x10] sm:$0xff]
    %v1208 = vld [vmem:[%s14 + $0x18] sm:$0xff]
    %v1209 = vld [vmem:[%s14 + $0x20] sm:$0xff]
    %v1210 = vld [vmem:[%s14 + $0x28] sm:$0xff]
    %v1211 = vld [vmem:[%s14 + $0x30] sm:$0xff]
    %v1212 = vld [vmem:[%s14 + $0x38] sm:$0xff]
    %v1213 = vld [vmem:[%s14 + $0x40] sm:$0xff]
    %v1214 = vld [vmem:[%s14 + $0x48] sm:$0xff]
    %v1215 = vld [vmem:[%s14 + $0x50] sm:$0xff]
    %v1216 = vld [vmem:[%s14 + $0x58] sm:$0x3]
    %v1217 = vmul.f32 %v1147, %v1205
    %v1218 = vmul.f32 %v1152, %v1206
    %v1219 = vmul.f32 %v1157, %v1207
    %v1220 = vmul.f32 %v1162, %v1208
    %v1221 = vmul.f32 %v1167, %v1209
    %v1222 = vmul.f32 %v1172, %v1210
    %v1223 = vmul.f32 %v1177, %v1211
    %v1224 = vmul.f32 %v1182, %v1212
    %v1225 = vmul.f32 %v1187, %v1213
    %v1226 = vmul.f32 %v1192, %v1214
    %v1227 = vmul.f32 %v1197, %v1215
    %v1228 = vmul.f32 %v1202, %v1216
    %v1229 = vld [vmem:[%s13] sm:$0x3]
    %v1231 = vsel %vm987, %v1229, 0
    %v1234 = vsel %vm802, %v1228, 0
    %1236 = vmatprep.subr.mxu0 0.0
    %1237 = vmatpush1.msra.mxu0 0.0
    %1238 = vmatprep.subr.mxu0 0.0
    %1239 = vmatpush1.msra.mxu0 0.0
    %1240 = vmatprep.subr.mxu0 0.0
    %1241 = vmatpush1.msra.mxu0 0.0
    %1242 = vmatprep.subr.mxu0 0.0
    %1243 = vmatpush1.msra.mxu0 0.0
    %1244 = vmatprep.subr.mxu0 0.0
    %1245 = vmatpush1.msra.mxu0 %v1234
    %1246 = vmatprep.subr.mxu0 0.0
    %1247 = vmatpush1.msra.mxu0 %v1227
    %1248 = vmatprep.subr.mxu0 0.0
    %1249 = vmatpush1.msra.mxu0 %v1226
    %1250 = vmatprep.subr.mxu0 0.0
    %1251 = vmatpush1.msra.mxu0 %v1225
    %1252 = vmatprep.subr.mxu0 0.0
    %1253 = vmatpush1.msra.mxu0 %v1224
    %1254 = vmatprep.subr.mxu0 0.0
    %1255 = vmatpush1.msra.mxu0 %v1223
    %1256 = vmatprep.subr.mxu0 0.0
    %1257 = vmatpush1.msra.mxu0 %v1222
    %1258 = vmatprep.subr.mxu0 0.0
    %1259 = vmatpush1.msra.mxu0 %v1221
    %1260 = vmatprep.subr.mxu0 0.0
    %1261 = vmatpush1.msra.mxu0 %v1220
    %1262 = vmatprep.subr.mxu0 0.0
    %1263 = vmatpush1.msra.mxu0 %v1219
    %1264 = vmatprep.subr.mxu0 0.0
    %1265 = vmatpush1.msra.mxu0 %v1218
    %1266 = vmatprep.subr.mxu0 0.0
    %1267 = vmatpush1.msra.mxu0 %v1217
    %1268 = vmatprep.subr.mxu0 0.0
    %1269 = vmatpush2.msra.mxu0 0.0
    %1270 = vmatprep.subr.mxu0 0.0
    %1271 = vmatpush2.msra.mxu0 0.0
    %1272 = vmatprep.subr.mxu0 0.0
    %1273 = vmatpush2.msra.mxu0 0.0
    %1274 = vmatprep.subr.mxu0 0.0
    %1275 = vmatpush2.msra.mxu0 0.0
    %1276 = vmatprep.subr.mxu0 0.0
    %1277 = vmatpush2.msra.mxu0 0.0
    %1278 = vmatprep.subr.mxu0 0.0
    %1279 = vmatpush2.msra.mxu0 0.0
    %1280 = vmatprep.subr.mxu0 0.0
    %1281 = vmatpush2.msra.mxu0 0.0
    %1282 = vmatprep.subr.mxu0 0.0
    %1283 = vmatpush2.msra.mxu0 0.0
    %1284 = vmatprep.subr.mxu0 0.0
    %1285 = vmatpush2.msra.mxu0 0.0
    %1286 = vmatprep.subr.mxu0 0.0
    %1287 = vmatpush2.msra.mxu0 0.0
    %1288 = vmatprep.subr.mxu0 0.0
    %1289 = vmatpush2.msra.mxu0 0.0
    %1290 = vmatprep.subr.mxu0 0.0
    %1291 = vmatpush2.msra.mxu0 0.0
    %1292 = vmatprep.subr.mxu0 0.0
    %1293 = vmatpush2.msra.mxu0 0.0
    %1294 = vmatprep.subr.mxu0 0.0
    %1295 = vmatpush2.msra.mxu0 0.0
    %1296 = vmatprep.subr.mxu0 0.0
    %1297 = vmatpush2.msra.mxu0 0.0
    %1298 = vmatprep.subr.mxu0 0.0
    %1299 = vmatpush2.msra.mxu0 0.0
    %1300 = vmatprep.mubr.f32.mxu0 0.0
    %1301 = vmatmul.mubr.f32.gmra.mxu0 %v1231
    %v1302 = vpop.f32.mrf.mxu0
    %v1303 = vadd.f32 0.0, %v1302
    %v1304 = vpop.f32.mrf.mxu0
    %1305 = vdwg.mxu0
    %v1306 = vld [vmem:[%s15] sm:$0xff]
    %v1307 = vld [vmem:[%s15 + $0x8] sm:$0xff]
    %v1308 = vld [vmem:[%s15 + $0x10] sm:$0xff]
    %v1309 = vld [vmem:[%s15 + $0x18] sm:$0xff]
    %v1310 = vld [vmem:[%s15 + $0x20] sm:$0xf]
    %v1311 = vld [vmem:[%s17] sm:$0xff]
    %v1312 = vld [vmem:[%s17 + $0x8] sm:$0xff]
    %v1313 = vld [vmem:[%s17 + $0x10] sm:$0xff]
    %v1314 = vld [vmem:[%s17 + $0x18] sm:$0xff]
    %v1315 = vld [vmem:[%s17 + $0x20] sm:$0xff]
    %v1316 = vld [vmem:[%s17 + $0x28] sm:$0xff]
    %v1317 = vld [vmem:[%s17 + $0x30] sm:$0xff]
    %v1318 = vld [vmem:[%s17 + $0x38] sm:$0xff]
    %v1319 = vld [vmem:[%s17 + $0x40] sm:$0xff]
    %v1320 = vld [vmem:[%s17 + $0x48] sm:$0xff]
    %v1321 = vld [vmem:[%s17 + $0x50] sm:$0xff]
    %v1322 = vld [vmem:[%s17 + $0x58] sm:$0xff]
    %v1323 = vld [vmem:[%s17 + $0x60] sm:$0xff]
    %v1324 = vld [vmem:[%s17 + $0x68] sm:$0xff]
    %v1325 = vld [vmem:[%s17 + $0x70] sm:$0xff]
    %v1326 = vld [vmem:[%s17 + $0x78] sm:$0xff]
    %1327 = vmatprep.subr.mxu0 0.0
    %1328 = vmatpush1.msra.mxu0 %v1326
    %1329 = vmatprep.subr.mxu0 0.0
    %1330 = vmatpush1.msra.mxu0 %v1325
    %1331 = vmatprep.subr.mxu0 0.0
    %1332 = vmatpush1.msra.mxu0 %v1324
    %1333 = vmatprep.subr.mxu0 0.0
    %1334 = vmatpush1.msra.mxu0 %v1323
    %1335 = vmatprep.subr.mxu0 0.0
    %1336 = vmatpush1.msra.mxu0 %v1322
    %1337 = vmatprep.subr.mxu0 0.0
    %1338 = vmatpush1.msra.mxu0 %v1321
    %1339 = vmatprep.subr.mxu0 0.0
    %1340 = vmatpush1.msra.mxu0 %v1320
    %1341 = vmatprep.subr.mxu0 0.0
    %1342 = vmatpush1.msra.mxu0 %v1319
    %1343 = vmatprep.subr.mxu0 0.0
    %1344 = vmatpush1.msra.mxu0 %v1318
    %1345 = vmatprep.subr.mxu0 0.0
    %1346 = vmatpush1.msra.mxu0 %v1317
    %1347 = vmatprep.subr.mxu0 0.0
    %1348 = vmatpush1.msra.mxu0 %v1316
    %1349 = vmatprep.subr.mxu0 0.0
    %1350 = vmatpush1.msra.mxu0 %v1315
    %1351 = vmatprep.subr.mxu0 0.0
    %1352 = vmatpush1.msra.mxu0 %v1314
    %1353 = vmatprep.subr.mxu0 0.0
    %1354 = vmatpush1.msra.mxu0 %v1313
    %1355 = vmatprep.subr.mxu0 0.0
    %1356 = vmatpush1.msra.mxu0 %v1312
    %1357 = vmatprep.subr.mxu0 0.0
    %1358 = vmatpush1.msra.mxu0 %v1311
    %1359 = vmatprep.subr.mxu0 0.0
    %1360 = vmatpush2.msra.mxu0 0.0
    %1361 = vmatprep.subr.mxu0 0.0
    %1362 = vmatpush2.msra.mxu0 0.0
    %1363 = vmatprep.subr.mxu0 0.0
    %1364 = vmatpush2.msra.mxu0 0.0
    %1365 = vmatprep.subr.mxu0 0.0
    %1366 = vmatpush2.msra.mxu0 0.0
    %1367 = vmatprep.subr.mxu0 0.0
    %1368 = vmatpush2.msra.mxu0 0.0
    %1369 = vmatprep.subr.mxu0 0.0
    %1370 = vmatpush2.msra.mxu0 0.0
    %1371 = vmatprep.subr.mxu0 0.0
    %1372 = vmatpush2.msra.mxu0 0.0
    %1373 = vmatprep.subr.mxu0 0.0
    %1374 = vmatpush2.msra.mxu0 0.0
    %1375 = vmatprep.subr.mxu0 0.0
    %1376 = vmatpush2.msra.mxu0 0.0
    %1377 = vmatprep.subr.mxu0 0.0
    %1378 = vmatpush2.msra.mxu0 0.0
    %1379 = vmatprep.subr.mxu0 0.0
    %1380 = vmatpush2.msra.mxu0 0.0
    %1381 = vmatprep.subr.mxu0 0.0
    %1382 = vmatpush2.msra.mxu0 0.0
    %1383 = vmatprep.subr.mxu0 0.0
    %1384 = vmatpush2.msra.mxu0 0.0
    %1385 = vmatprep.subr.mxu0 0.0
    %1386 = vmatpush2.msra.mxu0 0.0
    %1387 = vmatprep.subr.mxu0 0.0
    %1388 = vmatpush2.msra.mxu0 0.0
    %1389 = vmatprep.subr.mxu0 0.0
    %1390 = vmatpush2.msra.mxu0 0.0
    %1391 = vmatprep.mubr.f32.mxu0 0.0
    %1392 = vmatmul.mubr.f32.gmra.mxu0 %v1061
    %v1393 = vpop.f32.mrf.mxu0
    %v1394 = vadd.f32 0.0, %v1393
    %v1395 = vpop.f32.mrf.mxu0
    %1396 = vdwg.mxu0
    %vm1397 = vcmask 293888
    %v1399 = vsel %vm1397, %v1303, 0
    %vm1401 = vcmask 1043456
    %v1403 = vsel %vm1401, %v1310, 0
    %1405 = vmatprep.subr.mxu0 0.0
    %1406 = vmatpush1.msra.mxu0 0.0
    %1407 = vmatprep.subr.mxu0 0.0
    %1408 = vmatpush1.msra.mxu0 0.0
    %1409 = vmatprep.subr.mxu0 0.0
    %1410 = vmatpush1.msra.mxu0 0.0
    %1411 = vmatprep.subr.mxu0 0.0
    %1412 = vmatpush1.msra.mxu0 0.0
    %1413 = vmatprep.subr.mxu0 0.0
    %1414 = vmatpush1.msra.mxu0 0.0
    %1415 = vmatprep.subr.mxu0 0.0
    %1416 = vmatpush1.msra.mxu0 0.0
    %1417 = vmatprep.subr.mxu0 0.0
    %1418 = vmatpush1.msra.mxu0 0.0
    %1419 = vmatprep.subr.mxu0 0.0
    %1420 = vmatpush1.msra.mxu0 0.0
    %1421 = vmatprep.subr.mxu0 0.0
    %1422 = vmatpush1.msra.mxu0 0.0
    %1423 = vmatprep.subr.mxu0 0.0
    %1424 = vmatpush1.msra.mxu0 0.0
    %1425 = vmatprep.subr.mxu0 0.0
    %1426 = vmatpush1.msra.mxu0 0.0
    %1427 = vmatprep.subr.mxu0 0.0
    %1428 = vmatpush1.msra.mxu0 %v1403
    %1429 = vmatprep.subr.mxu0 0.0
    %1430 = vmatpush1.msra.mxu0 %v1309
    %1431 = vmatprep.subr.mxu0 0.0
    %1432 = vmatpush1.msra.mxu0 %v1308
    %1433 = vmatprep.subr.mxu0 0.0
    %1434 = vmatpush1.msra.mxu0 %v1307
    %1435 = vmatprep.subr.mxu0 0.0
    %1436 = vmatpush1.msra.mxu0 %v1306
    %1437 = vmatprep.subr.mxu0 0.0
    %1438 = vmatpush2.msra.mxu0 0.0
    %1439 = vmatprep.subr.mxu0 0.0
    %1440 = vmatpush2.msra.mxu0 0.0
    %1441 = vmatprep.subr.mxu0 0.0
    %1442 = vmatpush2.msra.mxu0 0.0
    %1443 = vmatprep.subr.mxu0 0.0
    %1444 = vmatpush2.msra.mxu0 0.0
    %1445 = vmatprep.subr.mxu0 0.0
    %1446 = vmatpush2.msra.mxu0 0.0
    %1447 = vmatprep.subr.mxu0 0.0
    %1448 = vmatpush2.msra.mxu0 0.0
    %1449 = vmatprep.subr.mxu0 0.0
    %1450 = vmatpush2.msra.mxu0 0.0
    %1451 = vmatprep.subr.mxu0 0.0
    %1452 = vmatpush2.msra.mxu0 0.0
    %1453 = vmatprep.subr.mxu0 0.0
    %1454 = vmatpush2.msra.mxu0 0.0
    %1455 = vmatprep.subr.mxu0 0.0
    %1456 = vmatpush2.msra.mxu0 0.0
    %1457 = vmatprep.subr.mxu0 0.0
    %1458 = vmatpush2.msra.mxu0 0.0
    %1459 = vmatprep.subr.mxu0 0.0
    %1460 = vmatpush2.msra.mxu0 0.0
    %1461 = vmatprep.subr.mxu0 0.0
    %1462 = vmatpush2.msra.mxu0 0.0
    %1463 = vmatprep.subr.mxu0 0.0
    %1464 = vmatpush2.msra.mxu0 0.0
    %1465 = vmatprep.subr.mxu0 0.0
    %1466 = vmatpush2.msra.mxu0 0.0
    %1467 = vmatprep.subr.mxu0 0.0
    %1468 = vmatpush2.msra.mxu0 0.0
    %1469 = vmatprep.mubr.f32.mxu0 0.0
    %1470 = vmatmul.mubr.f32.gmra.mxu0 %v1399
    %v1471 = vpop.f32.mrf.mxu0
    %v1472 = vadd.f32 %v1394, %v1471
    %v1473 = vpop.f32.mrf.mxu0
    %1474 = vdwg.mxu0
    %v1475 = vld [vmem:[%s18] sm:$0x1]
    %v1477 = vlaneseq
    %v1478 = vshrl.u32 %v1477, 7
    %v1479 = vsub.s32 0, %v1478
    %v1480 = vrot.slane %v1475, %v1479
    %v1482 = vadd.f32 %v1472, %v1480
    %vm1483 = vcmask 25600
    %1484 = vst.msk [vmem:[#allocation2] sm:$0x3] %vm1483, %v1482
    // Predicated region
    $region78: #{forward.9} parent=1 // pred_check
      _
    $region79: #{forward.9} parent=1 // pred_check_branch
      %1486 = sbr.rel (0) target = $region81
    $region80: #{forward.9} parent=1 // pred_region
      _
    $region81: #{forward.9} parent=1 // pred_fallthru
      _
    // Predicated region
    $region82: #{forward.9} parent=1 // pred_check
      _
    $region83: #{forward.9} parent=1 // pred_check_branch
      %1488 = sbr.rel (0) target = $region85
    $region84: #{forward.9} parent=1 // pred_region
      %s1490 = ssub.s32 32, 32
      %1491 = vsyncadd [#allocation3], %s1490
      %s1493 = sshll.u32 [#allocation2], 4
      %s1494 = int_to_ptr.vmem [resolvable:$true] %s1493
      %1496 = dma.vmem_to_hbm [thread:$0]  %s1494, 32, %s20, [#allocation3]
    $region85: #{forward.9} parent=1 // pred_fallthru
      _
    // Predicated region
    $region86: #{forward.9} parent=1 // pred_check
      _
    $region87: #{forward.9} parent=1 // pred_check_branch
      %1498 = sbr.rel (0) target = $region89
    $region88: #{forward.9} parent=1 // pred_region
      _
    $region89: #{forward.9} parent=1 // pred_fallthru
      _
    // Predicated region
    $region90: #{forward.9} parent=1 // pred_check
      _
    $region91: #{forward.9} parent=1 // pred_check_branch
      %1500 = sbr.rel (0) target = $region93
    $region92: #{forward.9} parent=1 // pred_region
      %1501 = dma.done [#allocation3], 32
    $region93: #{forward.9} parent=1 // pred_fallthru
      _
    %1502 = vsyncpa [#allocation3], 1

</llo_original>
